<compile_context>
chip_gen: v6e
topology: v6e:2x2x1
jax: 0.10.0
libtpu: 0.0.40
codegen_flags: <defaults>
</compile_context>

<pallas_src>
import functools

import jax
import jax.numpy as jnp
from jax import lax
from jax.experimental import pallas as pl
from jax.experimental.pallas import tpu as pltpu

# Small demo shapes. hidden is scaled 768 -> 128 so the lane (last) dimension
# of every activation stays a full 128-lane vreg (lane-dense layouts).
BATCH = 2
SEQ = 8
EMB = 128            # stand-in for ALBERT hidden 768 (multiple of 128)
HEAD = 4
DH = EMB // HEAD
FFN = 256
VOCAB = 64
TYPES = 2
NUM_TAGS = 20
NUM_LAYERS = 2       # ALBERT applies ONE shared layer this many times
LN_EPS = 1e-12
M = BATCH * SEQ
NEG_INF = -1e30


def _layernorm(h, gamma, beta):
    mean = jnp.mean(h, axis=-1, keepdims=True)
    var = jnp.mean(jnp.square(h - mean), axis=-1, keepdims=True)
    return (h - mean) * lax.rsqrt(var + LN_EPS) * gamma + beta


# ---------------------------------------------------------------------------
# Fused ALBERT encoder (ONE pallas_call for ALL layers):
#   grid = (batch, layer); layer axis is 'arbitrary' and carries the activation
#   in a VMEM scratch; batch axis is 'parallel' (per-example attention, so this
#   is exact and also feeds v7x's second TensorCore).  Shared weights use a
#   constant index_map -> DMA'd from HBM once for the whole grid.
# ---------------------------------------------------------------------------
def _albert_encoder_kernel(x_in_ref, kbias_ref, wqkv_ref, bqkv_ref, wo_ref,
                           bo_ref, g1_ref, b1_ref, wf1_ref, bf1_ref, wf2_ref,
                           bf2_ref, g2_ref, b2_ref, o_ref, x_scr):
    layer = pl.program_id(1)

    # First layer of this example: load the embedding block into the carry.
    @pl.when(layer == 0)
    def _():
        x_scr[...] = x_in_ref[...]

    x = x_scr[...]                                   # (S, E)
    kbias = kbias_ref[...]                           # (1, S) additive key mask

    # One MXU pass for Q, K, V (attention scale already folded into Q columns).
    qkv = jnp.dot(x, wqkv_ref[...],
                  preferred_element_type=jnp.float32) + bqkv_ref[...]

    ctx_parts = []
    for h in range(HEAD):                            # all heads, one grid step
        qh = qkv[:, h * DH:(h + 1) * DH]
        kh = qkv[:, EMB + h * DH:EMB + (h + 1) * DH]
        vh = qkv[:, 2 * EMB + h * DH:2 * EMB + (h + 1) * DH]
        s = lax.dot_general(qh, kh, (((1,), (1,)), ((), ())),
                            preferred_element_type=jnp.float32) + kbias
        s = s - jnp.max(s, axis=-1, keepdims=True)
        p = jnp.exp(s)
        p = p * pl.reciprocal(jnp.sum(p, axis=-1, keepdims=True), approx=True)
        ctx_parts.append(jnp.dot(p, vh, preferred_element_type=jnp.float32))

    # Single full-width output projection instead of 4 tiny K=32 MXU passes.
    ctx = jnp.concatenate(ctx_parts, axis=-1)        # (S, E)
    attn = jnp.dot(ctx, wo_ref[...],
                   preferred_element_type=jnp.float32) + bo_ref[...]
    h1 = _layernorm(x + attn, g1_ref[...], b1_ref[...])

    f = jnp.dot(h1, wf1_ref[...], preferred_element_type=jnp.float32) + bf1_ref[...]
    f = jax.nn.gelu(f, approximate=True)
    f = jnp.dot(f, wf2_ref[...], preferred_element_type=jnp.float32) + bf2_ref[...]
    h2 = _layernorm(h1 + f, g2_ref[...], b2_ref[...])

    x_scr[...] = h2                                  # carry to next layer

    @pl.when(layer == pl.num_programs(1) - 1)
    def _():
        o_ref[...] = h2.astype(o_ref.dtype)


def _const_spec(shape):
    """Weight BlockSpec: whole array, same block for every (b, layer) step."""
    zeros = (0,) * len(shape)
    return pl.BlockSpec(shape, lambda b, l, _z=zeros: _z)


def albert_encoder(x_flat, kbias, lp):
    """x_flat: (B*S, E) embeddings; kbias: (B, 1, S) additive key-padding mask."""
    weights = (lp["wqkv"], lp["bqkv"], lp["wo"], lp["bo"],
               lp["g1"], lp["b1"], lp["wf1"], lp["bf1"],
               lp["wf2"], lp["bf2"], lp["g2"], lp["b2"])
    in_specs = [pl.BlockSpec((SEQ, EMB), lambda b, l: (b, 0)),
                pl.BlockSpec((None, 1, SEQ), lambda b, l: (b, 0, 0))]
    in_specs += [_const_spec(w.shape) for w in weights]
    return pl.pallas_call(
        _albert_encoder_kernel,
        out_shape=jax.ShapeDtypeStruct(x_flat.shape, x_flat.dtype),
        grid_spec=pltpu.PrefetchScalarGridSpec(
            num_scalar_prefetch=0,
            grid=(BATCH, NUM_LAYERS),
            in_specs=in_specs,
            out_specs=pl.BlockSpec((SEQ, EMB), lambda b, l: (b, 0)),
            scratch_shapes=[pltpu.VMEM((SEQ, EMB), jnp.float32)]),
        # TODO(synk): at real ALBERT shapes set vmem_limit_bytes and re-derive
        # the (q-tile, kv-tile) attention tiling per TPU generation.
        compiler_params=pltpu.CompilerParams(
            dimension_semantics=("parallel", "arbitrary")),
    )(x_flat, kbias, *weights)


# ---------------------------------------------------------------------------
# Fused TagValueModel heads (one pallas_call):
#   pooler(tanh) -> tags linear;  starts & ends emitted as ONE packed
#   (2*T, B*S) slab via a single (2T,E)x(E,B*S) MXU pass (already in the
#   permuted (B, T, S) layout after a wrapper reshape), + softmax_mask;
#   get_emb masked mean as ONE (B,B*S)x(B*S,E) MXU pass.
# ---------------------------------------------------------------------------
def _heads_kernel(x_ref, fs_ref, sm_ref, wp_ref, bp_ref, wt_ref, bt_ref,
                  wse_ref, bse_ref, se_ref, tags_ref, emb_ref):
    x = x_ref[...]                                               # (M, E)

    # ALBERT pooler ([CLS] -> dense -> tanh) + tags head (dropout == identity).
    cls = x.reshape(BATCH, SEQ, EMB)[:, 0, :]                    # (B, E)
    pooled = jnp.tanh(jnp.dot(cls, wp_ref[...],
                              preferred_element_type=jnp.float32) + bp_ref[...])
    tags_ref[...] = (jnp.dot(pooled, wt_ref[...],
                             preferred_element_type=jnp.float32)
                     + bt_ref[...]).astype(tags_ref.dtype)

    # starts|ends packed: (2T, M) == Linear(x0).permute(0,2,1) flattened over B.
    se = lax.dot_general(wse_ref[...], x, (((1,), (1,)), ((), ())),
                         preferred_element_type=jnp.float32)     # (2T, M)
    se_ref[...] = (se + bse_ref[...] + sm_ref[...]).astype(se_ref.dtype)

    # get_emb: masked mean over first-sentence tokens as one matmul against the
    # block-diagonal (B, B*S) first-sentence mask built in the wrapper.
    fs = fs_ref[...]                                             # (B, M)
    num = jnp.dot(fs, x, preferred_element_type=jnp.float32)     # (B, E)
    den = jnp.sum(fs, axis=-1, keepdims=True)                    # (B, 1)
    emb_ref[...] = (num / den).astype(emb_ref.dtype)


def _fs_spec(shape):
    """Full-array BlockSpec for a grid=(1,) pallas_call (one DMA per operand)."""
    zeros = (0,) * len(shape)
    return pl.BlockSpec(shape, lambda i, _z=zeros: _z)


def tag_value_heads(x_flat, fs_mat, sm_row, p):
    args = (x_flat, fs_mat, sm_row,
            p["w_pool"], p["b_pool"], p["w_tags"], p["b_tags"],
            p["w_se"], p["b_se"])
    out_shape = (jax.ShapeDtypeStruct((2 * NUM_TAGS, M), x_flat.dtype),
                 jax.ShapeDtypeStruct((BATCH, NUM_TAGS), x_flat.dtype),
                 jax.ShapeDtypeStruct((BATCH, EMB), x_flat.dtype))
    return pl.pallas_call(
        _heads_kernel,
        out_shape=out_shape,
        grid=(1,),
        in_specs=[_fs_spec(a.shape) for a in args],
        out_specs=tuple(_fs_spec(s.shape) for s in out_shape),
        compiler_params=pltpu.CompilerParams(dimension_semantics=("arbitrary",)),
    )(*args)


# ---------------------------------------------------------------------------
# Model glue
# ---------------------------------------------------------------------------
def tag_value_forward(params, ids, type_ids, att_ids, softmax_mask=None):
    """Mirrors TagValueModel.forward (inference). Returns
    (pred_tags, pred_starts, pred_ends, emb)."""
    B, S = ids.shape
    # Token/positional/type embedding gathers stay in XLA (tiny lookups).
    x = (params["word_emb"][ids]
         + params["pos_emb"][None, :S, :]
         + params["type_emb"][type_ids]).astype(jnp.float32)
    x = x.reshape(B * S, EMB)

    att_f = att_ids.astype(jnp.float32)
    # Additive key-padding bias, precomputed ONCE and reused by every layer.
    kbias = jnp.where(att_f > 0.5, 0.0, NEG_INF).reshape(B, 1, S)

    # ALBERT weight sharing: ONE fused kernel runs all NUM_LAYERS applications.
    x = albert_encoder(x, kbias, params["layer"])                # (B*S, E)

    type_f = type_ids.astype(jnp.float32)
    if softmax_mask is None:
        softmax_mask = jnp.zeros((B, S), jnp.float32)
    sm_row = softmax_mask.astype(jnp.float32).reshape(1, B * S)
    # Block-diagonal first-sentence mask for the masked-mean matmul.
    fs = (1.0 - type_f) * att_f                                  # (B, S)
    fs_mat = (jnp.eye(B, dtype=jnp.float32)[:, :, None]
              * fs[None, :, :]).reshape(B, B * S)                # (B, B*S)

    se, pred_tags, emb = tag_value_heads(x, fs_mat, sm_row, params)
    T = NUM_TAGS
    pred_starts = se[:T].reshape(T, B, S).transpose(1, 0, 2)     # (B, T, S)
    pred_ends = se[T:].reshape(T, B, S).transpose(1, 0, 2)       # (B, T, S)
    return pred_tags, pred_starts, pred_ends, emb


# ---------------------------------------------------------------------------
# Deterministic parameter init (nn.Linear-style uniform fan-in init)
# ---------------------------------------------------------------------------
def _uniform(key, shape, fan_in):
    bound = 1.0 / (fan_in ** 0.5)
    return jax.random.uniform(key, shape, jnp.float32, -bound, bound)


def init_params(key):
    ks = jax.random.split(key, 24)
    E, F, T = EMB, FFN, NUM_TAGS
    scale = 1.0 / (DH ** 0.5)           # standard 1/sqrt(head_dim) scaling

    wq = _uniform(ks[0], (E, E), E); bq = _uniform(ks[1], (E,), E)
    wk = _uniform(ks[2], (E, E), E); bk = _uniform(ks[3], (E,), E)
    wv = _uniform(ks[4], (E, E), E); bv = _uniform(ks[5], (E,), E)
    # Fuse Q/K/V into one (E, 3E) weight; fold the attention scale into Q.
    wqkv = jnp.concatenate([wq * scale, wk, wv], axis=1)
    bqkv = jnp.concatenate([bq * scale, bk, bv]).reshape(1, 3 * E)

    layer = dict(
        wqkv=wqkv, bqkv=bqkv,
        wo=_uniform(ks[6], (E, E), E),
        bo=_uniform(ks[7], (E,), E).reshape(1, E),
        g1=jnp.ones((1, E), jnp.float32), b1=jnp.zeros((1, E), jnp.float32),
        wf1=_uniform(ks[8], (E, F), E),
        bf1=_uniform(ks[9], (F,), E).reshape(1, F),
        wf2=_uniform(ks[10], (F, E), F),
        bf2=_uniform(ks[11], (E,), F).reshape(1, E),
        g2=jnp.ones((1, E), jnp.float32), b2=jnp.zeros((1, E), jnp.float32))

    # starts/ends stored as one merged (2T, E) weight so the heads kernel emits
    # the permuted (T, S) layout for BOTH heads with a single MXU pass.
    w_se = jnp.concatenate([_uniform(ks[19], (T, E), E),
                            _uniform(ks[21], (T, E), E)], axis=0)
    b_se = jnp.concatenate([_uniform(ks[20], (T,), E),
                            _uniform(ks[22], (T,), E)]).reshape(2 * T, 1)

    # TODO(synk): real model loads pretrained ALBERT weights; random stand-in here.
    return dict(
        layer=layer,
        word_emb=0.02 * jax.random.normal(ks[12], (VOCAB, E), jnp.float32),
        pos_emb=0.02 * jax.random.normal(ks[13], (SEQ, E), jnp.float32),
        type_emb=0.02 * jax.random.normal(ks[14], (TYPES, E), jnp.float32),
        w_pool=_uniform(ks[15], (E, E), E),
        b_pool=_uniform(ks[16], (E,), E).reshape(1, E),
        w_tags=_uniform(ks[17], (E, T), E),
        b_tags=_uniform(ks[18], (T,), E).reshape(1, T),
        w_se=w_se, b_se=b_se,
    )


if __name__ == "__main__":
    root = jax.random.PRNGKey(0)
    k_params, k_ids = jax.random.split(root)
    params = init_params(k_params)

    ids = jax.random.randint(k_ids, (BATCH, SEQ), 0, VOCAB, dtype=jnp.int32)
    pos = jnp.arange(SEQ)
    type_ids = jnp.tile((pos >= 5).astype(jnp.int32)[None, :], (BATCH, 1))
    att_ids = jnp.tile((pos < 7).astype(jnp.int32)[None, :], (BATCH, 1))
    softmax_mask = (att_ids.astype(jnp.float32) - 1.0) * 1e4

    fwd = jax.jit(functools.partial(tag_value_forward, params))
    pred_tags, pred_starts, pred_ends, emb = fwd(ids, type_ids, att_ids,
                                                 softmax_mask)
    jax.block_until_ready((pred_tags, pred_starts, pred_ends, emb))

    assert pred_tags.shape == (BATCH, NUM_TAGS), pred_tags.shape
    assert pred_starts.shape == (BATCH, NUM_TAGS, SEQ), pred_starts.shape
    assert pred_ends.shape == (BATCH, NUM_TAGS, SEQ), pred_ends.shape
    assert emb.shape == (BATCH, EMB), emb.shape
    for t in (pred_tags, pred_starts, pred_ends, emb):
        assert jnp.isfinite(t).all()
    print("KERNEL_OK")
</pallas_src>

<mosaic_0001>
module attributes {stable_mosaic.version = 11 : i64} {
  func.func @_heads_kernel(%arg0: i32, %arg1: memref<16x128xf32, #tpu.memory_space<vmem>>, %arg2: memref<2x16xf32, #tpu.memory_space<vmem>>, %arg3: memref<1x16xf32, #tpu.memory_space<vmem>>, %arg4: memref<128x128xf32, #tpu.memory_space<vmem>>, %arg5: memref<1x128xf32, #tpu.memory_space<vmem>>, %arg6: memref<128x20xf32, #tpu.memory_space<vmem>>, %arg7: memref<1x20xf32, #tpu.memory_space<vmem>>, %arg8: memref<40x128xf32, #tpu.memory_space<vmem>>, %arg9: memref<40x1xf32, #tpu.memory_space<vmem>>, %arg10: memref<40x16xf32, #tpu.memory_space<vmem>>, %arg11: memref<2x20xf32, #tpu.memory_space<vmem>>, %arg12: memref<2x128xf32, #tpu.memory_space<vmem>>) attributes {dimension_semantics = [#tpu.dimension_semantics<arbitrary>], iteration_bounds = array<i64: 1>, scalar_prefetch = 0 : i64, scratch_operands = 0 : i64, tpu.core_type = #tpu.core_type<tc>, window_params = [{pipeline_mode = #tpu.pipeline_mode<synchronous>, transform_indices = @transform_0, window_bounds = array<i64: 16, 128>}, {pipeline_mode = #tpu.pipeline_mode<synchronous>, transform_indices = @transform_1, window_bounds = array<i64: 2, 16>}, {pipeline_mode = #tpu.pipeline_mode<synchronous>, transform_indices = @transform_2, window_bounds = array<i64: 1, 16>}, {pipeline_mode = #tpu.pipeline_mode<synchronous>, transform_indices = @transform_3, window_bounds = array<i64: 128, 128>}, {pipeline_mode = #tpu.pipeline_mode<synchronous>, transform_indices = @transform_4, window_bounds = array<i64: 1, 128>}, {pipeline_mode = #tpu.pipeline_mode<synchronous>, transform_indices = @transform_5, window_bounds = array<i64: 128, 20>}, {pipeline_mode = #tpu.pipeline_mode<synchronous>, transform_indices = @transform_6, window_bounds = array<i64: 1, 20>}, {pipeline_mode = #tpu.pipeline_mode<synchronous>, transform_indices = @transform_7, window_bounds = array<i64: 40, 128>}, {pipeline_mode = #tpu.pipeline_mode<synchronous>, transform_indices = @transform_8, window_bounds = array<i64: 40, 1>}, {pipeline_mode = #tpu.pipeline_mode<synchronous>, transform_indices = @transform_9, window_bounds = array<i64: 40, 16>}, {pipeline_mode = #tpu.pipeline_mode<synchronous>, transform_indices = @transform_10, window_bounds = array<i64: 2, 20>}, {pipeline_mode = #tpu.pipeline_mode<synchronous>, transform_indices = @transform_11, window_bounds = array<i64: 2, 128>}]} {
    %c0 = arith.constant 0 : index
    %c0_0 = arith.constant 0 : index
    %0 = vector.load %arg1[%c0, %c0_0] : memref<16x128xf32, #tpu.memory_space<vmem>>, vector<16x128xf32>
    %1 = vector.shape_cast %0 : vector<16x128xf32> to vector<2x8x128xf32>
    %2 = vector.extract_strided_slice %1 {offsets = [0, 0, 0], sizes = [2, 1, 128], strides = [1, 1, 1]} : vector<2x8x128xf32> to vector<2x1x128xf32>
    %3 = vector.shape_cast %2 : vector<2x1x128xf32> to vector<2x128xf32>
    %c0_1 = arith.constant 0 : index
    %c0_2 = arith.constant 0 : index
    %4 = vector.load %arg4[%c0_1, %c0_2] : memref<128x128xf32, #tpu.memory_space<vmem>>, vector<128x128xf32>
    %cst = arith.constant dense<0.000000e+00> : vector<2x128xf32>
    %5 = tpu.matmul %3, %4, %cst {dimension_numbers = #tpu.dot_dimension_numbers<[1], [0], [0], [1], [0, 0, 1, 1], [], []>} : vector<2x128xf32>, vector<128x128xf32>, vector<2x128xf32> -> vector<2x128xf32>
    %c0_3 = arith.constant 0 : index
    %c0_4 = arith.constant 0 : index
    %6 = vector.load %arg5[%c0_3, %c0_4] : memref<1x128xf32, #tpu.memory_space<vmem>>, vector<1x128xf32>
    %7 = vector.broadcast %6 : vector<1x128xf32> to vector<2x128xf32>
    %8 = arith.addf %5, %7 : vector<2x128xf32>
    %9 = math.tanh %8 : vector<2x128xf32>
    %c0_5 = arith.constant 0 : index
    %c0_6 = arith.constant 0 : index
    %10 = vector.load %arg6[%c0_5, %c0_6] : memref<128x20xf32, #tpu.memory_space<vmem>>, vector<128x20xf32>
    %cst_7 = arith.constant dense<0.000000e+00> : vector<2x20xf32>
    %11 = tpu.matmul %9, %10, %cst_7 {dimension_numbers = #tpu.dot_dimension_numbers<[1], [0], [0], [1], [0, 0, 1, 1], [], []>} : vector<2x128xf32>, vector<128x20xf32>, vector<2x20xf32> -> vector<2x20xf32>
    %c0_8 = arith.constant 0 : index
    %c0_9 = arith.constant 0 : index
    %12 = vector.load %arg7[%c0_8, %c0_9] : memref<1x20xf32, #tpu.memory_space<vmem>>, vector<1x20xf32>
    %13 = vector.broadcast %12 : vector<1x20xf32> to vector<2x20xf32>
    %14 = arith.addf %11, %13 : vector<2x20xf32>
    %c0_10 = arith.constant 0 : index
    %c0_11 = arith.constant 0 : index
    %15 = vector.load %arg11[%c0_10, %c0_11] : memref<2x20xf32, #tpu.memory_space<vmem>>, vector<2x20xf32>
    tpu.vector_store %arg11[%c0_10, %c0_11], %14 {strides = array<i32>} : memref<2x20xf32, #tpu.memory_space<vmem>>, vector<2x20xf32>,
    %c0_12 = arith.constant 0 : index
    %c0_13 = arith.constant 0 : index
    %16 = vector.load %arg8[%c0_12, %c0_13] : memref<40x128xf32, #tpu.memory_space<vmem>>, vector<40x128xf32>
    %cst_14 = arith.constant dense<0.000000e+00> : vector<40x16xf32>
    %17 = tpu.matmul %16, %0, %cst_14 {dimension_numbers = #tpu.dot_dimension_numbers<[1], [1], [0], [0], [0, 0, 1, 0], [], []>} : vector<40x128xf32>, vector<16x128xf32>, vector<40x16xf32> -> vector<40x16xf32>
    %c0_15 = arith.constant 0 : index
    %c0_16 = arith.constant 0 : index
    %18 = vector.load %arg9[%c0_15, %c0_16] : memref<40x1xf32, #tpu.memory_space<vmem>>, vector<40x1xf32>
    %19 = vector.broadcast %18 : vector<40x1xf32> to vector<40x16xf32>
    %20 = arith.addf %17, %19 : vector<40x16xf32>
    %c0_17 = arith.constant 0 : index
    %c0_18 = arith.constant 0 : index
    %21 = vector.load %arg3[%c0_17, %c0_18] : memref<1x16xf32, #tpu.memory_space<vmem>>, vector<1x16xf32>
    %22 = vector.broadcast %21 : vector<1x16xf32> to vector<40x16xf32>
    %23 = arith.addf %20, %22 : vector<40x16xf32>
    %c0_19 = arith.constant 0 : index
    %c0_20 = arith.constant 0 : index
    %24 = vector.load %arg10[%c0_19, %c0_20] : memref<40x16xf32, #tpu.memory_space<vmem>>, vector<40x16xf32>
    tpu.vector_store %arg10[%c0_19, %c0_20], %23 {strides = array<i32>} : memref<40x16xf32, #tpu.memory_space<vmem>>, vector<40x16xf32>,
    %c0_21 = arith.constant 0 : index
    %c0_22 = arith.constant 0 : index
    %25 = vector.load %arg2[%c0_21, %c0_22] : memref<2x16xf32, #tpu.memory_space<vmem>>, vector<2x16xf32>
    %cst_23 = arith.constant dense<0.000000e+00> : vector<2x128xf32>
    %26 = tpu.matmul %25, %0, %cst_23 {dimension_numbers = #tpu.dot_dimension_numbers<[1], [0], [0], [1], [0, 0, 1, 1], [], []>} : vector<2x16xf32>, vector<16x128xf32>, vector<2x128xf32> -> vector<2x128xf32>
    %cst_24 = arith.constant dense<0.000000e+00> : vector<2xf32>
    %27 = vector.multi_reduction <add>, %25, %cst_24 [1] : vector<2x16xf32> to vector<2xf32>
    %28 = vector.shape_cast %27 : vector<2xf32> to vector<2x1xf32>
    %29 = vector.broadcast %28 : vector<2x1xf32> to vector<2x128xf32>
    %30 = arith.divf %26, %29 : vector<2x128xf32>
    %c0_25 = arith.constant 0 : index
    %c0_26 = arith.constant 0 : index
    %31 = vector.load %arg12[%c0_25, %c0_26] : memref<2x128xf32, #tpu.memory_space<vmem>>, vector<2x128xf32>
    tpu.vector_store %arg12[%c0_25, %c0_26], %30 {strides = array<i32>} : memref<2x128xf32, #tpu.memory_space<vmem>>, vector<2x128xf32>,
    return
  }
  func.func @transform_0(%arg0: i32) -> (i32, i32) {
    %c0_i32 = arith.constant 0 : i32
    %c0_i32_0 = arith.constant 0 : i32
    %c0_i32_1 = arith.constant 0 : i32
    return %c0_i32, %c0_i32_0 : i32, i32
  }
  func.func @transform_1(%arg0: i32) -> (i32, i32) {
    %c0_i32 = arith.constant 0 : i32
    %c0_i32_0 = arith.constant 0 : i32
    %c0_i32_1 = arith.constant 0 : i32
    return %c0_i32, %c0_i32_0 : i32, i32
  }
  func.func @transform_2(%arg0: i32) -> (i32, i32) {
    %c0_i32 = arith.constant 0 : i32
    %c0_i32_0 = arith.constant 0 : i32
    %c0_i32_1 = arith.constant 0 : i32
    return %c0_i32, %c0_i32_0 : i32, i32
  }
  func.func @transform_3(%arg0: i32) -> (i32, i32) {
    %c0_i32 = arith.constant 0 : i32
    %c0_i32_0 = arith.constant 0 : i32
    %c0_i32_1 = arith.constant 0 : i32
    return %c0_i32, %c0_i32_0 : i32, i32
  }
  func.func @transform_4(%arg0: i32) -> (i32, i32) {
    %c0_i32 = arith.constant 0 : i32
    %c0_i32_0 = arith.constant 0 : i32
    %c0_i32_1 = arith.constant 0 : i32
    return %c0_i32, %c0_i32_0 : i32, i32
  }
  func.func @transform_5(%arg0: i32) -> (i32, i32) {
    %c0_i32 = arith.constant 0 : i32
    %c0_i32_0 = arith.constant 0 : i32
    %c0_i32_1 = arith.constant 0 : i32
    return %c0_i32, %c0_i32_0 : i32, i32
  }
  func.func @transform_6(%arg0: i32) -> (i32, i32) {
    %c0_i32 = arith.constant 0 : i32
    %c0_i32_0 = arith.constant 0 : i32
    %c0_i32_1 = arith.constant 0 : i32
    return %c0_i32, %c0_i32_0 : i32, i32
  }
  func.func @transform_7(%arg0: i32) -> (i32, i32) {
    %c0_i32 = arith.constant 0 : i32
    %c0_i32_0 = arith.constant 0 : i32
    %c0_i32_1 = arith.constant 0 : i32
    return %c0_i32, %c0_i32_0 : i32, i32
  }
  func.func @transform_8(%arg0: i32) -> (i32, i32) {
    %c0_i32 = arith.constant 0 : i32
    %c0_i32_0 = arith.constant 0 : i32
    %c0_i32_1 = arith.constant 0 : i32
    return %c0_i32, %c0_i32_0 : i32, i32
  }
  func.func @transform_9(%arg0: i32) -> (i32, i32) {
    %c0_i32 = arith.constant 0 : i32
    %c0_i32_0 = arith.constant 0 : i32
    %c0_i32_1 = arith.constant 0 : i32
    return %c0_i32, %c0_i32_0 : i32, i32
  }
  func.func @transform_10(%arg0: i32) -> (i32, i32) {
    %c0_i32 = arith.constant 0 : i32
    %c0_i32_0 = arith.constant 0 : i32
    %c0_i32_1 = arith.constant 0 : i32
    return %c0_i32, %c0_i32_0 : i32, i32
  }
  func.func @transform_11(%arg0: i32) -> (i32, i32) {
    %c0_i32 = arith.constant 0 : i32
    %c0_i32_0 = arith.constant 0 : i32
    %c0_i32_1 = arith.constant 0 : i32
    return %c0_i32, %c0_i32_0 : i32, i32
  }
}

module attributes {stable_mosaic.version = 11 : i64} {
  func.func @_albert_encoder_kernel(%arg0: i32, %arg1: i32, %arg2: memref<8x128xf32, #tpu.memory_space<vmem>>, %arg3: memref<1x1x8xf32, #tpu.memory_space<vmem>>, %arg4: memref<128x384xf32, #tpu.memory_space<vmem>>, %arg5: memref<1x384xf32, #tpu.memory_space<vmem>>, %arg6: memref<128x128xf32, #tpu.memory_space<vmem>>, %arg7: memref<1x128xf32, #tpu.memory_space<vmem>>, %arg8: memref<1x128xf32, #tpu.memory_space<vmem>>, %arg9: memref<1x128xf32, #tpu.memory_space<vmem>>, %arg10: memref<128x256xf32, #tpu.memory_space<vmem>>, %arg11: memref<1x256xf32, #tpu.memory_space<vmem>>, %arg12: memref<256x128xf32, #tpu.memory_space<vmem>>, %arg13: memref<1x128xf32, #tpu.memory_space<vmem>>, %arg14: memref<1x128xf32, #tpu.memory_space<vmem>>, %arg15: memref<1x128xf32, #tpu.memory_space<vmem>>, %arg16: memref<8x128xf32, #tpu.memory_space<vmem>>, %arg17: memref<8x128xf32, #tpu.memory_space<vmem>>) attributes {dimension_semantics = [#tpu.dimension_semantics<parallel>, #tpu.dimension_semantics<arbitrary>], iteration_bounds = array<i64: 2, 2>, scalar_prefetch = 0 : i64, scratch_operands = 1 : i64, tpu.core_type = #tpu.core_type<tc>, window_params = [{transform_indices = @transform_0, window_bounds = array<i64: 8, 128>}, {transform_indices = @transform_1, window_bounds = array<i64: 1, 1, 8>}, {pipeline_mode = #tpu.pipeline_mode<synchronous>, transform_indices = @transform_2, window_bounds = array<i64: 128, 384>}, {pipeline_mode = #tpu.pipeline_mode<synchronous>, transform_indices = @transform_3, window_bounds = array<i64: 1, 384>}, {pipeline_mode = #tpu.pipeline_mode<synchronous>, transform_indices = @transform_4, window_bounds = array<i64: 128, 128>}, {pipeline_mode = #tpu.pipeline_mode<synchronous>, transform_indices = @transform_5, window_bounds = array<i64: 1, 128>}, {pipeline_mode = #tpu.pipeline_mode<synchronous>, transform_indices = @transform_6, window_bounds = array<i64: 1, 128>}, {pipeline_mode = #tpu.pipeline_mode<synchronous>, transform_indices = @transform_7, window_bounds = array<i64: 1, 128>}, {pipeline_mode = #tpu.pipeline_mode<synchronous>, transform_indices = @transform_8, window_bounds = array<i64: 128, 256>}, {pipeline_mode = #tpu.pipeline_mode<synchronous>, transform_indices = @transform_9, window_bounds = array<i64: 1, 256>}, {pipeline_mode = #tpu.pipeline_mode<synchronous>, transform_indices = @transform_10, window_bounds = array<i64: 256, 128>}, {pipeline_mode = #tpu.pipeline_mode<synchronous>, transform_indices = @transform_11, window_bounds = array<i64: 1, 128>}, {pipeline_mode = #tpu.pipeline_mode<synchronous>, transform_indices = @transform_12, window_bounds = array<i64: 1, 128>}, {pipeline_mode = #tpu.pipeline_mode<synchronous>, transform_indices = @transform_13, window_bounds = array<i64: 1, 128>}, {transform_indices = @transform_14, window_bounds = array<i64: 8, 128>}]} {
    %c0_i32 = arith.constant 0 : i32
    %0 = arith.cmpi eq, %arg1, %c0_i32 : i32
    %1 = arith.extui %0 : i1 to i32
    %c0_i32_0 = arith.constant 0 : i32
    %2 = arith.cmpi ne, %1, %c0_i32_0 : i32
    scf.if %2 {
      %c0_65 = arith.constant 0 : index
      %c0_66 = arith.constant 0 : index
      %162 = vector.load %arg2[%c0_65, %c0_66] : memref<8x128xf32, #tpu.memory_space<vmem>>, vector<8x128xf32>
      %c0_67 = arith.constant 0 : index
      %c0_68 = arith.constant 0 : index
      %163 = vector.load %arg17[%c0_67, %c0_68] : memref<8x128xf32, #tpu.memory_space<vmem>>, vector<8x128xf32>
      tpu.vector_store %arg17[%c0_67, %c0_68], %162 {strides = array<i32>} : memref<8x128xf32, #tpu.memory_space<vmem>>, vector<8x128xf32>,
    } else {
    }
    %c0 = arith.constant 0 : index
    %c0_1 = arith.constant 0 : index
    %3 = vector.load %arg17[%c0, %c0_1] : memref<8x128xf32, #tpu.memory_space<vmem>>, vector<8x128xf32>
    %c0_2 = arith.constant 0 : index
    %c0_3 = arith.constant 0 : index
    %c0_4 = arith.constant 0 : index
    %4 = vector.load %arg3[%c0_2, %c0_3, %c0_4] : memref<1x1x8xf32, #tpu.memory_space<vmem>>, vector<1x1x8xf32>
    %5 = vector.shape_cast %4 : vector<1x1x8xf32> to vector<1x8xf32>
    %c0_5 = arith.constant 0 : index
    %c0_6 = arith.constant 0 : index
    %6 = vector.load %arg4[%c0_5, %c0_6] : memref<128x384xf32, #tpu.memory_space<vmem>>, vector<128x384xf32>
    %cst = arith.constant dense<0.000000e+00> : vector<8x384xf32>
    %7 = tpu.matmul %3, %6, %cst {dimension_numbers = #tpu.dot_dimension_numbers<[1], [0], [0], [1], [0, 0, 1, 1], [], []>} : vector<8x128xf32>, vector<128x384xf32>, vector<8x384xf32> -> vector<8x384xf32>
    %c0_7 = arith.constant 0 : index
    %c0_8 = arith.constant 0 : index
    %8 = vector.load %arg5[%c0_7, %c0_8] : memref<1x384xf32, #tpu.memory_space<vmem>>, vector<1x384xf32>
    %9 = vector.broadcast %8 : vector<1x384xf32> to vector<8x384xf32>
    %10 = arith.addf %7, %9 : vector<8x384xf32>
    %11 = vector.extract_strided_slice %10 {offsets = [0, 0], sizes = [8, 32], strides = [1, 1]} : vector<8x384xf32> to vector<8x32xf32>
    %12 = vector.extract_strided_slice %10 {offsets = [0, 128], sizes = [8, 32], strides = [1, 1]} : vector<8x384xf32> to vector<8x32xf32>
    %13 = vector.extract_strided_slice %10 {offsets = [0, 256], sizes = [8, 32], strides = [1, 1]} : vector<8x384xf32> to vector<8x32xf32>
    %cst_9 = arith.constant dense<0.000000e+00> : vector<8x8xf32>
    %14 = tpu.matmul %11, %12, %cst_9 {dimension_numbers = #tpu.dot_dimension_numbers<[1], [1], [0], [0], [0, 0, 1, 0], [], []>} : vector<8x32xf32>, vector<8x32xf32>, vector<8x8xf32> -> vector<8x8xf32>
    %15 = vector.broadcast %5 : vector<1x8xf32> to vector<8x8xf32>
    %16 = arith.addf %14, %15 : vector<8x8xf32>
    %cst_10 = arith.constant dense<0xFF800000> : vector<8xf32>
    %17 = vector.multi_reduction <maximumf>, %16, %cst_10 [1] : vector<8x8xf32> to vector<8xf32>
    %18 = vector.shape_cast %17 : vector<8xf32> to vector<8x1xf32>
    %19 = vector.broadcast %18 : vector<8x1xf32> to vector<8x8xf32>
    %20 = arith.subf %16, %19 : vector<8x8xf32>
    %21 = math.exp %20 : vector<8x8xf32>
    %cst_11 = arith.constant dense<0.000000e+00> : vector<8xf32>
    %22 = vector.multi_reduction <add>, %21, %cst_11 [1] : vector<8x8xf32> to vector<8xf32>
    %23 = vector.shape_cast %22 : vector<8xf32> to vector<8x1xf32>
    %24 = tpu.reciprocal %23 {approx = true} : vector<8x1xf32> -> vector<8x1xf32>
    %25 = vector.broadcast %24 : vector<8x1xf32> to vector<8x8xf32>
    %26 = arith.mulf %21, %25 : vector<8x8xf32>
    %cst_12 = arith.constant dense<0.000000e+00> : vector<8x32xf32>
    %27 = tpu.matmul %26, %13, %cst_12 {dimension_numbers = #tpu.dot_dimension_numbers<[1], [0], [0], [1], [0, 0, 1, 1], [], []>} : vector<8x8xf32>, vector<8x32xf32>, vector<8x32xf32> -> vector<8x32xf32>
    %28 = vector.extract_strided_slice %10 {offsets = [0, 32], sizes = [8, 32], strides = [1, 1]} : vector<8x384xf32> to vector<8x32xf32>
    %29 = vector.extract_strided_slice %10 {offsets = [0, 160], sizes = [8, 32], strides = [1, 1]} : vector<8x384xf32> to vector<8x32xf32>
    %30 = vector.extract_strided_slice %10 {offsets = [0, 288], sizes = [8, 32], strides = [1, 1]} : vector<8x384xf32> to vector<8x32xf32>
    %cst_13 = arith.constant dense<0.000000e+00> : vector<8x8xf32>
    %31 = tpu.matmul %28, %29, %cst_13 {dimension_numbers = #tpu.dot_dimension_numbers<[1], [1], [0], [0], [0, 0, 1, 0], [], []>} : vector<8x32xf32>, vector<8x32xf32>, vector<8x8xf32> -> vector<8x8xf32>
    %32 = vector.broadcast %5 : vector<1x8xf32> to vector<8x8xf32>
    %33 = arith.addf %31, %32 : vector<8x8xf32>
    %cst_14 = arith.constant dense<0xFF800000> : vector<8xf32>
    %34 = vector.multi_reduction <maximumf>, %33, %cst_14 [1] : vector<8x8xf32> to vector<8xf32>
    %35 = vector.shape_cast %34 : vector<8xf32> to vector<8x1xf32>
    %36 = vector.broadcast %35 : vector<8x1xf32> to vector<8x8xf32>
    %37 = arith.subf %33, %36 : vector<8x8xf32>
    %38 = math.exp %37 : vector<8x8xf32>
    %cst_15 = arith.constant dense<0.000000e+00> : vector<8xf32>
    %39 = vector.multi_reduction <add>, %38, %cst_15 [1] : vector<8x8xf32> to vector<8xf32>
    %40 = vector.shape_cast %39 : vector<8xf32> to vector<8x1xf32>
    %41 = tpu.reciprocal %40 {approx = true} : vector<8x1xf32> -> vector<8x1xf32>
    %42 = vector.broadcast %41 : vector<8x1xf32> to vector<8x8xf32>
    %43 = arith.mulf %38, %42 : vector<8x8xf32>
    %cst_16 = arith.constant dense<0.000000e+00> : vector<8x32xf32>
    %44 = tpu.matmul %43, %30, %cst_16 {dimension_numbers = #tpu.dot_dimension_numbers<[1], [0], [0], [1], [0, 0, 1, 1], [], []>} : vector<8x8xf32>, vector<8x32xf32>, vector<8x32xf32> -> vector<8x32xf32>
    %45 = vector.extract_strided_slice %10 {offsets = [0, 64], sizes = [8, 32], strides = [1, 1]} : vector<8x384xf32> to vector<8x32xf32>
    %46 = vector.extract_strided_slice %10 {offsets = [0, 192], sizes = [8, 32], strides = [1, 1]} : vector<8x384xf32> to vector<8x32xf32>
    %47 = vector.extract_strided_slice %10 {offsets = [0, 320], sizes = [8, 32], strides = [1, 1]} : vector<8x384xf32> to vector<8x32xf32>
    %cst_17 = arith.constant dense<0.000000e+00> : vector<8x8xf32>
    %48 = tpu.matmul %45, %46, %cst_17 {dimension_numbers = #tpu.dot_dimension_numbers<[1], [1], [0], [0], [0, 0, 1, 0], [], []>} : vector<8x32xf32>, vector<8x32xf32>, vector<8x8xf32> -> vector<8x8xf32>
    %49 = vector.broadcast %5 : vector<1x8xf32> to vector<8x8xf32>
    %50 = arith.addf %48, %49 : vector<8x8xf32>
    %cst_18 = arith.constant dense<0xFF800000> : vector<8xf32>
    %51 = vector.multi_reduction <maximumf>, %50, %cst_18 [1] : vector<8x8xf32> to vector<8xf32>
    %52 = vector.shape_cast %51 : vector<8xf32> to vector<8x1xf32>
    %53 = vector.broadcast %52 : vector<8x1xf32> to vector<8x8xf32>
    %54 = arith.subf %50, %53 : vector<8x8xf32>
    %55 = math.exp %54 : vector<8x8xf32>
    %cst_19 = arith.constant dense<0.000000e+00> : vector<8xf32>
    %56 = vector.multi_reduction <add>, %55, %cst_19 [1] : vector<8x8xf32> to vector<8xf32>
    %57 = vector.shape_cast %56 : vector<8xf32> to vector<8x1xf32>
    %58 = tpu.reciprocal %57 {approx = true} : vector<8x1xf32> -> vector<8x1xf32>
    %59 = vector.broadcast %58 : vector<8x1xf32> to vector<8x8xf32>
    %60 = arith.mulf %55, %59 : vector<8x8xf32>
    %cst_20 = arith.constant dense<0.000000e+00> : vector<8x32xf32>
    %61 = tpu.matmul %60, %47, %cst_20 {dimension_numbers = #tpu.dot_dimension_numbers<[1], [0], [0], [1], [0, 0, 1, 1], [], []>} : vector<8x8xf32>, vector<8x32xf32>, vector<8x32xf32> -> vector<8x32xf32>
    %62 = vector.extract_strided_slice %10 {offsets = [0, 96], sizes = [8, 32], strides = [1, 1]} : vector<8x384xf32> to vector<8x32xf32>
    %63 = vector.extract_strided_slice %10 {offsets = [0, 224], sizes = [8, 32], strides = [1, 1]} : vector<8x384xf32> to vector<8x32xf32>
    %64 = vector.extract_strided_slice %10 {offsets = [0, 352], sizes = [8, 32], strides = [1, 1]} : vector<8x384xf32> to vector<8x32xf32>
    %cst_21 = arith.constant dense<0.000000e+00> : vector<8x8xf32>
    %65 = tpu.matmul %62, %63, %cst_21 {dimension_numbers = #tpu.dot_dimension_numbers<[1], [1], [0], [0], [0, 0, 1, 0], [], []>} : vector<8x32xf32>, vector<8x32xf32>, vector<8x8xf32> -> vector<8x8xf32>
    %66 = vector.broadcast %5 : vector<1x8xf32> to vector<8x8xf32>
    %67 = arith.addf %65, %66 : vector<8x8xf32>
    %cst_22 = arith.constant dense<0xFF800000> : vector<8xf32>
    %68 = vector.multi_reduction <maximumf>, %67, %cst_22 [1] : vector<8x8xf32> to vector<8xf32>
    %69 = vector.shape_cast %68 : vector<8xf32> to vector<8x1xf32>
    %70 = vector.broadcast %69 : vector<8x1xf32> to vector<8x8xf32>
    %71 = arith.subf %67, %70 : vector<8x8xf32>
    %72 = math.exp %71 : vector<8x8xf32>
    %cst_23 = arith.constant dense<0.000000e+00> : vector<8xf32>
    %73 = vector.multi_reduction <add>, %72, %cst_23 [1] : vector<8x8xf32> to vector<8xf32>
    %74 = vector.shape_cast %73 : vector<8xf32> to vector<8x1xf32>
    %75 = tpu.reciprocal %74 {approx = true} : vector<8x1xf32> -> vector<8x1xf32>
    %76 = vector.broadcast %75 : vector<8x1xf32> to vector<8x8xf32>
    %77 = arith.mulf %72, %76 : vector<8x8xf32>
    %cst_24 = arith.constant dense<0.000000e+00> : vector<8x32xf32>
    %78 = tpu.matmul %77, %64, %cst_24 {dimension_numbers = #tpu.dot_dimension_numbers<[1], [0], [0], [1], [0, 0, 1, 1], [], []>} : vector<8x8xf32>, vector<8x32xf32>, vector<8x32xf32> -> vector<8x32xf32>
    %79 = tpu.concatenate %27, %44, %61, %78 in 1 : vector<8x32xf32>, vector<8x32xf32>, vector<8x32xf32>, vector<8x32xf32> -> vector<8x128xf32>
    %c0_25 = arith.constant 0 : index
    %c0_26 = arith.constant 0 : index
    %80 = vector.load %arg6[%c0_25, %c0_26] : memref<128x128xf32, #tpu.memory_space<vmem>>, vector<128x128xf32>
    %cst_27 = arith.constant dense<0.000000e+00> : vector<8x128xf32>
    %81 = tpu.matmul %79, %80, %cst_27 {dimension_numbers = #tpu.dot_dimension_numbers<[1], [0], [0], [1], [0, 0, 1, 1], [], []>} : vector<8x128xf32>, vector<128x128xf32>, vector<8x128xf32> -> vector<8x128xf32>
    %c0_28 = arith.constant 0 : index
    %c0_29 = arith.constant 0 : index
    %82 = vector.load %arg7[%c0_28, %c0_29] : memref<1x128xf32, #tpu.memory_space<vmem>>, vector<1x128xf32>
    %83 = vector.broadcast %82 : vector<1x128xf32> to vector<8x128xf32>
    %84 = arith.addf %81, %83 : vector<8x128xf32>
    %85 = arith.addf %3, %84 : vector<8x128xf32>
    %c0_30 = arith.constant 0 : index
    %c0_31 = arith.constant 0 : index
    %86 = vector.load %arg8[%c0_30, %c0_31] : memref<1x128xf32, #tpu.memory_space<vmem>>, vector<1x128xf32>
    %c0_32 = arith.constant 0 : index
    %c0_33 = arith.constant 0 : index
    %87 = vector.load %arg9[%c0_32, %c0_33] : memref<1x128xf32, #tpu.memory_space<vmem>>, vector<1x128xf32>
    %cst_34 = arith.constant dense<0.000000e+00> : vector<8xf32>
    %88 = vector.multi_reduction <add>, %85, %cst_34 [1] : vector<8x128xf32> to vector<8xf32>
    %89 = vector.shape_cast %88 : vector<8xf32> to vector<8x1xf32>
    %cst_35 = arith.constant 1.280000e+02 : f32
    %90 = vector.broadcast %cst_35 : f32 to vector<8x1xf32>
    %91 = arith.divf %89, %90 : vector<8x1xf32>
    %92 = vector.broadcast %91 : vector<8x1xf32> to vector<8x128xf32>
    %93 = arith.subf %85, %92 : vector<8x128xf32>
    %94 = arith.mulf %93, %93 : vector<8x128xf32>
    %cst_36 = arith.constant dense<0.000000e+00> : vector<8xf32>
    %95 = vector.multi_reduction <add>, %94, %cst_36 [1] : vector<8x128xf32> to vector<8xf32>
    %96 = vector.shape_cast %95 : vector<8xf32> to vector<8x1xf32>
    %cst_37 = arith.constant 1.280000e+02 : f32
    %97 = vector.broadcast %cst_37 : f32 to vector<8x1xf32>
    %98 = arith.divf %96, %97 : vector<8x1xf32>
    %99 = vector.broadcast %91 : vector<8x1xf32> to vector<8x128xf32>
    %100 = arith.subf %85, %99 : vector<8x128xf32>
    %cst_38 = arith.constant 9.99999996E-13 : f32
    %101 = vector.broadcast %cst_38 : f32 to vector<8x1xf32>
    %102 = arith.addf %98, %101 : vector<8x1xf32>
    %103 = math.rsqrt %102 : vector<8x1xf32>
    %104 = vector.broadcast %103 : vector<8x1xf32> to vector<8x128xf32>
    %105 = arith.mulf %100, %104 : vector<8x128xf32>
    %106 = vector.broadcast %86 : vector<1x128xf32> to vector<8x128xf32>
    %107 = arith.mulf %105, %106 : vector<8x128xf32>
    %108 = vector.broadcast %87 : vector<1x128xf32> to vector<8x128xf32>
    %109 = arith.addf %107, %108 : vector<8x128xf32>
    %c0_39 = arith.constant 0 : index
    %c0_40 = arith.constant 0 : index
    %110 = vector.load %arg10[%c0_39, %c0_40] : memref<128x256xf32, #tpu.memory_space<vmem>>, vector<128x256xf32>
    %cst_41 = arith.constant dense<0.000000e+00> : vector<8x256xf32>
    %111 = tpu.matmul %109, %110, %cst_41 {dimension_numbers = #tpu.dot_dimension_numbers<[1], [0], [0], [1], [0, 0, 1, 1], [], []>} : vector<8x128xf32>, vector<128x256xf32>, vector<8x256xf32> -> vector<8x256xf32>
    %c0_42 = arith.constant 0 : index
    %c0_43 = arith.constant 0 : index
    %112 = vector.load %arg11[%c0_42, %c0_43] : memref<1x256xf32, #tpu.memory_space<vmem>>, vector<1x256xf32>
    %113 = vector.broadcast %112 : vector<1x256xf32> to vector<8x256xf32>
    %114 = arith.addf %111, %113 : vector<8x256xf32>
    %115 = arith.mulf %114, %114 : vector<8x256xf32>
    %116 = arith.mulf %114, %115 : vector<8x256xf32>
    %cst_44 = arith.constant 4.471500e-02 : f32
    %117 = vector.broadcast %cst_44 : f32 to vector<8x256xf32>
    %118 = arith.mulf %117, %116 : vector<8x256xf32>
    %119 = arith.addf %114, %118 : vector<8x256xf32>
    %cst_45 = arith.constant 0.797884583 : f32
    %120 = vector.broadcast %cst_45 : f32 to vector<8x256xf32>
    %121 = arith.mulf %120, %119 : vector<8x256xf32>
    %122 = math.tanh %121 : vector<8x256xf32>
    %cst_46 = arith.constant 1.000000e+00 : f32
    %123 = vector.broadcast %cst_46 : f32 to vector<8x256xf32>
    %124 = arith.addf %123, %122 : vector<8x256xf32>
    %cst_47 = arith.constant 5.000000e-01 : f32
    %125 = vector.broadcast %cst_47 : f32 to vector<8x256xf32>
    %126 = arith.mulf %125, %124 : vector<8x256xf32>
    %127 = arith.mulf %114, %126 : vector<8x256xf32>
    %c0_48 = arith.constant 0 : index
    %c0_49 = arith.constant 0 : index
    %128 = vector.load %arg12[%c0_48, %c0_49] : memref<256x128xf32, #tpu.memory_space<vmem>>, vector<256x128xf32>
    %cst_50 = arith.constant dense<0.000000e+00> : vector<8x128xf32>
    %129 = tpu.matmul %127, %128, %cst_50 {dimension_numbers = #tpu.dot_dimension_numbers<[1], [0], [0], [1], [0, 0, 1, 1], [], []>} : vector<8x256xf32>, vector<256x128xf32>, vector<8x128xf32> -> vector<8x128xf32>
    %c0_51 = arith.constant 0 : index
    %c0_52 = arith.constant 0 : index
    %130 = vector.load %arg13[%c0_51, %c0_52] : memref<1x128xf32, #tpu.memory_space<vmem>>, vector<1x128xf32>
    %131 = vector.broadcast %130 : vector<1x128xf32> to vector<8x128xf32>
    %132 = arith.addf %129, %131 : vector<8x128xf32>
    %133 = arith.addf %109, %132 : vector<8x128xf32>
    %c0_53 = arith.constant 0 : index
    %c0_54 = arith.constant 0 : index
    %134 = vector.load %arg14[%c0_53, %c0_54] : memref<1x128xf32, #tpu.memory_space<vmem>>, vector<1x128xf32>
    %c0_55 = arith.constant 0 : index
    %c0_56 = arith.constant 0 : index
    %135 = vector.load %arg15[%c0_55, %c0_56] : memref<1x128xf32, #tpu.memory_space<vmem>>, vector<1x128xf32>
    %cst_57 = arith.constant dense<0.000000e+00> : vector<8xf32>
    %136 = vector.multi_reduction <add>, %133, %cst_57 [1] : vector<8x128xf32> to vector<8xf32>
    %137 = vector.shape_cast %136 : vector<8xf32> to vector<8x1xf32>
    %cst_58 = arith.constant 1.280000e+02 : f32
    %138 = vector.broadcast %cst_58 : f32 to vector<8x1xf32>
    %139 = arith.divf %137, %138 : vector<8x1xf32>
    %140 = vector.broadcast %139 : vector<8x1xf32> to vector<8x128xf32>
    %141 = arith.subf %133, %140 : vector<8x128xf32>
    %142 = arith.mulf %141, %141 : vector<8x128xf32>
    %cst_59 = arith.constant dense<0.000000e+00> : vector<8xf32>
    %143 = vector.multi_reduction <add>, %142, %cst_59 [1] : vector<8x128xf32> to vector<8xf32>
    %144 = vector.shape_cast %143 : vector<8xf32> to vector<8x1xf32>
    %cst_60 = arith.constant 1.280000e+02 : f32
    %145 = vector.broadcast %cst_60 : f32 to vector<8x1xf32>
    %146 = arith.divf %144, %145 : vector<8x1xf32>
    %147 = vector.broadcast %139 : vector<8x1xf32> to vector<8x128xf32>
    %148 = arith.subf %133, %147 : vector<8x128xf32>
    %cst_61 = arith.constant 9.99999996E-13 : f32
    %149 = vector.broadcast %cst_61 : f32 to vector<8x1xf32>
    %150 = arith.addf %146, %149 : vector<8x1xf32>
    %151 = math.rsqrt %150 : vector<8x1xf32>
    %152 = vector.broadcast %151 : vector<8x1xf32> to vector<8x128xf32>
    %153 = arith.mulf %148, %152 : vector<8x128xf32>
    %154 = vector.broadcast %134 : vector<1x128xf32> to vector<8x128xf32>
    %155 = arith.mulf %153, %154 : vector<8x128xf32>
    %156 = vector.broadcast %135 : vector<1x128xf32> to vector<8x128xf32>
    %157 = arith.addf %155, %156 : vector<8x128xf32>
    %c0_62 = arith.constant 0 : index
    %c0_63 = arith.constant 0 : index
    %158 = vector.load %arg17[%c0_62, %c0_63] : memref<8x128xf32, #tpu.memory_space<vmem>>, vector<8x128xf32>
    tpu.vector_store %arg17[%c0_62, %c0_63], %157 {strides = array<i32>} : memref<8x128xf32, #tpu.memory_space<vmem>>, vector<8x128xf32>,
    %c1_i32 = arith.constant 1 : i32
    %159 = arith.cmpi eq, %arg1, %c1_i32 : i32
    %160 = arith.extui %159 : i1 to i32
    %c0_i32_64 = arith.constant 0 : i32
    %161 = arith.cmpi ne, %160, %c0_i32_64 : i32
    scf.if %161 {
      %c0_65 = arith.constant 0 : index
      %c0_66 = arith.constant 0 : index
      %162 = vector.load %arg16[%c0_65, %c0_66] : memref<8x128xf32, #tpu.memory_space<vmem>>, vector<8x128xf32>
      tpu.vector_store %arg16[%c0_65, %c0_66], %157 {strides = array<i32>} : memref<8x128xf32, #tpu.memory_space<vmem>>, vector<8x128xf32>,
    } else {
    }
    return
  }
  func.func @transform_0(%arg0: i32, %arg1: i32) -> (i32, i32) {
    %c0_i32 = arith.constant 0 : i32
    %c0_i32_0 = arith.constant 0 : i32
    return %arg0, %c0_i32 : i32, i32
  }
  func.func @transform_1(%arg0: i32, %arg1: i32) -> (i32, i32, i32) {
    %c0_i32 = arith.constant 0 : i32
    %c0_i32_0 = arith.constant 0 : i32
    %c0_i32_1 = arith.constant 0 : i32
    return %arg0, %c0_i32, %c0_i32_0 : i32, i32, i32
  }
  func.func @transform_2(%arg0: i32, %arg1: i32) -> (i32, i32) {
    %c0_i32 = arith.constant 0 : i32
    %c0_i32_0 = arith.constant 0 : i32
    %c0_i32_1 = arith.constant 0 : i32
    return %c0_i32, %c0_i32_0 : i32, i32
  }
  func.func @transform_3(%arg0: i32, %arg1: i32) -> (i32, i32) {
    %c0_i32 = arith.constant 0 : i32
    %c0_i32_0 = arith.constant 0 : i32
    %c0_i32_1 = arith.constant 0 : i32
    return %c0_i32, %c0_i32_0 : i32, i32
  }
  func.func @transform_4(%arg0: i32, %arg1: i32) -> (i32, i32) {
    %c0_i32 = arith.constant 0 : i32
    %c0_i32_0 = arith.constant 0 : i32
    %c0_i32_1 = arith.constant 0 : i32
    return %c0_i32, %c0_i32_0 : i32, i32
  }
  func.func @transform_5(%arg0: i32, %arg1: i32) -> (i32, i32) {
    %c0_i32 = arith.constant 0 : i32
    %c0_i32_0 = arith.constant 0 : i32
    %c0_i32_1 = arith.constant 0 : i32
    return %c0_i32, %c0_i32_0 : i32, i32
  }
  func.func @transform_6(%arg0: i32, %arg1: i32) -> (i32, i32) {
    %c0_i32 = arith.constant 0 : i32
    %c0_i32_0 = arith.constant 0 : i32
    %c0_i32_1 = arith.constant 0 : i32
    return %c0_i32, %c0_i32_0 : i32, i32
  }
  func.func @transform_7(%arg0: i32, %arg1: i32) -> (i32, i32) {
    %c0_i32 = arith.constant 0 : i32
    %c0_i32_0 = arith.constant 0 : i32
    %c0_i32_1 = arith.constant 0 : i32
    return %c0_i32, %c0_i32_0 : i32, i32
  }
  func.func @transform_8(%arg0: i32, %arg1: i32) -> (i32, i32) {
    %c0_i32 = arith.constant 0 : i32
    %c0_i32_0 = arith.constant 0 : i32
    %c0_i32_1 = arith.constant 0 : i32
    return %c0_i32, %c0_i32_0 : i32, i32
  }
  func.func @transform_9(%arg0: i32, %arg1: i32) -> (i32, i32) {
    %c0_i32 = arith.constant 0 : i32
    %c0_i32_0 = arith.constant 0 : i32
    %c0_i32_1 = arith.constant 0 : i32
    return %c0_i32, %c0_i32_0 : i32, i32
  }
  func.func @transform_10(%arg0: i32, %arg1: i32) -> (i32, i32) {
    %c0_i32 = arith.constant 0 : i32
    %c0_i32_0 = arith.constant 0 : i32
    %c0_i32_1 = arith.constant 0 : i32
    return %c0_i32, %c0_i32_0 : i32, i32
  }
  func.func @transform_11(%arg0: i32, %arg1: i32) -> (i32, i32) {
    %c0_i32 = arith.constant 0 : i32
    %c0_i32_0 = arith.constant 0 : i32
    %c0_i32_1 = arith.constant 0 : i32
    return %c0_i32, %c0_i32_0 : i32, i32
  }
  func.func @transform_12(%arg0: i32, %arg1: i32) -> (i32, i32) {
    %c0_i32 = arith.constant 0 : i32
    %c0_i32_0 = arith.constant 0 : i32
    %c0_i32_1 = arith.constant 0 : i32
    return %c0_i32, %c0_i32_0 : i32, i32
  }
  func.func @transform_13(%arg0: i32, %arg1: i32) -> (i32, i32) {
    %c0_i32 = arith.constant 0 : i32
    %c0_i32_0 = arith.constant 0 : i32
    %c0_i32_1 = arith.constant 0 : i32
    return %c0_i32, %c0_i32_0 : i32, i32
  }
  func.func @transform_14(%arg0: i32, %arg1: i32) -> (i32, i32) {
    %c0_i32 = arith.constant 0 : i32
    %c0_i32_0 = arith.constant 0 : i32
    return %arg0, %c0_i32 : i32, i32
  }
}

</mosaic_0001>

<llo_original>
// kernel: tag_value_forward.3
$region0: #{tag_value_forward.3}
  #allocation0 [shape = 'u32[]', space=smem, size = 0x4, offset = 0x4, fixed_abs, tag = 'smem constant byte address 0x4 - core index']
  #allocation1 [shape = 'u32[144,128]{1,0:T(1,128)}', space=vmem, size = 0x12000, scoped, tag = 'internal scratch']
  %s0 = inlined_call_operand.vmem [shape: f32[16,128], index: 0, kind: input, shape index: {}]
  %s1 = inlined_call_operand.vmem [shape: f32[2,16], index: 1, kind: input, shape index: {}]
  %s2 = inlined_call_operand.vmem [shape: f32[1,16], index: 2, kind: input, shape index: {}]
  %s3 = inlined_call_operand.vmem [shape: f32[128,128], index: 3, kind: input, shape index: {}]
  %s4 = inlined_call_operand.vmem [shape: f32[1,128], index: 4, kind: input, shape index: {}]
  %s5 = inlined_call_operand.vmem [shape: f32[128,20], index: 5, kind: input, shape index: {}]
  %s6 = inlined_call_operand.vmem [shape: f32[1,20], index: 6, kind: input, shape index: {}]
  %s7 = inlined_call_operand.vmem [shape: f32[40,128], index: 7, kind: input, shape index: {}]
  %s8 = inlined_call_operand.vmem [shape: f32[40,1], index: 8, kind: input, shape index: {}]
  %s9 = inlined_call_operand.vmem [shape: f32[40,16], index: 9, kind: output, shape index: {0}]
  %s10 = inlined_call_operand.hbm [shape: f32[2,20], index: 10, kind: output, shape index: {1}]
  %s11 = inlined_call_operand.hbm [shape: f32[2,128], index: 11, kind: output, shape index: {2}]
  %12 = xla_tuple %s9, %s10, %s11
  %s13 = sld [smem:[#allocation0]]
  $region62: #{tag_value_forward.3} parent=0
    _
  %s15 = ssub.s32 1, %s13
  %s16 = scalar_select 0, %s15, %s13
  $region1: #{tag_value_forward.3} parent=0
    #allocation2 [shape = 'u8[1024]{0}', space=vmem, size = 0x400, scoped, tag = 'output window, operand 1, single buffered']
    #allocation3 [shape = 's32[1]{0}', space=sflag, size = 0x4, scoped, tag = 'scoped memory for tag_value_forward.3']
    #allocation4 [shape = 'u8[1024]{0}', space=vmem, size = 0x400, scoped, tag = 'output window, operand 2, single buffered']
    #allocation5 [shape = 's32[1]{0}', space=sflag, size = 0x4, scoped, tag = 'scoped memory for tag_value_forward.3']
    %17 = vsyncpa [#allocation3], 0
    %18 = vsyncpa [#allocation5], 0
    // Predicated region
    $region2: #{tag_value_forward.3} parent=1 // pred_check
      _
    $region3: #{tag_value_forward.3} parent=1 // pred_check_branch
      %20 = sbr.rel (0) target = $region5
    $region4: #{tag_value_forward.3} parent=1 // pred_region
      _
    $region5: #{tag_value_forward.3} parent=1 // pred_fallthru
      _
    // Predicated region
    $region6: #{tag_value_forward.3} parent=1 // pred_check
      _
    $region7: #{tag_value_forward.3} parent=1 // pred_check_branch
      %22 = sbr.rel (0) target = $region9
    $region8: #{tag_value_forward.3} parent=1 // pred_region
      _
    $region9: #{tag_value_forward.3} parent=1 // pred_fallthru
      _
    // Predicated region
    $region10: #{tag_value_forward.3} parent=1 // pred_check
      _
    $region11: #{tag_value_forward.3} parent=1 // pred_check_branch
      %24 = sbr.rel (0) target = $region13
    $region12: #{tag_value_forward.3} parent=1 // pred_region
      _
    $region13: #{tag_value_forward.3} parent=1 // pred_fallthru
      _
    // Predicated region
    $region14: #{tag_value_forward.3} parent=1 // pred_check
      _
    $region15: #{tag_value_forward.3} parent=1 // pred_check_branch
      %26 = sbr.rel (0) target = $region17
    $region16: #{tag_value_forward.3} parent=1 // pred_region
      _
    $region17: #{tag_value_forward.3} parent=1 // pred_fallthru
      _
    // Predicated region
    $region18: #{tag_value_forward.3} parent=1 // pred_check
      _
    $region19: #{tag_value_forward.3} parent=1 // pred_check_branch
      %28 = sbr.rel (0) target = $region21
    $region20: #{tag_value_forward.3} parent=1 // pred_region
      _
    $region21: #{tag_value_forward.3} parent=1 // pred_fallthru
      _
    // Predicated region
    $region22: #{tag_value_forward.3} parent=1 // pred_check
      _
    $region23: #{tag_value_forward.3} parent=1 // pred_check_branch
      %30 = sbr.rel (0) target = $region25
    $region24: #{tag_value_forward.3} parent=1 // pred_region
      _
    $region25: #{tag_value_forward.3} parent=1 // pred_fallthru
      _
    // Predicated region
    $region26: #{tag_value_forward.3} parent=1 // pred_check
      _
    $region27: #{tag_value_forward.3} parent=1 // pred_check_branch
      %32 = sbr.rel (0) target = $region29
    $region28: #{tag_value_forward.3} parent=1 // pred_region
      _
    $region29: #{tag_value_forward.3} parent=1 // pred_fallthru
      _
    // Predicated region
    $region30: #{tag_value_forward.3} parent=1 // pred_check
      _
    $region31: #{tag_value_forward.3} parent=1 // pred_check_branch
      %34 = sbr.rel (0) target = $region33
    $region32: #{tag_value_forward.3} parent=1 // pred_region
      _
    $region33: #{tag_value_forward.3} parent=1 // pred_fallthru
      _
    // Predicated region
    $region34: #{tag_value_forward.3} parent=1 // pred_check
      _
    $region35: #{tag_value_forward.3} parent=1 // pred_check_branch
      %36 = sbr.rel (0) target = $region37
    $region36: #{tag_value_forward.3} parent=1 // pred_region
      _
    $region37: #{tag_value_forward.3} parent=1 // pred_fallthru
      _
    %v37 = vld [vmem:[%s0] sm:$0xff]
    %v38 = vld [vmem:[%s0 + $0x8] sm:$0xff]
    %v39 = vld [vmem:[%s3] sm:$0xff]
    %v40 = vld [vmem:[%s3 + $0x8] sm:$0xff]
    %v41 = vld [vmem:[%s3 + $0x10] sm:$0xff]
    %v42 = vld [vmem:[%s3 + $0x18] sm:$0xff]
    %v43 = vld [vmem:[%s3 + $0x20] sm:$0xff]
    %v44 = vld [vmem:[%s3 + $0x28] sm:$0xff]
    %v45 = vld [vmem:[%s3 + $0x30] sm:$0xff]
    %v46 = vld [vmem:[%s3 + $0x38] sm:$0xff]
    %v47 = vld [vmem:[%s3 + $0x40] sm:$0xff]
    %v48 = vld [vmem:[%s3 + $0x48] sm:$0xff]
    %v49 = vld [vmem:[%s3 + $0x50] sm:$0xff]
    %v50 = vld [vmem:[%s3 + $0x58] sm:$0xff]
    %v51 = vld [vmem:[%s3 + $0x60] sm:$0xff]
    %v52 = vld [vmem:[%s3 + $0x68] sm:$0xff]
    %v53 = vld [vmem:[%s3 + $0x70] sm:$0xff]
    %v54 = vld [vmem:[%s3 + $0x78] sm:$0xff]
    %v55 = vld [vmem:[%s4] sm:$0x1]
    %v57 = vlaneseq
    %v58 = vshrl.u32 %v57, 7
    %v59 = vsub.s32 0, %v58
    %v60 = vrot.slane %v55, %v59
    %v64 = vrot.slane %v38, 7
    %vm65 = vcmask 1041409
    %v66 = vsel %vm65, %v64, %v37
    %68 = vmatprep.subr.mxu0 0.0
    %69 = vmatpush1.msra.mxu0 %v54
    %70 = vmatprep.subr.mxu0 0.0
    %71 = vmatpush1.msra.mxu0 %v53
    %72 = vmatprep.subr.mxu0 0.0
    %73 = vmatpush1.msra.mxu0 %v52
    %74 = vmatprep.subr.mxu0 0.0
    %75 = vmatpush1.msra.mxu0 %v51
    %76 = vmatprep.subr.mxu0 0.0
    %77 = vmatpush1.msra.mxu0 %v50
    %78 = vmatprep.subr.mxu0 0.0
    %79 = vmatpush1.msra.mxu0 %v49
    %80 = vmatprep.subr.mxu0 0.0
    %81 = vmatpush1.msra.mxu0 %v48
    %82 = vmatprep.subr.mxu0 0.0
    %83 = vmatpush1.msra.mxu0 %v47
    %84 = vmatprep.subr.mxu0 0.0
    %85 = vmatpush1.msra.mxu0 %v46
    %86 = vmatprep.subr.mxu0 0.0
    %87 = vmatpush1.msra.mxu0 %v45
    %88 = vmatprep.subr.mxu0 0.0
    %89 = vmatpush1.msra.mxu0 %v44
    %90 = vmatprep.subr.mxu0 0.0
    %91 = vmatpush1.msra.mxu0 %v43
    %92 = vmatprep.subr.mxu0 0.0
    %93 = vmatpush1.msra.mxu0 %v42
    %94 = vmatprep.subr.mxu0 0.0
    %95 = vmatpush1.msra.mxu0 %v41
    %96 = vmatprep.subr.mxu0 0.0
    %97 = vmatpush1.msra.mxu0 %v40
    %98 = vmatprep.subr.mxu0 0.0
    %99 = vmatpush1.msra.mxu0 %v39
    %100 = vmatprep.subr.mxu0 0.0
    %101 = vmatpush2.msra.mxu0 0.0
    %102 = vmatprep.subr.mxu0 0.0
    %103 = vmatpush2.msra.mxu0 0.0
    %104 = vmatprep.subr.mxu0 0.0
    %105 = vmatpush2.msra.mxu0 0.0
    %106 = vmatprep.subr.mxu0 0.0
    %107 = vmatpush2.msra.mxu0 0.0
    %108 = vmatprep.subr.mxu0 0.0
    %109 = vmatpush2.msra.mxu0 0.0
    %110 = vmatprep.subr.mxu0 0.0
    %111 = vmatpush2.msra.mxu0 0.0
    %112 = vmatprep.subr.mxu0 0.0
    %113 = vmatpush2.msra.mxu0 0.0
    %114 = vmatprep.subr.mxu0 0.0
    %115 = vmatpush2.msra.mxu0 0.0
    %116 = vmatprep.subr.mxu0 0.0
    %117 = vmatpush2.msra.mxu0 0.0
    %118 = vmatprep.subr.mxu0 0.0
    %119 = vmatpush2.msra.mxu0 0.0
    %120 = vmatprep.subr.mxu0 0.0
    %121 = vmatpush2.msra.mxu0 0.0
    %122 = vmatprep.subr.mxu0 0.0
    %123 = vmatpush2.msra.mxu0 0.0
    %124 = vmatprep.subr.mxu0 0.0
    %125 = vmatpush2.msra.mxu0 0.0
    %126 = vmatprep.subr.mxu0 0.0
    %127 = vmatpush2.msra.mxu0 0.0
    %128 = vmatprep.subr.mxu0 0.0
    %129 = vmatpush2.msra.mxu0 0.0
    %130 = vmatprep.subr.mxu0 0.0
    %131 = vmatpush2.msra.mxu0 0.0
    %132 = vmatprep.mubr.f32.mxu0 0.0
    %133 = vmatmul.mubr.f32.gmra.mxu0 %v66
    %v134 = vpop.f32.mrf.mxu0
    %v135 = vadd.f32 %v60, %v134
    %v136 = vpop.f32.mrf.mxu0
    %137 = vdwg.mxu0
    %v138 = vtanh.pop %v135
    %v139 = vld [vmem:[%s5] sm:$0xff]
    %v140 = vld [vmem:[%s5 + $0x8] sm:$0xff]
    %v141 = vld [vmem:[%s5 + $0x10] sm:$0xff]
    %v142 = vld [vmem:[%s5 + $0x18] sm:$0xff]
    %v143 = vld [vmem:[%s5 + $0x20] sm:$0xff]
    %v144 = vld [vmem:[%s5 + $0x28] sm:$0xff]
    %v145 = vld [vmem:[%s5 + $0x30] sm:$0xff]
    %v146 = vld [vmem:[%s5 + $0x38] sm:$0xff]
    %v147 = vld [vmem:[%s5 + $0x40] sm:$0xff]
    %v148 = vld [vmem:[%s5 + $0x48] sm:$0xff]
    %v149 = vld [vmem:[%s5 + $0x50] sm:$0xff]
    %v150 = vld [vmem:[%s5 + $0x58] sm:$0xff]
    %v151 = vld [vmem:[%s5 + $0x60] sm:$0xff]
    %v152 = vld [vmem:[%s5 + $0x68] sm:$0xff]
    %v153 = vld [vmem:[%s5 + $0x70] sm:$0xff]
    %v154 = vld [vmem:[%s5 + $0x78] sm:$0xff]
    %v155 = vld [vmem:[%s6] sm:$0x1]
    %v157 = vlaneseq
    %v158 = vshrl.u32 %v157, 7
    %v159 = vsub.s32 0, %v158
    %v160 = vrot.slane %v155, %v159
    %162 = vmatprep.subr.mxu0 0.0
    %163 = vmatpush1.msra.mxu0 %v154
    %164 = vmatprep.subr.mxu0 0.0
    %165 = vmatpush1.msra.mxu0 %v153
    %166 = vmatprep.subr.mxu0 0.0
    %167 = vmatpush1.msra.mxu0 %v152
    %168 = vmatprep.subr.mxu0 0.0
    %169 = vmatpush1.msra.mxu0 %v151
    %170 = vmatprep.subr.mxu0 0.0
    %171 = vmatpush1.msra.mxu0 %v150
    %172 = vmatprep.subr.mxu0 0.0
    %173 = vmatpush1.msra.mxu0 %v149
    %174 = vmatprep.subr.mxu0 0.0
    %175 = vmatpush1.msra.mxu0 %v148
    %176 = vmatprep.subr.mxu0 0.0
    %177 = vmatpush1.msra.mxu0 %v147
    %178 = vmatprep.subr.mxu0 0.0
    %179 = vmatpush1.msra.mxu0 %v146
    %180 = vmatprep.subr.mxu0 0.0
    %181 = vmatpush1.msra.mxu0 %v145
    %182 = vmatprep.subr.mxu0 0.0
    %183 = vmatpush1.msra.mxu0 %v144
    %184 = vmatprep.subr.mxu0 0.0
    %185 = vmatpush1.msra.mxu0 %v143
    %186 = vmatprep.subr.mxu0 0.0
    %187 = vmatpush1.msra.mxu0 %v142
    %188 = vmatprep.subr.mxu0 0.0
    %189 = vmatpush1.msra.mxu0 %v141
    %190 = vmatprep.subr.mxu0 0.0
    %191 = vmatpush1.msra.mxu0 %v140
    %192 = vmatprep.subr.mxu0 0.0
    %193 = vmatpush1.msra.mxu0 %v139
    %194 = vmatprep.subr.mxu0 0.0
    %195 = vmatpush2.msra.mxu0 0.0
    %196 = vmatprep.subr.mxu0 0.0
    %197 = vmatpush2.msra.mxu0 0.0
    %198 = vmatprep.subr.mxu0 0.0
    %199 = vmatpush2.msra.mxu0 0.0
    %200 = vmatprep.subr.mxu0 0.0
    %201 = vmatpush2.msra.mxu0 0.0
    %202 = vmatprep.subr.mxu0 0.0
    %203 = vmatpush2.msra.mxu0 0.0
    %204 = vmatprep.subr.mxu0 0.0
    %205 = vmatpush2.msra.mxu0 0.0
    %206 = vmatprep.subr.mxu0 0.0
    %207 = vmatpush2.msra.mxu0 0.0
    %208 = vmatprep.subr.mxu0 0.0
    %209 = vmatpush2.msra.mxu0 0.0
    %210 = vmatprep.subr.mxu0 0.0
    %211 = vmatpush2.msra.mxu0 0.0
    %212 = vmatprep.subr.mxu0 0.0
    %213 = vmatpush2.msra.mxu0 0.0
    %214 = vmatprep.subr.mxu0 0.0
    %215 = vmatpush2.msra.mxu0 0.0
    %216 = vmatprep.subr.mxu0 0.0
    %217 = vmatpush2.msra.mxu0 0.0
    %218 = vmatprep.subr.mxu0 0.0
    %219 = vmatpush2.msra.mxu0 0.0
    %220 = vmatprep.subr.mxu0 0.0
    %221 = vmatpush2.msra.mxu0 0.0
    %222 = vmatprep.subr.mxu0 0.0
    %223 = vmatpush2.msra.mxu0 0.0
    %224 = vmatprep.subr.mxu0 0.0
    %225 = vmatpush2.msra.mxu0 0.0
    %226 = vmatprep.mubr.f32.mxu0 0.0
    %227 = vmatmul.mubr.f32.gmra.mxu0 %v138
    %v228 = vpop.f32.mrf.mxu0
    %v229 = vadd.f32 %v160, %v228
    %v230 = vpop.f32.mrf.mxu0
    %231 = vdwg.mxu0
    %vm232 = vcmask 156672
    %233 = vst.msk [vmem:[#allocation2] sm:$0x3] %vm232, %v229
    %v234 = vld [vmem:[%s7] sm:$0xff]
    %v235 = vld [vmem:[%s7 + $0x8] sm:$0xff]
    %v236 = vld [vmem:[%s7 + $0x10] sm:$0xff]
    %v237 = vld [vmem:[%s7 + $0x18] sm:$0xff]
    %v238 = vld [vmem:[%s7 + $0x20] sm:$0xff]
    %v239 = vld [vmem:[%s8] sm:$0xff]
    %v240 = vld [vmem:[%s8 + $0x8] sm:$0xff]
    %v241 = vld [vmem:[%s8 + $0x10] sm:$0xff]
    %v242 = vld [vmem:[%s8 + $0x18] sm:$0xff]
    %v243 = vld [vmem:[%s8 + $0x20] sm:$0xff]
    %245 = vset.pattern.permute.xlu0 0
    %246 = vperm.xlu0 %245, %v239
    %v247 = vpop.permute.xlu0 %246
    %250 = vset.pattern.permute.xlu0 0
    %251 = vperm.xlu0 %250, %v240
    %v252 = vpop.permute.xlu0 %251
    %255 = vset.pattern.permute.xlu0 0
    %256 = vperm.xlu0 %255, %v241
    %v257 = vpop.permute.xlu0 %256
    %260 = vset.pattern.permute.xlu0 0
    %261 = vperm.xlu0 %260, %v242
    %v262 = vpop.permute.xlu0 %261
    %265 = vset.pattern.permute.xlu0 0
    %266 = vperm.xlu0 %265, %v243
    %v267 = vpop.permute.xlu0 %266
    %269 = vmatprep.subr.mxu0 0.0
    %270 = vmatpush1.xpose.msra.mxu0 0.0
    %271 = vmatprep.subr.mxu0 0.0
    %272 = vmatpush1.xpose.msra.mxu0 0.0
    %273 = vmatprep.subr.mxu0 0.0
    %274 = vmatpush1.xpose.msra.mxu0 0.0
    %275 = vmatprep.subr.mxu0 0.0
    %276 = vmatpush1.xpose.msra.mxu0 0.0
    %277 = vmatprep.subr.mxu0 0.0
    %278 = vmatpush1.xpose.msra.mxu0 0.0
    %279 = vmatprep.subr.mxu0 0.0
    %280 = vmatpush1.xpose.msra.mxu0 0.0
    %281 = vmatprep.subr.mxu0 0.0
    %282 = vmatpush1.xpose.msra.mxu0 0.0
    %283 = vmatprep.subr.mxu0 0.0
    %284 = vmatpush1.xpose.msra.mxu0 0.0
    %285 = vmatprep.subr.mxu0 0.0
    %286 = vmatpush1.xpose.msra.mxu0 0.0
    %287 = vmatprep.subr.mxu0 0.0
    %288 = vmatpush1.xpose.msra.mxu0 0.0
    %289 = vmatprep.subr.mxu0 0.0
    %290 = vmatpush1.xpose.msra.mxu0 0.0
    %291 = vmatprep.subr.mxu0 0.0
    %292 = vmatpush1.xpose.msra.mxu0 0.0
    %293 = vmatprep.subr.mxu0 0.0
    %294 = vmatpush1.xpose.msra.mxu0 0.0
    %295 = vmatprep.subr.mxu0 0.0
    %296 = vmatpush1.xpose.msra.mxu0 0.0
    %297 = vmatprep.subr.mxu0 0.0
    %298 = vmatpush1.xpose.msra.mxu0 %v38
    %299 = vmatprep.subr.mxu0 0.0
    %300 = vmatpush1.xpose.msra.mxu0 %v37
    %301 = vmatprep.subr.mxu0 0.0
    %302 = vmatpush2.xpose.msra.mxu0 0.0
    %303 = vmatprep.subr.mxu0 0.0
    %304 = vmatpush2.xpose.msra.mxu0 0.0
    %305 = vmatprep.subr.mxu0 0.0
    %306 = vmatpush2.xpose.msra.mxu0 0.0
    %307 = vmatprep.subr.mxu0 0.0
    %308 = vmatpush2.xpose.msra.mxu0 0.0
    %309 = vmatprep.subr.mxu0 0.0
    %310 = vmatpush2.xpose.msra.mxu0 0.0
    %311 = vmatprep.subr.mxu0 0.0
    %312 = vmatpush2.xpose.msra.mxu0 0.0
    %313 = vmatprep.subr.mxu0 0.0
    %314 = vmatpush2.xpose.msra.mxu0 0.0
    %315 = vmatprep.subr.mxu0 0.0
    %316 = vmatpush2.xpose.msra.mxu0 0.0
    %317 = vmatprep.subr.mxu0 0.0
    %318 = vmatpush2.xpose.msra.mxu0 0.0
    %319 = vmatprep.subr.mxu0 0.0
    %320 = vmatpush2.xpose.msra.mxu0 0.0
    %321 = vmatprep.subr.mxu0 0.0
    %322 = vmatpush2.xpose.msra.mxu0 0.0
    %323 = vmatprep.subr.mxu0 0.0
    %324 = vmatpush2.xpose.msra.mxu0 0.0
    %325 = vmatprep.subr.mxu0 0.0
    %326 = vmatpush2.xpose.msra.mxu0 0.0
    %327 = vmatprep.subr.mxu0 0.0
    %328 = vmatpush2.xpose.msra.mxu0 0.0
    %329 = vmatprep.subr.mxu0 0.0
    %330 = vmatpush2.xpose.msra.mxu0 0.0
    %331 = vmatprep.subr.mxu0 0.0
    %332 = vmatpush2.xpose.msra.mxu0 0.0
    %333 = vmatprep.mubr.f32.mxu0 0.0
    %334 = vmatmul.mubr.f32.gmra.mxu0 %v234
    %v335 = vpop.f32.mrf.mxu0
    %v336 = vadd.f32 %v247, %v335
    %v337 = vpop.f32.mrf.mxu0
    %338 = vmatprep.mubr.f32.mxu0 0.0
    %339 = vmatmul.mubr.f32.gmra.mxu0 %v235
    %v340 = vpop.f32.mrf.mxu0
    %v341 = vadd.f32 %v252, %v340
    %v342 = vpop.f32.mrf.mxu0
    %343 = vmatprep.mubr.f32.mxu0 0.0
    %344 = vmatmul.mubr.f32.gmra.mxu0 %v236
    %v345 = vpop.f32.mrf.mxu0
    %v346 = vadd.f32 %v257, %v345
    %v347 = vpop.f32.mrf.mxu0
    %348 = vmatprep.mubr.f32.mxu0 0.0
    %349 = vmatmul.mubr.f32.gmra.mxu0 %v237
    %v350 = vpop.f32.mrf.mxu0
    %v351 = vadd.f32 %v262, %v350
    %v352 = vpop.f32.mrf.mxu0
    %353 = vmatprep.mubr.f32.mxu0 0.0
    %354 = vmatmul.mubr.f32.gmra.mxu0 %v238
    %v355 = vpop.f32.mrf.mxu0
    %v356 = vadd.f32 %v267, %v355
    %v357 = vpop.f32.mrf.mxu0
    %358 = vdwg.mxu0
    %v359 = vld [vmem:[%s2] sm:$0x1]
    %v361 = vlaneseq
    %v362 = vshrl.u32 %v361, 7
    %v363 = vsub.s32 0, %v362
    %v364 = vrot.slane %v359, %v363
    %v366 = vadd.f32 %v336, %v364
    %v367 = vadd.f32 %v341, %v364
    %v368 = vadd.f32 %v346, %v364
    %v369 = vadd.f32 %v351, %v364
    %v370 = vadd.f32 %v356, %v364
    %vm371 = vcmask 130048
    %372 = vst.msk [vmem:[%s9] sm:$0xff] %vm371, %v366
    %373 = vst.msk [vmem:[%s9 + $0x8] sm:$0xff] %vm371, %v367
    %374 = vst.msk [vmem:[%s9 + $0x10] sm:$0xff] %vm371, %v368
    %375 = vst.msk [vmem:[%s9 + $0x18] sm:$0xff] %vm371, %v369
    %376 = vst.msk [vmem:[%s9 + $0x20] sm:$0xff] %vm371, %v370
    %v377 = vld [vmem:[%s1] sm:$0x3]
    %v379 = vsel %vm371, %v377, 0
    %381 = vmatprep.subr.mxu0 0.0
    %382 = vmatpush1.msra.mxu0 0.0
    %383 = vmatprep.subr.mxu0 0.0
    %384 = vmatpush1.msra.mxu0 0.0
    %385 = vmatprep.subr.mxu0 0.0
    %386 = vmatpush1.msra.mxu0 0.0
    %387 = vmatprep.subr.mxu0 0.0
    %388 = vmatpush1.msra.mxu0 0.0
    %389 = vmatprep.subr.mxu0 0.0
    %390 = vmatpush1.msra.mxu0 0.0
    %391 = vmatprep.subr.mxu0 0.0
    %392 = vmatpush1.msra.mxu0 0.0
    %393 = vmatprep.subr.mxu0 0.0
    %394 = vmatpush1.msra.mxu0 0.0
    %395 = vmatprep.subr.mxu0 0.0
    %396 = vmatpush1.msra.mxu0 0.0
    %397 = vmatprep.subr.mxu0 0.0
    %398 = vmatpush1.msra.mxu0 0.0
    %399 = vmatprep.subr.mxu0 0.0
    %400 = vmatpush1.msra.mxu0 0.0
    %401 = vmatprep.subr.mxu0 0.0
    %402 = vmatpush1.msra.mxu0 0.0
    %403 = vmatprep.subr.mxu0 0.0
    %404 = vmatpush1.msra.mxu0 0.0
    %405 = vmatprep.subr.mxu0 0.0
    %406 = vmatpush1.msra.mxu0 0.0
    %407 = vmatprep.subr.mxu0 0.0
    %408 = vmatpush1.msra.mxu0 0.0
    %409 = vmatprep.subr.mxu0 0.0
    %410 = vmatpush1.msra.mxu0 %v38
    %411 = vmatprep.subr.mxu0 0.0
    %412 = vmatpush1.msra.mxu0 %v37
    %413 = vmatprep.subr.mxu0 0.0
    %414 = vmatpush2.msra.mxu0 0.0
    %415 = vmatprep.subr.mxu0 0.0
    %416 = vmatpush2.msra.mxu0 0.0
    %417 = vmatprep.subr.mxu0 0.0
    %418 = vmatpush2.msra.mxu0 0.0
    %419 = vmatprep.subr.mxu0 0.0
    %420 = vmatpush2.msra.mxu0 0.0
    %421 = vmatprep.subr.mxu0 0.0
    %422 = vmatpush2.msra.mxu0 0.0
    %423 = vmatprep.subr.mxu0 0.0
    %424 = vmatpush2.msra.mxu0 0.0
    %425 = vmatprep.subr.mxu0 0.0
    %426 = vmatpush2.msra.mxu0 0.0
    %427 = vmatprep.subr.mxu0 0.0
    %428 = vmatpush2.msra.mxu0 0.0
    %429 = vmatprep.subr.mxu0 0.0
    %430 = vmatpush2.msra.mxu0 0.0
    %431 = vmatprep.subr.mxu0 0.0
    %432 = vmatpush2.msra.mxu0 0.0
    %433 = vmatprep.subr.mxu0 0.0
    %434 = vmatpush2.msra.mxu0 0.0
    %435 = vmatprep.subr.mxu0 0.0
    %436 = vmatpush2.msra.mxu0 0.0
    %437 = vmatprep.subr.mxu0 0.0
    %438 = vmatpush2.msra.mxu0 0.0
    %439 = vmatprep.subr.mxu0 0.0
    %440 = vmatpush2.msra.mxu0 0.0
    %441 = vmatprep.subr.mxu0 0.0
    %442 = vmatpush2.msra.mxu0 0.0
    %443 = vmatprep.subr.mxu0 0.0
    %444 = vmatpush2.msra.mxu0 0.0
    %445 = vmatprep.mubr.f32.mxu0 0.0
    %446 = vmatmul.mubr.f32.gmra.mxu0 %v379
    %v447 = vpop.f32.mrf.mxu0
    %v448 = vadd.f32 0.0, %v447
    %v449 = vpop.f32.mrf.mxu0
    %450 = vdwg.mxu0
    %vm451 = vcmask 123904
    %v452 = vsel %vm451, %v377, 0.0
    %453 = vadd.xlane.f32.xlu0 %v452
    %v454 = vpop.xlane.xlu0 %453
    %v455 = vrcp.pop %v454
    %v456 = vmul.f32 %v448, %v455
    %457 = vst [vmem:[#allocation4] sm:$0x3] %v456
    // Predicated region
    $region38: #{tag_value_forward.3} parent=1 // pred_check
      _
    $region39: #{tag_value_forward.3} parent=1 // pred_check_branch
      %459 = sbr.rel (0) target = $region41
    $region40: #{tag_value_forward.3} parent=1 // pred_region
      _
    $region41: #{tag_value_forward.3} parent=1 // pred_fallthru
      _
    // Predicated region
    $region42: #{tag_value_forward.3} parent=1 // pred_check
      _
    $region43: #{tag_value_forward.3} parent=1 // pred_check_branch
      %461 = sbr.rel (0) target = $region45
    $region44: #{tag_value_forward.3} parent=1 // pred_region
      %s463 = ssub.s32 32, 32
      %464 = vsyncadd [#allocation3], %s463
      %s466 = sshll.u32 [#allocation2], 4
      %s467 = int_to_ptr.vmem [resolvable:$true] %s466
      %469 = dma.vmem_to_hbm [thread:$0]  %s467, 32, %s10, [#allocation3]
    $region45: #{tag_value_forward.3} parent=1 // pred_fallthru
      _
    // Predicated region
    $region46: #{tag_value_forward.3} parent=1 // pred_check
      _
    $region47: #{tag_value_forward.3} parent=1 // pred_check_branch
      %471 = sbr.rel (0) target = $region49
    $region48: #{tag_value_forward.3} parent=1 // pred_region
      %s473 = ssub.s32 32, 32
      %474 = vsyncadd [#allocation5], %s473
      %s476 = sshll.u32 [#allocation4], 4
      %s477 = int_to_ptr.vmem [resolvable:$true] %s476
      %479 = dma.vmem_to_hbm [thread:$0]  %s477, 32, %s11, [#allocation5]
    $region49: #{tag_value_forward.3} parent=1 // pred_fallthru
      _
    // Predicated region
    $region50: #{tag_value_forward.3} parent=1 // pred_check
      _
    $region51: #{tag_value_forward.3} parent=1 // pred_check_branch
      %481 = sbr.rel (0) target = $region53
    $region52: #{tag_value_forward.3} parent=1 // pred_region
      _
    $region53: #{tag_value_forward.3} parent=1 // pred_fallthru
      _
    // Predicated region
    $region54: #{tag_value_forward.3} parent=1 // pred_check
      _
    $region55: #{tag_value_forward.3} parent=1 // pred_check_branch
      %483 = sbr.rel (0) target = $region57
    $region56: #{tag_value_forward.3} parent=1 // pred_region
      %484 = dma.done [#allocation3], 32
    $region57: #{tag_value_forward.3} parent=1 // pred_fallthru
      _
    // Predicated region
    $region58: #{tag_value_forward.3} parent=1 // pred_check
      _
    $region59: #{tag_value_forward.3} parent=1 // pred_check_branch
      %486 = sbr.rel (0) target = $region61
    $region60: #{tag_value_forward.3} parent=1 // pred_region
      %487 = dma.done [#allocation5], 32
    $region61: #{tag_value_forward.3} parent=1 // pred_fallthru
      _
    %488 = vsyncpa [#allocation3], 1
    %489 = vsyncpa [#allocation5], 1

// kernel: tag_value_forward.2
$region0: #{tag_value_forward.2}
  #allocation0 [shape = 'u32[]', space=smem, size = 0x4, offset = 0x4, fixed_abs, tag = 'smem constant byte address 0x4 - core index']
  #allocation1 [shape = 'u32[144,128]{1,0:T(1,128)}', space=vmem, size = 0x12000, scoped, tag = 'internal scratch']
  #allocation2 [shape = 'f32[8,128]{1,0:T(8,128)}', space=vmem, size = 0x1000, scoped, tag = 'scratch operand']
  %s0 = inlined_call_operand.vmem [shape: f32[16,128], index: 0, kind: input, shape index: {}]
  %s1 = inlined_call_operand.vmem [shape: f32[2,1,8], index: 1, kind: input, shape index: {}]
  %s2 = inlined_call_operand.hbm [shape: f32[128,384], index: 2, kind: input, shape index: {}]
  %s3 = inlined_call_operand.hbm [shape: f32[1,384], index: 3, kind: input, shape index: {}]
  %s4 = inlined_call_operand.vmem [shape: f32[128,128], index: 4, kind: input, shape index: {}]
  %s5 = inlined_call_operand.hbm [shape: f32[1,128], index: 5, kind: input, shape index: {}]
  %s6 = inlined_call_operand.vmem [shape: f32[1,128], index: 6, kind: input, shape index: {}, may-alias: {6,12}]
  %s7 = inlined_call_operand.vmem [shape: f32[1,128], index: 7, kind: input, shape index: {}, may-alias: {7,13}]
  %s8 = inlined_call_operand.hbm [shape: f32[128,256], index: 8, kind: input, shape index: {}]
  %s9 = inlined_call_operand.vmem [shape: f32[1,256], index: 9, kind: input, shape index: {}]
  %s10 = inlined_call_operand.vmem [shape: f32[256,128], index: 10, kind: input, shape index: {}]
  %s11 = inlined_call_operand.hbm [shape: f32[1,128], index: 11, kind: input, shape index: {}]
  %s12 = inlined_call_operand.vmem [shape: f32[1,128], index: 12, kind: input, shape index: {}, may-alias: {6,12}]
  %s13 = inlined_call_operand.vmem [shape: f32[1,128], index: 13, kind: input, shape index: {}, may-alias: {7,13}]
  %s14 = inlined_call_operand.vmem [shape: f32[16,128], index: 14, kind: output, shape index: {}]
  %s15 = sld [smem:[#allocation0]]
  $region117: #{tag_value_forward.2} parent=0
    _
  %s17 = ssub.s32 1, %s15
  %s18 = scalar_select 0, %s17, %s15
  $region1: #{tag_value_forward.2} parent=0
    #allocation3 [shape = 'u8[196608]{0}', space=vmem, size = 0x30000, scoped, tag = 'input window, operand 2, single buffered']
    #allocation4 [shape = 's32[2]{0}', space=sflag, size = 0x8, scoped, tag = 'scoped memory for tag_value_forward.2']
    #allocation5 [shape = 'u8[1536]{0}', space=vmem, size = 0x800, scoped, tag = 'input window, operand 3, single buffered']
    #allocation6 [shape = 's32[1]{0}', space=sflag, size = 0x4, scoped, tag = 'scoped memory for tag_value_forward.2']
    #allocation7 [shape = 'u8[512]{0}', space=vmem, size = 0x400, scoped, tag = 'input window, operand 5, single buffered']
    #allocation8 [shape = 'u8[131072]{0}', space=vmem, size = 0x20000, scoped, tag = 'input window, operand 8, single buffered']
    #allocation9 [shape = 's32[1]{0}', space=sflag, size = 0x4, scoped, tag = 'scoped memory for tag_value_forward.2']
    #allocation10 [shape = 'u8[512]{0}', space=vmem, size = 0x400, scoped, tag = 'input window, operand 11, single buffered']
    %19 = vsyncpa [#allocation4], 0
    %20 = vsyncpa [#allocation6], 0
    %21 = vsyncpa [#allocation9], 0
    loop: start=0, step=1, limit=6
    $region2: #{tag_value_forward.2} parent=1 // loop_pre_header
      _
    $region3: #{tag_value_forward.2} parent=1 // loop_header
      %s23 = sphi 0, %s27
      %p24 = scmp.ge.s32.totalorder %s23, 6
      %s30 = sphi 0, %s42
      %s31 = sphi 0, %s38
      %s32 = sphi 0, %s30
      %s33 = sphi 0, %s31
      %s34 = sphi 0, %s32
      %s35 = sphi 0, %s33
      %s45 = sphi 0, %s47
      %s48 = sphi 0, %s45
      %s49 = sphi 0, %s48
      %s65 = sphi 0, %s49
      %s71 = sphi 0, %s73
      %s74 = sphi 0, %s71
      %s75 = sphi 0, %s74
      %s91 = sphi 0, %s75
      %s95 = sphi 0, %s95
      %s97 = sphi 0, %s95
      %s98 = sphi 0, %s97
      %s112 = sphi 0, %s98
      %s116 = sphi 0, %s116
      %s118 = sphi 0, %s116
      %s119 = sphi 0, %s118
      %s133 = sphi 0, %s119
      %s137 = sphi 0, %s137
      %s139 = sphi 0, %s137
      %s140 = sphi 0, %s139
      %s154 = sphi 0, %s140
      %s158 = sphi 0, %s158
      %s160 = sphi 0, %s158
      %s161 = sphi 0, %s160
      %s175 = sphi 0, %s161
      %s179 = sphi 0, %s179
      %s181 = sphi 0, %s179
      %s182 = sphi 0, %s181
      %s196 = sphi 0, %s182
      %s200 = sphi 0, %s200
      %s202 = sphi 0, %s200
      %s203 = sphi 0, %s202
      %s217 = sphi 0, %s203
      %s221 = sphi 0, %s221
      %s223 = sphi 0, %s221
      %s224 = sphi 0, %s223
      %s238 = sphi 0, %s224
      %s242 = sphi 0, %s242
      %s244 = sphi 0, %s242
      %s245 = sphi 0, %s244
      %s259 = sphi 0, %s245
      %s263 = sphi 0, %s263
      %s265 = sphi 0, %s263
      %s266 = sphi 0, %s265
      %s280 = sphi 0, %s266
      %s284 = sphi 0, %s284
      %s286 = sphi 0, %s284
      %s287 = sphi 0, %s286
      %s301 = sphi 0, %s287
      %s305 = sphi 0, %s305
      %s307 = sphi 0, %s305
      %s308 = sphi 0, %s307
      %s322 = sphi 0, %s308
      %s326 = sphi 0, %s326
      %s328 = sphi 0, %s326
      %s329 = sphi 0, %s328
      %s343 = sphi 0, %s329
      %s349 = sphi 0, %s351
      %s352 = sphi 0, %s349
      %s353 = sphi 0, %s352
      %s369 = sphi 0, %s353
    $region4: #{tag_value_forward.2} parent=1 // loop_header_branch
      %26 = sbr.rel (%p24) target = $region8
    $region5: #{tag_value_forward.2} parent=1 // loop_body
      %s28 = ssub.s32 %s23, 1
      %s29 = ssub.s32 %s23, 2
      %s36 = sadd.s32 1, %s31
      %p37 = scmp.ge.s32.totalorder %s36, 2
      %s38 = scalar_select %p37, 0, %s36
      %s39 = sadd.s32 1, %s30
      %s40 = scalar_select %p37, %s39, %s30
      %p41 = scmp.ge.s32.totalorder %s40, 2
      %s42 = scalar_select %p41, 0, %s40
      %s43 = ssub.s32 %s30, %s42
      %p44 = scmp.eq.s32.totalorder %s43, 0
      %s46 = sadd.s32 %s45, 1
      %s47 = scalar_select %p44, %s45, %s46
      %p50 = pneg %p44
      %p51 = scmp.eq.s32.totalorder %s23, 3
      %p52 = por %p50, %p51
      %p53 = scmp.ne.s32.totalorder %s45, %s48
      %p54 = scmp.eq.s32.totalorder %s23, 0
      %p55 = por %p53, %p54
      %p56 = scmp.ne.s32.totalorder %s45, %s48
      %p57 = scmp.eq.s32.totalorder %s28, 3
      %p58 = por %p56, %p57
      %p59 = scmp.ne.s32.totalorder %s48, %s49
      %p60 = scmp.eq.s32.totalorder %s28, 0
      %p61 = por %p59, %p60
      %p62 = scmp.ne.s32.totalorder %s48, %s49
      %p63 = scmp.eq.s32.totalorder %s29, 3
      %p64 = por %p62, %p63
      %p66 = scmp.ne.s32.totalorder %s49, %s65
      %p67 = scmp.eq.s32.totalorder %s29, 0
      %p68 = por %p66, %p67
      %s69 = ssub.s32 %s30, %s42
      %p70 = scmp.eq.s32.totalorder %s69, 0
      %s72 = sadd.s32 %s71, 1
      %s73 = scalar_select %p70, %s71, %s72
      %p76 = pneg %p70
      %p77 = scmp.eq.s32.totalorder %s23, 3
      %p78 = por %p76, %p77
      %p79 = scmp.ne.s32.totalorder %s71, %s74
      %p80 = scmp.eq.s32.totalorder %s23, 0
      %p81 = por %p79, %p80
      %p82 = scmp.ne.s32.totalorder %s71, %s74
      %p83 = scmp.eq.s32.totalorder %s28, 3
      %p84 = por %p82, %p83
      %p85 = scmp.ne.s32.totalorder %s74, %s75
      %p86 = scmp.eq.s32.totalorder %s28, 0
      %p87 = por %p85, %p86
      %p88 = scmp.ne.s32.totalorder %s74, %s75
      %p89 = scmp.eq.s32.totalorder %s29, 3
      %p90 = por %p88, %p89
      %p92 = scmp.ne.s32.totalorder %s75, %s91
      %p93 = scmp.eq.s32.totalorder %s29, 0
      %p94 = por %p92, %p93
      %s96 = sadd.s32 %s95, 1
      %p99 = scmp.eq.s32.totalorder %s23, 3
      %p100 = scmp.ne.s32.totalorder %s95, %s97
      %p101 = scmp.eq.s32.totalorder %s23, 0
      %p102 = por %p100, %p101
      %p103 = scmp.ne.s32.totalorder %s95, %s97
      %p104 = scmp.eq.s32.totalorder %s28, 3
      %p105 = por %p103, %p104
      %p106 = scmp.ne.s32.totalorder %s97, %s98
      %p107 = scmp.eq.s32.totalorder %s28, 0
      %p108 = por %p106, %p107
      %p109 = scmp.ne.s32.totalorder %s97, %s98
      %p110 = scmp.eq.s32.totalorder %s29, 3
      %p111 = por %p109, %p110
      %p113 = scmp.ne.s32.totalorder %s98, %s112
      %p114 = scmp.eq.s32.totalorder %s29, 0
      %p115 = por %p113, %p114
      %s117 = sadd.s32 %s116, 1
      %p120 = scmp.eq.s32.totalorder %s23, 3
      %p121 = scmp.ne.s32.totalorder %s116, %s118
      %p122 = scmp.eq.s32.totalorder %s23, 0
      %p123 = por %p121, %p122
      %p124 = scmp.ne.s32.totalorder %s116, %s118
      %p125 = scmp.eq.s32.totalorder %s28, 3
      %p126 = por %p124, %p125
      %p127 = scmp.ne.s32.totalorder %s118, %s119
      %p128 = scmp.eq.s32.totalorder %s28, 0
      %p129 = por %p127, %p128
      %p130 = scmp.ne.s32.totalorder %s118, %s119
      %p131 = scmp.eq.s32.totalorder %s29, 3
      %p132 = por %p130, %p131
      %p134 = scmp.ne.s32.totalorder %s119, %s133
      %p135 = scmp.eq.s32.totalorder %s29, 0
      %p136 = por %p134, %p135
      %s138 = sadd.s32 %s137, 1
      %p141 = scmp.eq.s32.totalorder %s23, 3
      %p142 = scmp.ne.s32.totalorder %s137, %s139
      %p143 = scmp.eq.s32.totalorder %s23, 0
      %p144 = por %p142, %p143
      %p145 = scmp.ne.s32.totalorder %s137, %s139
      %p146 = scmp.eq.s32.totalorder %s28, 3
      %p147 = por %p145, %p146
      %p148 = scmp.ne.s32.totalorder %s139, %s140
      %p149 = scmp.eq.s32.totalorder %s28, 0
      %p150 = por %p148, %p149
      %p151 = scmp.ne.s32.totalorder %s139, %s140
      %p152 = scmp.eq.s32.totalorder %s29, 3
      %p153 = por %p151, %p152
      %p155 = scmp.ne.s32.totalorder %s140, %s154
      %p156 = scmp.eq.s32.totalorder %s29, 0
      %p157 = por %p155, %p156
      %s159 = sadd.s32 %s158, 1
      %p162 = scmp.eq.s32.totalorder %s23, 3
      %p163 = scmp.ne.s32.totalorder %s158, %s160
      %p164 = scmp.eq.s32.totalorder %s23, 0
      %p165 = por %p163, %p164
      %p166 = scmp.ne.s32.totalorder %s158, %s160
      %p167 = scmp.eq.s32.totalorder %s28, 3
      %p168 = por %p166, %p167
      %p169 = scmp.ne.s32.totalorder %s160, %s161
      %p170 = scmp.eq.s32.totalorder %s28, 0
      %p171 = por %p169, %p170
      %p172 = scmp.ne.s32.totalorder %s160, %s161
      %p173 = scmp.eq.s32.totalorder %s29, 3
      %p174 = por %p172, %p173
      %p176 = scmp.ne.s32.totalorder %s161, %s175
      %p177 = scmp.eq.s32.totalorder %s29, 0
      %p178 = por %p176, %p177
      %s180 = sadd.s32 %s179, 1
      %p183 = scmp.eq.s32.totalorder %s23, 3
      %p184 = scmp.ne.s32.totalorder %s179, %s181
      %p185 = scmp.eq.s32.totalorder %s23, 0
      %p186 = por %p184, %p185
      %p187 = scmp.ne.s32.totalorder %s179, %s181
      %p188 = scmp.eq.s32.totalorder %s28, 3
      %p189 = por %p187, %p188
      %p190 = scmp.ne.s32.totalorder %s181, %s182
      %p191 = scmp.eq.s32.totalorder %s28, 0
      %p192 = por %p190, %p191
      %p193 = scmp.ne.s32.totalorder %s181, %s182
      %p194 = scmp.eq.s32.totalorder %s29, 3
      %p195 = por %p193, %p194
      %p197 = scmp.ne.s32.totalorder %s182, %s196
      %p198 = scmp.eq.s32.totalorder %s29, 0
      %p199 = por %p197, %p198
      %s201 = sadd.s32 %s200, 1
      %p204 = scmp.eq.s32.totalorder %s23, 3
      %p205 = scmp.ne.s32.totalorder %s200, %s202
      %p206 = scmp.eq.s32.totalorder %s23, 0
      %p207 = por %p205, %p206
      %p208 = scmp.ne.s32.totalorder %s200, %s202
      %p209 = scmp.eq.s32.totalorder %s28, 3
      %p210 = por %p208, %p209
      %p211 = scmp.ne.s32.totalorder %s202, %s203
      %p212 = scmp.eq.s32.totalorder %s28, 0
      %p213 = por %p211, %p212
      %p214 = scmp.ne.s32.totalorder %s202, %s203
      %p215 = scmp.eq.s32.totalorder %s29, 3
      %p216 = por %p214, %p215
      %p218 = scmp.ne.s32.totalorder %s203, %s217
      %p219 = scmp.eq.s32.totalorder %s29, 0
      %p220 = por %p218, %p219
      %s222 = sadd.s32 %s221, 1
      %p225 = scmp.eq.s32.totalorder %s23, 3
      %p226 = scmp.ne.s32.totalorder %s221, %s223
      %p227 = scmp.eq.s32.totalorder %s23, 0
      %p228 = por %p226, %p227
      %p229 = scmp.ne.s32.totalorder %s221, %s223
      %p230 = scmp.eq.s32.totalorder %s28, 3
      %p231 = por %p229, %p230
      %p232 = scmp.ne.s32.totalorder %s223, %s224
      %p233 = scmp.eq.s32.totalorder %s28, 0
      %p234 = por %p232, %p233
      %p235 = scmp.ne.s32.totalorder %s223, %s224
      %p236 = scmp.eq.s32.totalorder %s29, 3
      %p237 = por %p235, %p236
      %p239 = scmp.ne.s32.totalorder %s224, %s238
      %p240 = scmp.eq.s32.totalorder %s29, 0
      %p241 = por %p239, %p240
      %s243 = sadd.s32 %s242, 1
      %p246 = scmp.eq.s32.totalorder %s23, 3
      %p247 = scmp.ne.s32.totalorder %s242, %s244
      %p248 = scmp.eq.s32.totalorder %s23, 0
      %p249 = por %p247, %p248
      %p250 = scmp.ne.s32.totalorder %s242, %s244
      %p251 = scmp.eq.s32.totalorder %s28, 3
      %p252 = por %p250, %p251
      %p253 = scmp.ne.s32.totalorder %s244, %s245
      %p254 = scmp.eq.s32.totalorder %s28, 0
      %p255 = por %p253, %p254
      %p256 = scmp.ne.s32.totalorder %s244, %s245
      %p257 = scmp.eq.s32.totalorder %s29, 3
      %p258 = por %p256, %p257
      %p260 = scmp.ne.s32.totalorder %s245, %s259
      %p261 = scmp.eq.s32.totalorder %s29, 0
      %p262 = por %p260, %p261
      %s264 = sadd.s32 %s263, 1
      %p267 = scmp.eq.s32.totalorder %s23, 3
      %p268 = scmp.ne.s32.totalorder %s263, %s265
      %p269 = scmp.eq.s32.totalorder %s23, 0
      %p270 = por %p268, %p269
      %p271 = scmp.ne.s32.totalorder %s263, %s265
      %p272 = scmp.eq.s32.totalorder %s28, 3
      %p273 = por %p271, %p272
      %p274 = scmp.ne.s32.totalorder %s265, %s266
      %p275 = scmp.eq.s32.totalorder %s28, 0
      %p276 = por %p274, %p275
      %p277 = scmp.ne.s32.totalorder %s265, %s266
      %p278 = scmp.eq.s32.totalorder %s29, 3
      %p279 = por %p277, %p278
      %p281 = scmp.ne.s32.totalorder %s266, %s280
      %p282 = scmp.eq.s32.totalorder %s29, 0
      %p283 = por %p281, %p282
      %s285 = sadd.s32 %s284, 1
      %p288 = scmp.eq.s32.totalorder %s23, 3
      %p289 = scmp.ne.s32.totalorder %s284, %s286
      %p290 = scmp.eq.s32.totalorder %s23, 0
      %p291 = por %p289, %p290
      %p292 = scmp.ne.s32.totalorder %s284, %s286
      %p293 = scmp.eq.s32.totalorder %s28, 3
      %p294 = por %p292, %p293
      %p295 = scmp.ne.s32.totalorder %s286, %s287
      %p296 = scmp.eq.s32.totalorder %s28, 0
      %p297 = por %p295, %p296
      %p298 = scmp.ne.s32.totalorder %s286, %s287
      %p299 = scmp.eq.s32.totalorder %s29, 3
      %p300 = por %p298, %p299
      %p302 = scmp.ne.s32.totalorder %s287, %s301
      %p303 = scmp.eq.s32.totalorder %s29, 0
      %p304 = por %p302, %p303
      %s306 = sadd.s32 %s305, 1
      %p309 = scmp.eq.s32.totalorder %s23, 3
      %p310 = scmp.ne.s32.totalorder %s305, %s307
      %p311 = scmp.eq.s32.totalorder %s23, 0
      %p312 = por %p310, %p311
      %p313 = scmp.ne.s32.totalorder %s305, %s307
      %p314 = scmp.eq.s32.totalorder %s28, 3
      %p315 = por %p313, %p314
      %p316 = scmp.ne.s32.totalorder %s307, %s308
      %p317 = scmp.eq.s32.totalorder %s28, 0
      %p318 = por %p316, %p317
      %p319 = scmp.ne.s32.totalorder %s307, %s308
      %p320 = scmp.eq.s32.totalorder %s29, 3
      %p321 = por %p319, %p320
      %p323 = scmp.ne.s32.totalorder %s308, %s322
      %p324 = scmp.eq.s32.totalorder %s29, 0
      %p325 = por %p323, %p324
      %s327 = sadd.s32 %s326, 1
      %p330 = scmp.eq.s32.totalorder %s23, 3
      %p331 = scmp.ne.s32.totalorder %s326, %s328
      %p332 = scmp.eq.s32.totalorder %s23, 0
      %p333 = por %p331, %p332
      %p334 = scmp.ne.s32.totalorder %s326, %s328
      %p335 = scmp.eq.s32.totalorder %s28, 3
      %p336 = por %p334, %p335
      %p337 = scmp.ne.s32.totalorder %s328, %s329
      %p338 = scmp.eq.s32.totalorder %s28, 0
      %p339 = por %p337, %p338
      %p340 = scmp.ne.s32.totalorder %s328, %s329
      %p341 = scmp.eq.s32.totalorder %s29, 3
      %p342 = por %p340, %p341
      %p344 = scmp.ne.s32.totalorder %s329, %s343
      %p345 = scmp.eq.s32.totalorder %s29, 0
      %p346 = por %p344, %p345
      %s347 = ssub.s32 %s30, %s42
      %p348 = scmp.eq.s32.totalorder %s347, 0
      %s350 = sadd.s32 %s349, 1
      %s351 = scalar_select %p348, %s349, %s350
      %p354 = pneg %p348
      %p355 = scmp.eq.s32.totalorder %s23, 3
      %p356 = por %p354, %p355
      %p357 = scmp.ne.s32.totalorder %s349, %s352
      %p358 = scmp.eq.s32.totalorder %s23, 0
      %p359 = por %p357, %p358
      %p360 = scmp.ne.s32.totalorder %s349, %s352
      %p361 = scmp.eq.s32.totalorder %s28, 3
      %p362 = por %p360, %p361
      %p363 = scmp.ne.s32.totalorder %s352, %s353
      %p364 = scmp.eq.s32.totalorder %s28, 0
      %p365 = por %p363, %p364
      %p366 = scmp.ne.s32.totalorder %s352, %s353
      %p367 = scmp.eq.s32.totalorder %s29, 3
      %p368 = por %p366, %p367
      %p370 = scmp.ne.s32.totalorder %s353, %s369
      %p371 = scmp.eq.s32.totalorder %s29, 0
      %p372 = por %p370, %p371
      %p373 = scmp.le.s32.totalorder 1, %s23
      %p374 = scmp.lt.s32.totalorder %s23, 5
      %p375 = pnand %p373, %p374
      %p376 = pneg %p375
      // Predicated region
      $region9: #{tag_value_forward.2} parent=5 // pred_check
        _
      $region10: #{tag_value_forward.2} parent=5 // pred_check_branch
        %378 = sbr.rel (%p375) target = $region12
      $region11: #{tag_value_forward.2} parent=5 // pred_region
        %s379 = ssub.s32 %s23, 1
        // Predicated region
        $region13: #{tag_value_forward.2} parent=11 // pred_check
          %p380 = pneg %p108
        $region14: #{tag_value_forward.2} parent=11 // pred_check_branch
          %382 = sbr.rel (%p380) target = $region16
        $region15: #{tag_value_forward.2} parent=11 // pred_region
          %s384 = ssub.s32 6144, 6144
          %385 = vsyncadd [#allocation4], %s384
          %s386 = sshll.u32 [#allocation3], 4
          %s387 = int_to_ptr.vmem [resolvable:$true] %s386
          %392 = dma.hbm_to_vmem [thread:$0]  %s2, 6144, %s387, [#allocation4], 384, 384, 24
        $region16: #{tag_value_forward.2} parent=11 // pred_fallthru
          _
        // Predicated region
        $region17: #{tag_value_forward.2} parent=11 // pred_check
          %p393 = pneg %p129
        $region18: #{tag_value_forward.2} parent=11 // pred_check_branch
          %395 = sbr.rel (%p393) target = $region20
        $region19: #{tag_value_forward.2} parent=11 // pred_region
          %s397 = ssub.s32 48, 48
          %398 = vsyncadd [#allocation6], %s397
          %s400 = sshll.u32 [#allocation5], 4
          %s401 = int_to_ptr.vmem [resolvable:$true] %s400
          %403 = dma.hbm_to_vmem [thread:$0]  %s3, 48, %s401, [#allocation6]
        $region20: #{tag_value_forward.2} parent=11 // pred_fallthru
          _
        // Predicated region
        $region21: #{tag_value_forward.2} parent=11 // pred_check
          %p404 = pneg %p150
        $region22: #{tag_value_forward.2} parent=11 // pred_check_branch
          %406 = sbr.rel (%p404) target = $region24
        $region23: #{tag_value_forward.2} parent=11 // pred_region
          _
        $region24: #{tag_value_forward.2} parent=11 // pred_fallthru
          _
        // Predicated region
        $region25: #{tag_value_forward.2} parent=11 // pred_check
          %p407 = pneg %p171
        $region26: #{tag_value_forward.2} parent=11 // pred_check_branch
          %409 = sbr.rel (%p407) target = $region28
        $region27: #{tag_value_forward.2} parent=11 // pred_region
          %s411 = ssub.s32 16, 16
          %412 = vsyncadd [#allocation6], %s411
          %s414 = sshll.u32 [#allocation7], 4
          %s415 = int_to_ptr.vmem [resolvable:$true] %s414
          %417 = dma.hbm_to_vmem [thread:$0]  %s5, 16, %s415, [#allocation6]
        $region28: #{tag_value_forward.2} parent=11 // pred_fallthru
          _
        // Predicated region
        $region29: #{tag_value_forward.2} parent=11 // pred_check
          %p418 = pneg %p192
        $region30: #{tag_value_forward.2} parent=11 // pred_check_branch
          %420 = sbr.rel (%p418) target = $region32
        $region31: #{tag_value_forward.2} parent=11 // pred_region
          _
        $region32: #{tag_value_forward.2} parent=11 // pred_fallthru
          _
        // Predicated region
        $region33: #{tag_value_forward.2} parent=11 // pred_check
          %p421 = pneg %p213
        $region34: #{tag_value_forward.2} parent=11 // pred_check_branch
          %423 = sbr.rel (%p421) target = $region36
        $region35: #{tag_value_forward.2} parent=11 // pred_region
          _
        $region36: #{tag_value_forward.2} parent=11 // pred_fallthru
          _
        // Predicated region
        $region37: #{tag_value_forward.2} parent=11 // pred_check
          %p424 = pneg %p234
        $region38: #{tag_value_forward.2} parent=11 // pred_check_branch
          %426 = sbr.rel (%p424) target = $region40
        $region39: #{tag_value_forward.2} parent=11 // pred_region
          %s428 = ssub.s32 4096, 4096
          %429 = vsyncadd [#allocation9], %s428
          %s430 = sshll.u32 [#allocation8], 4
          %s431 = int_to_ptr.vmem [resolvable:$true] %s430
          %436 = dma.hbm_to_vmem [thread:$0]  %s8, 4096, %s431, [#allocation9], 256, 256, 16
        $region40: #{tag_value_forward.2} parent=11 // pred_fallthru
          _
        // Predicated region
        $region41: #{tag_value_forward.2} parent=11 // pred_check
          %p437 = pneg %p255
        $region42: #{tag_value_forward.2} parent=11 // pred_check_branch
          %439 = sbr.rel (%p437) target = $region44
        $region43: #{tag_value_forward.2} parent=11 // pred_region
          _
        $region44: #{tag_value_forward.2} parent=11 // pred_fallthru
          _
        // Predicated region
        $region45: #{tag_value_forward.2} parent=11 // pred_check
          %p440 = pneg %p276
        $region46: #{tag_value_forward.2} parent=11 // pred_check_branch
          %442 = sbr.rel (%p440) target = $region48
        $region47: #{tag_value_forward.2} parent=11 // pred_region
          _
        $region48: #{tag_value_forward.2} parent=11 // pred_fallthru
          _
        // Predicated region
        $region49: #{tag_value_forward.2} parent=11 // pred_check
          %p443 = pneg %p297
        $region50: #{tag_value_forward.2} parent=11 // pred_check_branch
          %445 = sbr.rel (%p443) target = $region52
        $region51: #{tag_value_forward.2} parent=11 // pred_region
          %s447 = ssub.s32 16, 16
          %448 = vsyncadd [#allocation9], %s447
          %s450 = sshll.u32 [#allocation10], 4
          %s451 = int_to_ptr.vmem [resolvable:$true] %s450
          %453 = dma.hbm_to_vmem [thread:$0]  %s11, 16, %s451, [#allocation9]
        $region52: #{tag_value_forward.2} parent=11 // pred_fallthru
          _
        // Predicated region
        $region53: #{tag_value_forward.2} parent=11 // pred_check
          %p454 = pneg %p318
        $region54: #{tag_value_forward.2} parent=11 // pred_check_branch
          %456 = sbr.rel (%p454) target = $region56
        $region55: #{tag_value_forward.2} parent=11 // pred_region
          _
        $region56: #{tag_value_forward.2} parent=11 // pred_fallthru
          _
        // Predicated region
        $region57: #{tag_value_forward.2} parent=11 // pred_check
          %p457 = pneg %p339
        $region58: #{tag_value_forward.2} parent=11 // pred_check_branch
          %459 = sbr.rel (%p457) target = $region60
        $region59: #{tag_value_forward.2} parent=11 // pred_region
          _
        $region60: #{tag_value_forward.2} parent=11 // pred_fallthru
          _
      $region12: #{tag_value_forward.2} parent=5 // pred_fallthru
        _
      %p460 = scmp.lt.s32.totalorder %s23, 4
      // Predicated region
      $region61: #{tag_value_forward.2} parent=5 // pred_check
        %p461 = pneg %p460
      $region62: #{tag_value_forward.2} parent=5 // pred_check_branch
        %463 = sbr.rel (%p461) target = $region64
      $region63: #{tag_value_forward.2} parent=5 // pred_region
        // Predicated region
        $region65: #{tag_value_forward.2} parent=63 // pred_check
          %p464 = pneg %p55
        $region66: #{tag_value_forward.2} parent=63 // pred_check_branch
          %466 = sbr.rel (%p464) target = $region68
        $region67: #{tag_value_forward.2} parent=63 // pred_region
          %p467 = scmp.lt.s32.totalorder %s30, 1
          %s468 = scalar_select %p467, %s30, 1
          %s469 = smul.addr %s468, 8
          %s470 = scalar_lea.vmem %s0, %s469
        $region68: #{tag_value_forward.2} parent=63 // pred_fallthru
          _
        // Predicated region
        $region69: #{tag_value_forward.2} parent=63 // pred_check
          %p471 = pneg %p81
        $region70: #{tag_value_forward.2} parent=63 // pred_check_branch
          %473 = sbr.rel (%p471) target = $region72
        $region71: #{tag_value_forward.2} parent=63 // pred_region
          %p474 = scmp.lt.s32.totalorder %s30, 1
          %s475 = scalar_select %p474, %s30, 1
          %s476 = scalar_lea.vmem %s1, %s475
        $region72: #{tag_value_forward.2} parent=63 // pred_fallthru
          _
      $region64: #{tag_value_forward.2} parent=5 // pred_fallthru
        _
      %p477 = scmp.le.s32.totalorder 1, %s23
      %p478 = scmp.lt.s32.totalorder %s23, 5
      %p479 = pnand %p477, %p478
      %p480 = pneg %p479
      // Predicated region
      $region73: #{tag_value_forward.2} parent=5 // pred_check
        _
      $region74: #{tag_value_forward.2} parent=5 // pred_check_branch
        %482 = sbr.rel (%p479) target = $region76
      $region75: #{tag_value_forward.2} parent=5 // pred_region
        %s483 = ssub.s32 %s23, 1
        // Predicated region
        $region77: #{tag_value_forward.2} parent=75 // pred_check
          %p484 = pneg %p108
        $region78: #{tag_value_forward.2} parent=75 // pred_check_branch
          %486 = sbr.rel (%p484) target = $region80
        $region79: #{tag_value_forward.2} parent=75 // pred_region
          %487 = dma.done [#allocation4], 6144
        $region80: #{tag_value_forward.2} parent=75 // pred_fallthru
          _
        // Predicated region
        $region81: #{tag_value_forward.2} parent=75 // pred_check
          %p488 = pneg %p129
        $region82: #{tag_value_forward.2} parent=75 // pred_check_branch
          %490 = sbr.rel (%p488) target = $region84
        $region83: #{tag_value_forward.2} parent=75 // pred_region
          %491 = dma.done [#allocation6], 48
        $region84: #{tag_value_forward.2} parent=75 // pred_fallthru
          _
        // Predicated region
        $region85: #{tag_value_forward.2} parent=75 // pred_check
          %p492 = pneg %p171
        $region86: #{tag_value_forward.2} parent=75 // pred_check_branch
          %494 = sbr.rel (%p492) target = $region88
        $region87: #{tag_value_forward.2} parent=75 // pred_region
          %495 = dma.done [#allocation6], 16
        $region88: #{tag_value_forward.2} parent=75 // pred_fallthru
          _
        // Predicated region
        $region89: #{tag_value_forward.2} parent=75 // pred_check
          %p496 = pneg %p234
        $region90: #{tag_value_forward.2} parent=75 // pred_check_branch
          %498 = sbr.rel (%p496) target = $region92
        $region91: #{tag_value_forward.2} parent=75 // pred_region
          %499 = dma.done [#allocation9], 4096
        $region92: #{tag_value_forward.2} parent=75 // pred_fallthru
          _
        // Predicated region
        $region93: #{tag_value_forward.2} parent=75 // pred_check
          %p500 = pneg %p297
        $region94: #{tag_value_forward.2} parent=75 // pred_check_branch
          %502 = sbr.rel (%p500) target = $region96
        $region95: #{tag_value_forward.2} parent=75 // pred_region
          %503 = dma.done [#allocation9], 16
        $region96: #{tag_value_forward.2} parent=75 // pred_fallthru
          _
        %p504 = scmp.lt.s32.totalorder %s32, 1
        %s505 = scalar_select %p504, %s32, 1
        %s506 = smul.addr %s505, 8
        %s507 = scalar_lea.vmem %s0, %s506
        %p508 = pneg %p61
        %p509 = pneg %p58
        %p510 = scmp.lt.s32.totalorder %s32, 1
        %s511 = scalar_select %p510, %s32, 1
        %s512 = scalar_lea.vmem %s1, %s511
        %p513 = pneg %p87
        %p514 = pneg %p84
        %p515 = pneg %p108
        %p516 = pneg %p105
        %p517 = pneg %p129
        %p518 = pneg %p126
        %p519 = pneg %p150
        %p520 = pneg %p147
        %p521 = pneg %p171
        %p522 = pneg %p168
        %p523 = pneg %p192
        %p524 = pneg %p189
        %p525 = pneg %p213
        %p526 = pneg %p210
        %p527 = pneg %p234
        %p528 = pneg %p231
        %p529 = pneg %p255
        %p530 = pneg %p252
        %p531 = pneg %p276
        %p532 = pneg %p273
        %p533 = pneg %p297
        %p534 = pneg %p294
        %p535 = pneg %p318
        %p536 = pneg %p315
        %p537 = pneg %p339
        %p538 = pneg %p336
        %p539 = pneg %p365
        %p540 = pneg %p362
        %p541 = scmp.lt.s32.totalorder %s32, 1
        %s542 = scalar_select %p541, %s32, 1
        %s543 = smul.addr %s542, 8
        %s544 = scalar_lea.vmem %s14, %s543
        %p545 = scmp.lt.s32.totalorder %s32, 1
        %s546 = scalar_select %p545, %s32, 1
        %s547 = smul.addr %s546, 8
        %s548 = scalar_lea.vmem %s0, %s547
        %p549 = scmp.lt.s32.totalorder %s32, 1
        %s550 = scalar_select %p549, %s32, 1
        %s551 = scalar_lea.vmem %s1, %s550
        %p552 = scmp.lt.s32.totalorder %s32, 1
        %s553 = scalar_select %p552, %s32, 1
        %s554 = smul.addr %s553, 8
        %s555 = scalar_lea.vmem %s14, %s554
        %p556 = scmp.eq.s32.totalorder %s33, 0
        // Predicated region
        $region97: #{tag_value_forward.2} parent=75 // pred_check
          %p557 = pneg %p556
        $region98: #{tag_value_forward.2} parent=75 // pred_check_branch
          %559 = sbr.rel (%p557) target = $region100
        $region99: #{tag_value_forward.2} parent=75 // pred_region
          %v560 = vld [vmem:[%s548] sm:$0xff]
          %561 = vst [vmem:[#allocation2] sm:$0xff] %v560
        $region100: #{tag_value_forward.2} parent=75 // pred_fallthru
          _
        %v562 = vld [vmem:[#allocation2] sm:$0xff]
        %v563 = vld [vmem:[%s551] sm:$0x1]
        %v564 = vld [vmem:[#allocation3] sm:$0xff]
        %v565 = vld [vmem:[#allocation3 + $0x8] sm:$0xff]
        %v566 = vld [vmem:[#allocation3 + $0x10] sm:$0xff]
        %v567 = vld [vmem:[#allocation3 + $0x18] sm:$0xff]
        %v568 = vld [vmem:[#allocation3 + $0x20] sm:$0xff]
        %v569 = vld [vmem:[#allocation3 + $0x28] sm:$0xff]
        %v570 = vld [vmem:[#allocation3 + $0x30] sm:$0xff]
        %v571 = vld [vmem:[#allocation3 + $0x38] sm:$0xff]
        %v572 = vld [vmem:[#allocation3 + $0x40] sm:$0xff]
        %v573 = vld [vmem:[#allocation3 + $0x48] sm:$0xff]
        %v574 = vld [vmem:[#allocation3 + $0x50] sm:$0xff]
        %v575 = vld [vmem:[#allocation3 + $0x58] sm:$0xff]
        %v576 = vld [vmem:[#allocation3 + $0x60] sm:$0xff]
        %v577 = vld [vmem:[#allocation3 + $0x68] sm:$0xff]
        %v578 = vld [vmem:[#allocation3 + $0x70] sm:$0xff]
        %v579 = vld [vmem:[#allocation3 + $0x78] sm:$0xff]
        %v580 = vld [vmem:[#allocation3 + $0x80] sm:$0xff]
        %v581 = vld [vmem:[#allocation3 + $0x88] sm:$0xff]
        %v582 = vld [vmem:[#allocation3 + $0x90] sm:$0xff]
        %v583 = vld [vmem:[#allocation3 + $0x98] sm:$0xff]
        %v584 = vld [vmem:[#allocation3 + $0xa0] sm:$0xff]
        %v585 = vld [vmem:[#allocation3 + $0xa8] sm:$0xff]
        %v586 = vld [vmem:[#allocation3 + $0xb0] sm:$0xff]
        %v587 = vld [vmem:[#allocation3 + $0xb8] sm:$0xff]
        %v588 = vld [vmem:[#allocation3 + $0xc0] sm:$0xff]
        %v589 = vld [vmem:[#allocation3 + $0xc8] sm:$0xff]
        %v590 = vld [vmem:[#allocation3 + $0xd0] sm:$0xff]
        %v591 = vld [vmem:[#allocation3 + $0xd8] sm:$0xff]
        %v592 = vld [vmem:[#allocation3 + $0xe0] sm:$0xff]
        %v593 = vld [vmem:[#allocation3 + $0xe8] sm:$0xff]
        %v594 = vld [vmem:[#allocation3 + $0xf0] sm:$0xff]
        %v595 = vld [vmem:[#allocation3 + $0xf8] sm:$0xff]
        %v596 = vld [vmem:[#allocation3 + $0x100] sm:$0xff]
        %v597 = vld [vmem:[#allocation3 + $0x108] sm:$0xff]
        %v598 = vld [vmem:[#allocation3 + $0x110] sm:$0xff]
        %v599 = vld [vmem:[#allocation3 + $0x118] sm:$0xff]
        %v600 = vld [vmem:[#allocation3 + $0x120] sm:$0xff]
        %v601 = vld [vmem:[#allocation3 + $0x128] sm:$0xff]
        %v602 = vld [vmem:[#allocation3 + $0x130] sm:$0xff]
        %v603 = vld [vmem:[#allocation3 + $0x138] sm:$0xff]
        %v604 = vld [vmem:[#allocation3 + $0x140] sm:$0xff]
        %v605 = vld [vmem:[#allocation3 + $0x148] sm:$0xff]
        %v606 = vld [vmem:[#allocation3 + $0x150] sm:$0xff]
        %v607 = vld [vmem:[#allocation3 + $0x158] sm:$0xff]
        %v608 = vld [vmem:[#allocation3 + $0x160] sm:$0xff]
        %v609 = vld [vmem:[#allocation3 + $0x168] sm:$0xff]
        %v610 = vld [vmem:[#allocation3 + $0x170] sm:$0xff]
        %v611 = vld [vmem:[#allocation3 + $0x178] sm:$0xff]
        %v612 = vld [vmem:[#allocation5] sm:$0x7]
        %v614 = vlaneseq
        %v615 = vshrl.u32 %v614, 7
        %v616 = vsub.s32 0, %v615
        %v617 = vrot.slane %v612, %v616
        %v618 = vlaneseq
        %v619 = vshrl.u32 %v618, 7
        %v620 = vsub.s32 1, %v619
        %v621 = vrot.slane %v612, %v620
        %v622 = vlaneseq
        %v623 = vshrl.u32 %v622, 7
        %v624 = vsub.s32 2, %v623
        %v625 = vrot.slane %v612, %v624
        %629 = vmatprep.subr.mxu0 %v610
        %630 = vmatpush1.msra.mxu0 %v609
        %631 = vmatprep.subr.mxu0 %v607
        %632 = vmatpush1.msra.mxu0 %v606
        %633 = vmatprep.subr.mxu0 %v604
        %634 = vmatpush1.msra.mxu0 %v603
        %635 = vmatprep.subr.mxu0 %v601
        %636 = vmatpush1.msra.mxu0 %v600
        %637 = vmatprep.subr.mxu0 %v598
        %638 = vmatpush1.msra.mxu0 %v597
        %639 = vmatprep.subr.mxu0 %v595
        %640 = vmatpush1.msra.mxu0 %v594
        %641 = vmatprep.subr.mxu0 %v592
        %642 = vmatpush1.msra.mxu0 %v591
        %643 = vmatprep.subr.mxu0 %v589
        %644 = vmatpush1.msra.mxu0 %v588
        %645 = vmatprep.subr.mxu0 %v586
        %646 = vmatpush1.msra.mxu0 %v585
        %647 = vmatprep.subr.mxu0 %v583
        %648 = vmatpush1.msra.mxu0 %v582
        %649 = vmatprep.subr.mxu0 %v580
        %650 = vmatpush1.msra.mxu0 %v579
        %651 = vmatprep.subr.mxu0 %v577
        %652 = vmatpush1.msra.mxu0 %v576
        %653 = vmatprep.subr.mxu0 %v574
        %654 = vmatpush1.msra.mxu0 %v573
        %655 = vmatprep.subr.mxu0 %v571
        %656 = vmatpush1.msra.mxu0 %v570
        %657 = vmatprep.subr.mxu0 %v568
        %658 = vmatpush1.msra.mxu0 %v567
        %659 = vmatprep.subr.mxu0 %v565
        %660 = vmatpush1.msra.mxu0 %v564
        %661 = vmatprep.subr.mxu0 0.0
        %662 = vmatpush2.msra.mxu0 0.0
        %663 = vmatprep.subr.mxu0 0.0
        %664 = vmatpush2.msra.mxu0 0.0
        %665 = vmatprep.subr.mxu0 0.0
        %666 = vmatpush2.msra.mxu0 0.0
        %667 = vmatprep.subr.mxu0 0.0
        %668 = vmatpush2.msra.mxu0 0.0
        %669 = vmatprep.subr.mxu0 0.0
        %670 = vmatpush2.msra.mxu0 0.0
        %671 = vmatprep.subr.mxu0 0.0
        %672 = vmatpush2.msra.mxu0 0.0
        %673 = vmatprep.subr.mxu0 0.0
        %674 = vmatpush2.msra.mxu0 0.0
        %675 = vmatprep.subr.mxu0 0.0
        %676 = vmatpush2.msra.mxu0 0.0
        %677 = vmatprep.subr.mxu0 0.0
        %678 = vmatpush2.msra.mxu0 0.0
        %679 = vmatprep.subr.mxu0 0.0
        %680 = vmatpush2.msra.mxu0 0.0
        %681 = vmatprep.subr.mxu0 0.0
        %682 = vmatpush2.msra.mxu0 0.0
        %683 = vmatprep.subr.mxu0 0.0
        %684 = vmatpush2.msra.mxu0 0.0
        %685 = vmatprep.subr.mxu0 0.0
        %686 = vmatpush2.msra.mxu0 0.0
        %687 = vmatprep.subr.mxu0 0.0
        %688 = vmatpush2.msra.mxu0 0.0
        %689 = vmatprep.subr.mxu0 0.0
        %690 = vmatpush2.msra.mxu0 0.0
        %691 = vmatprep.subr.mxu0 0.0
        %692 = vmatpush2.msra.mxu0 0.0
        %693 = vmatprep.mubr.f32.mxu0 0.0
        %694 = vmatmul.mubr.f32.gmra.mxu0 %v562
        %v695 = vpop.f32.mrf.mxu0
        %v696 = vadd.f32 %v617, %v695
        %v697 = vpop.f32.mrf.mxu0
        %v698 = vadd.f32 %v621, %v697
        %699 = vdwg.mxu0
        %700 = vmatprep.subr.mxu0 0.0
        %701 = vmatpush1.msra.mxu0 %v611
        %702 = vmatprep.subr.mxu0 0.0
        %703 = vmatpush1.msra.mxu0 %v608
        %704 = vmatprep.subr.mxu0 0.0
        %705 = vmatpush1.msra.mxu0 %v605
        %706 = vmatprep.subr.mxu0 0.0
        %707 = vmatpush1.msra.mxu0 %v602
        %708 = vmatprep.subr.mxu0 0.0
        %709 = vmatpush1.msra.mxu0 %v599
        %710 = vmatprep.subr.mxu0 0.0
        %711 = vmatpush1.msra.mxu0 %v596
        %712 = vmatprep.subr.mxu0 0.0
        %713 = vmatpush1.msra.mxu0 %v593
        %714 = vmatprep.subr.mxu0 0.0
        %715 = vmatpush1.msra.mxu0 %v590
        %716 = vmatprep.subr.mxu0 0.0
        %717 = vmatpush1.msra.mxu0 %v587
        %718 = vmatprep.subr.mxu0 0.0
        %719 = vmatpush1.msra.mxu0 %v584
        %720 = vmatprep.subr.mxu0 0.0
        %721 = vmatpush1.msra.mxu0 %v581
        %722 = vmatprep.subr.mxu0 0.0
        %723 = vmatpush1.msra.mxu0 %v578
        %724 = vmatprep.subr.mxu0 0.0
        %725 = vmatpush1.msra.mxu0 %v575
        %726 = vmatprep.subr.mxu0 0.0
        %727 = vmatpush1.msra.mxu0 %v572
        %728 = vmatprep.subr.mxu0 0.0
        %729 = vmatpush1.msra.mxu0 %v569
        %730 = vmatprep.subr.mxu0 0.0
        %731 = vmatpush1.msra.mxu0 %v566
        %732 = vmatprep.subr.mxu0 0.0
        %733 = vmatpush2.msra.mxu0 0.0
        %734 = vmatprep.subr.mxu0 0.0
        %735 = vmatpush2.msra.mxu0 0.0
        %736 = vmatprep.subr.mxu0 0.0
        %737 = vmatpush2.msra.mxu0 0.0
        %738 = vmatprep.subr.mxu0 0.0
        %739 = vmatpush2.msra.mxu0 0.0
        %740 = vmatprep.subr.mxu0 0.0
        %741 = vmatpush2.msra.mxu0 0.0
        %742 = vmatprep.subr.mxu0 0.0
        %743 = vmatpush2.msra.mxu0 0.0
        %744 = vmatprep.subr.mxu0 0.0
        %745 = vmatpush2.msra.mxu0 0.0
        %746 = vmatprep.subr.mxu0 0.0
        %747 = vmatpush2.msra.mxu0 0.0
        %748 = vmatprep.subr.mxu0 0.0
        %749 = vmatpush2.msra.mxu0 0.0
        %750 = vmatprep.subr.mxu0 0.0
        %751 = vmatpush2.msra.mxu0 0.0
        %752 = vmatprep.subr.mxu0 0.0
        %753 = vmatpush2.msra.mxu0 0.0
        %754 = vmatprep.subr.mxu0 0.0
        %755 = vmatpush2.msra.mxu0 0.0
        %756 = vmatprep.subr.mxu0 0.0
        %757 = vmatpush2.msra.mxu0 0.0
        %758 = vmatprep.subr.mxu0 0.0
        %759 = vmatpush2.msra.mxu0 0.0
        %760 = vmatprep.subr.mxu0 0.0
        %761 = vmatpush2.msra.mxu0 0.0
        %762 = vmatprep.subr.mxu0 0.0
        %763 = vmatpush2.msra.mxu0 0.0
        %764 = vmatprep.mubr.f32.mxu0 0.0
        %765 = vmatmul.mubr.f32.gmra.mxu0 %v562
        %v766 = vpop.f32.mrf.mxu0
        %v767 = vadd.f32 %v625, %v766
        %v768 = vpop.f32.mrf.mxu0
        %769 = vdwg.mxu0
        %v771 = vlaneseq
        %v772 = vshrl.u32 %v771, 7
        %v773 = vsub.s32 0, %v772
        %v774 = vrot.slane %v563, %v773
        %vm776 = vcmask 261120
        %v778 = vsel %vm776, %v696, 0
        %v781 = vsel %vm776, %v698, 0
        %783 = vmatprep.subr.mxu0 0.0
        %784 = vmatpush1.xpose.msra.mxu0 0.0
        %785 = vmatprep.subr.mxu0 0.0
        %786 = vmatpush1.xpose.msra.mxu0 0.0
        %787 = vmatprep.subr.mxu0 0.0
        %788 = vmatpush1.xpose.msra.mxu0 0.0
        %789 = vmatprep.subr.mxu0 0.0
        %790 = vmatpush1.xpose.msra.mxu0 0.0
        %791 = vmatprep.subr.mxu0 0.0
        %792 = vmatpush1.xpose.msra.mxu0 0.0
        %793 = vmatprep.subr.mxu0 0.0
        %794 = vmatpush1.xpose.msra.mxu0 0.0
        %795 = vmatprep.subr.mxu0 0.0
        %796 = vmatpush1.xpose.msra.mxu0 0.0
        %797 = vmatprep.subr.mxu0 0.0
        %798 = vmatpush1.xpose.msra.mxu0 0.0
        %799 = vmatprep.subr.mxu0 0.0
        %800 = vmatpush1.xpose.msra.mxu0 0.0
        %801 = vmatprep.subr.mxu0 0.0
        %802 = vmatpush1.xpose.msra.mxu0 0.0
        %803 = vmatprep.subr.mxu0 0.0
        %804 = vmatpush1.xpose.msra.mxu0 0.0
        %805 = vmatprep.subr.mxu0 0.0
        %806 = vmatpush1.xpose.msra.mxu0 0.0
        %807 = vmatprep.subr.mxu0 0.0
        %808 = vmatpush1.xpose.msra.mxu0 0.0
        %809 = vmatprep.subr.mxu0 0.0
        %810 = vmatpush1.xpose.msra.mxu0 0.0
        %811 = vmatprep.subr.mxu0 0.0
        %812 = vmatpush1.xpose.msra.mxu0 0.0
        %813 = vmatprep.subr.mxu0 0.0
        %814 = vmatpush1.xpose.msra.mxu0 %v781
        %815 = vmatprep.subr.mxu0 0.0
        %816 = vmatpush2.xpose.msra.mxu0 0.0
        %817 = vmatprep.subr.mxu0 0.0
        %818 = vmatpush2.xpose.msra.mxu0 0.0
        %819 = vmatprep.subr.mxu0 0.0
        %820 = vmatpush2.xpose.msra.mxu0 0.0
        %821 = vmatprep.subr.mxu0 0.0
        %822 = vmatpush2.xpose.msra.mxu0 0.0
        %823 = vmatprep.subr.mxu0 0.0
        %824 = vmatpush2.xpose.msra.mxu0 0.0
        %825 = vmatprep.subr.mxu0 0.0
        %826 = vmatpush2.xpose.msra.mxu0 0.0
        %827 = vmatprep.subr.mxu0 0.0
        %828 = vmatpush2.xpose.msra.mxu0 0.0
        %829 = vmatprep.subr.mxu0 0.0
        %830 = vmatpush2.xpose.msra.mxu0 0.0
        %831 = vmatprep.subr.mxu0 0.0
        %832 = vmatpush2.xpose.msra.mxu0 0.0
        %833 = vmatprep.subr.mxu0 0.0
        %834 = vmatpush2.xpose.msra.mxu0 0.0
        %835 = vmatprep.subr.mxu0 0.0
        %836 = vmatpush2.xpose.msra.mxu0 0.0
        %837 = vmatprep.subr.mxu0 0.0
        %838 = vmatpush2.xpose.msra.mxu0 0.0
        %839 = vmatprep.subr.mxu0 0.0
        %840 = vmatpush2.xpose.msra.mxu0 0.0
        %841 = vmatprep.subr.mxu0 0.0
        %842 = vmatpush2.xpose.msra.mxu0 0.0
        %843 = vmatprep.subr.mxu0 0.0
        %844 = vmatpush2.xpose.msra.mxu0 0.0
        %845 = vmatprep.subr.mxu0 0.0
        %846 = vmatpush2.xpose.msra.mxu0 0.0
        %847 = vmatprep.mubr.f32.mxu0 0.0
        %848 = vmatmul.mubr.f32.gmra.mxu0 %v778
        %v849 = vpop.f32.mrf.mxu0
        %v850 = vadd.f32 %v774, %v849
        %v851 = vpop.f32.mrf.mxu0
        %852 = vdwg.mxu0
        %vm853 = vcmask 64512
        %v854 = vsel %vm853, %v850, -inf
        %855 = vmax.xlane.f32.xlu0 %v854
        %v856 = vpop.xlane.xlu0 %855
        %v857 = vsub.f32 %v850, %v856
        %v858 = vmul.f32 %v857, 1.442695
        %v859 = vpow.pop %v858
        %v860 = vsel %vm853, %v859, 0.0
        %861 = vadd.xlane.f32.xlu0 %v860
        %v862 = vpop.xlane.xlu0 %861
        %v863 = vrcp.pop %v862
        %v864 = vmul.f32 %v859, %v863
        %v866 = vsel %vm853, %v864, 0
        %868 = vmatprep.subr.mxu0 0.0
        %869 = vmatpush1.msra.mxu0 0.0
        %870 = vmatprep.subr.mxu0 0.0
        %871 = vmatpush1.msra.mxu0 0.0
        %872 = vmatprep.subr.mxu0 0.0
        %873 = vmatpush1.msra.mxu0 0.0
        %874 = vmatprep.subr.mxu0 0.0
        %875 = vmatpush1.msra.mxu0 0.0
        %876 = vmatprep.subr.mxu0 0.0
        %877 = vmatpush1.msra.mxu0 0.0
        %878 = vmatprep.subr.mxu0 0.0
        %879 = vmatpush1.msra.mxu0 0.0
        %880 = vmatprep.subr.mxu0 0.0
        %881 = vmatpush1.msra.mxu0 0.0
        %882 = vmatprep.subr.mxu0 0.0
        %883 = vmatpush1.msra.mxu0 0.0
        %884 = vmatprep.subr.mxu0 0.0
        %885 = vmatpush1.msra.mxu0 0.0
        %886 = vmatprep.subr.mxu0 0.0
        %887 = vmatpush1.msra.mxu0 0.0
        %888 = vmatprep.subr.mxu0 0.0
        %889 = vmatpush1.msra.mxu0 0.0
        %890 = vmatprep.subr.mxu0 0.0
        %891 = vmatpush1.msra.mxu0 0.0
        %892 = vmatprep.subr.mxu0 0.0
        %893 = vmatpush1.msra.mxu0 0.0
        %894 = vmatprep.subr.mxu0 0.0
        %895 = vmatpush1.msra.mxu0 0.0
        %896 = vmatprep.subr.mxu0 0.0
        %897 = vmatpush1.msra.mxu0 0.0
        %898 = vmatprep.subr.mxu0 0.0
        %899 = vmatpush1.msra.mxu0 %v767
        %900 = vmatprep.subr.mxu0 0.0
        %901 = vmatpush2.msra.mxu0 0.0
        %902 = vmatprep.subr.mxu0 0.0
        %903 = vmatpush2.msra.mxu0 0.0
        %904 = vmatprep.subr.mxu0 0.0
        %905 = vmatpush2.msra.mxu0 0.0
        %906 = vmatprep.subr.mxu0 0.0
        %907 = vmatpush2.msra.mxu0 0.0
        %908 = vmatprep.subr.mxu0 0.0
        %909 = vmatpush2.msra.mxu0 0.0
        %910 = vmatprep.subr.mxu0 0.0
        %911 = vmatpush2.msra.mxu0 0.0
        %912 = vmatprep.subr.mxu0 0.0
        %913 = vmatpush2.msra.mxu0 0.0
        %914 = vmatprep.subr.mxu0 0.0
        %915 = vmatpush2.msra.mxu0 0.0
        %916 = vmatprep.subr.mxu0 0.0
        %917 = vmatpush2.msra.mxu0 0.0
        %918 = vmatprep.subr.mxu0 0.0
        %919 = vmatpush2.msra.mxu0 0.0
        %920 = vmatprep.subr.mxu0 0.0
        %921 = vmatpush2.msra.mxu0 0.0
        %922 = vmatprep.subr.mxu0 0.0
        %923 = vmatpush2.msra.mxu0 0.0
        %924 = vmatprep.subr.mxu0 0.0
        %925 = vmatpush2.msra.mxu0 0.0
        %926 = vmatprep.subr.mxu0 0.0
        %927 = vmatpush2.msra.mxu0 0.0
        %928 = vmatprep.subr.mxu0 0.0
        %929 = vmatpush2.msra.mxu0 0.0
        %930 = vmatprep.subr.mxu0 0.0
        %931 = vmatpush2.msra.mxu0 0.0
        %932 = vmatprep.mubr.f32.mxu0 0.0
        %933 = vmatmul.mubr.f32.gmra.mxu0 %v866
        %v934 = vpop.f32.mrf.mxu0
        %v935 = vadd.f32 0.0, %v934
        %v936 = vpop.f32.mrf.mxu0
        %937 = vdwg.mxu0
        %938 = vrot.lane.b32.xlu0 %v696, 96
        %v939 = vpop.permute.xlu0 %938
        %940 = vrot.lane.b32.xlu0 %v698, 96
        %v941 = vpop.permute.xlu0 %940
        %v942 = vsel %vm776, %v939, 0
        %v944 = vsel %vm776, %v941, 0
        %946 = vmatprep.subr.mxu0 0.0
        %947 = vmatpush1.xpose.msra.mxu0 0.0
        %948 = vmatprep.subr.mxu0 0.0
        %949 = vmatpush1.xpose.msra.mxu0 0.0
        %950 = vmatprep.subr.mxu0 0.0
        %951 = vmatpush1.xpose.msra.mxu0 0.0
        %952 = vmatprep.subr.mxu0 0.0
        %953 = vmatpush1.xpose.msra.mxu0 0.0
        %954 = vmatprep.subr.mxu0 0.0
        %955 = vmatpush1.xpose.msra.mxu0 0.0
        %956 = vmatprep.subr.mxu0 0.0
        %957 = vmatpush1.xpose.msra.mxu0 0.0
        %958 = vmatprep.subr.mxu0 0.0
        %959 = vmatpush1.xpose.msra.mxu0 0.0
        %960 = vmatprep.subr.mxu0 0.0
        %961 = vmatpush1.xpose.msra.mxu0 0.0
        %962 = vmatprep.subr.mxu0 0.0
        %963 = vmatpush1.xpose.msra.mxu0 0.0
        %964 = vmatprep.subr.mxu0 0.0
        %965 = vmatpush1.xpose.msra.mxu0 0.0
        %966 = vmatprep.subr.mxu0 0.0
        %967 = vmatpush1.xpose.msra.mxu0 0.0
        %968 = vmatprep.subr.mxu0 0.0
        %969 = vmatpush1.xpose.msra.mxu0 0.0
        %970 = vmatprep.subr.mxu0 0.0
        %971 = vmatpush1.xpose.msra.mxu0 0.0
        %972 = vmatprep.subr.mxu0 0.0
        %973 = vmatpush1.xpose.msra.mxu0 0.0
        %974 = vmatprep.subr.mxu0 0.0
        %975 = vmatpush1.xpose.msra.mxu0 0.0
        %976 = vmatprep.subr.mxu0 0.0
        %977 = vmatpush1.xpose.msra.mxu0 %v944
        %978 = vmatprep.subr.mxu0 0.0
        %979 = vmatpush2.xpose.msra.mxu0 0.0
        %980 = vmatprep.subr.mxu0 0.0
        %981 = vmatpush2.xpose.msra.mxu0 0.0
        %982 = vmatprep.subr.mxu0 0.0
        %983 = vmatpush2.xpose.msra.mxu0 0.0
        %984 = vmatprep.subr.mxu0 0.0
        %985 = vmatpush2.xpose.msra.mxu0 0.0
        %986 = vmatprep.subr.mxu0 0.0
        %987 = vmatpush2.xpose.msra.mxu0 0.0
        %988 = vmatprep.subr.mxu0 0.0
        %989 = vmatpush2.xpose.msra.mxu0 0.0
        %990 = vmatprep.subr.mxu0 0.0
        %991 = vmatpush2.xpose.msra.mxu0 0.0
        %992 = vmatprep.subr.mxu0 0.0
        %993 = vmatpush2.xpose.msra.mxu0 0.0
        %994 = vmatprep.subr.mxu0 0.0
        %995 = vmatpush2.xpose.msra.mxu0 0.0
        %996 = vmatprep.subr.mxu0 0.0
        %997 = vmatpush2.xpose.msra.mxu0 0.0
        %998 = vmatprep.subr.mxu0 0.0
        %999 = vmatpush2.xpose.msra.mxu0 0.0
        %1000 = vmatprep.subr.mxu0 0.0
        %1001 = vmatpush2.xpose.msra.mxu0 0.0
        %1002 = vmatprep.subr.mxu0 0.0
        %1003 = vmatpush2.xpose.msra.mxu0 0.0
        %1004 = vmatprep.subr.mxu0 0.0
        %1005 = vmatpush2.xpose.msra.mxu0 0.0
        %1006 = vmatprep.subr.mxu0 0.0
        %1007 = vmatpush2.xpose.msra.mxu0 0.0
        %1008 = vmatprep.subr.mxu0 0.0
        %1009 = vmatpush2.xpose.msra.mxu0 0.0
        %1010 = vmatprep.mubr.f32.mxu0 0.0
        %1011 = vmatmul.mubr.f32.gmra.mxu0 %v942
        %v1012 = vpop.f32.mrf.mxu0
        %v1013 = vadd.f32 %v774, %v1012
        %v1014 = vpop.f32.mrf.mxu0
        %1015 = vdwg.mxu0
        %v1016 = vsel %vm853, %v1013, -inf
        %1017 = vmax.xlane.f32.xlu0 %v1016
        %v1018 = vpop.xlane.xlu0 %1017
        %v1019 = vsub.f32 %v1013, %v1018
        %v1020 = vmul.f32 %v1019, 1.442695
        %v1021 = vpow.pop %v1020
        %v1022 = vsel %vm853, %v1021, 0.0
        %1023 = vadd.xlane.f32.xlu0 %v1022
        %v1024 = vpop.xlane.xlu0 %1023
        %v1025 = vrcp.pop %v1024
        %v1026 = vmul.f32 %v1021, %v1025
        %1028 = vrot.lane.b32.xlu0 %v767, 96
        %v1029 = vpop.permute.xlu0 %1028
        %v1032 = vsel %vm853, %v1026, 0
        %1034 = vmatprep.subr.mxu0 0.0
        %1035 = vmatpush1.msra.mxu0 0.0
        %1036 = vmatprep.subr.mxu0 0.0
        %1037 = vmatpush1.msra.mxu0 0.0
        %1038 = vmatprep.subr.mxu0 0.0
        %1039 = vmatpush1.msra.mxu0 0.0
        %1040 = vmatprep.subr.mxu0 0.0
        %1041 = vmatpush1.msra.mxu0 0.0
        %1042 = vmatprep.subr.mxu0 0.0
        %1043 = vmatpush1.msra.mxu0 0.0
        %1044 = vmatprep.subr.mxu0 0.0
        %1045 = vmatpush1.msra.mxu0 0.0
        %1046 = vmatprep.subr.mxu0 0.0
        %1047 = vmatpush1.msra.mxu0 0.0
        %1048 = vmatprep.subr.mxu0 0.0
        %1049 = vmatpush1.msra.mxu0 0.0
        %1050 = vmatprep.subr.mxu0 0.0
        %1051 = vmatpush1.msra.mxu0 0.0
        %1052 = vmatprep.subr.mxu0 0.0
        %1053 = vmatpush1.msra.mxu0 0.0
        %1054 = vmatprep.subr.mxu0 0.0
        %1055 = vmatpush1.msra.mxu0 0.0
        %1056 = vmatprep.subr.mxu0 0.0
        %1057 = vmatpush1.msra.mxu0 0.0
        %1058 = vmatprep.subr.mxu0 0.0
        %1059 = vmatpush1.msra.mxu0 0.0
        %1060 = vmatprep.subr.mxu0 0.0
        %1061 = vmatpush1.msra.mxu0 0.0
        %1062 = vmatprep.subr.mxu0 0.0
        %1063 = vmatpush1.msra.mxu0 0.0
        %1064 = vmatprep.subr.mxu0 0.0
        %1065 = vmatpush1.msra.mxu0 %v1029
        %1066 = vmatprep.subr.mxu0 0.0
        %1067 = vmatpush2.msra.mxu0 0.0
        %1068 = vmatprep.subr.mxu0 0.0
        %1069 = vmatpush2.msra.mxu0 0.0
        %1070 = vmatprep.subr.mxu0 0.0
        %1071 = vmatpush2.msra.mxu0 0.0
        %1072 = vmatprep.subr.mxu0 0.0
        %1073 = vmatpush2.msra.mxu0 0.0
        %1074 = vmatprep.subr.mxu0 0.0
        %1075 = vmatpush2.msra.mxu0 0.0
        %1076 = vmatprep.subr.mxu0 0.0
        %1077 = vmatpush2.msra.mxu0 0.0
        %1078 = vmatprep.subr.mxu0 0.0
        %1079 = vmatpush2.msra.mxu0 0.0
        %1080 = vmatprep.subr.mxu0 0.0
        %1081 = vmatpush2.msra.mxu0 0.0
        %1082 = vmatprep.subr.mxu0 0.0
        %1083 = vmatpush2.msra.mxu0 0.0
        %1084 = vmatprep.subr.mxu0 0.0
        %1085 = vmatpush2.msra.mxu0 0.0
        %1086 = vmatprep.subr.mxu0 0.0
        %1087 = vmatpush2.msra.mxu0 0.0
        %1088 = vmatprep.subr.mxu0 0.0
        %1089 = vmatpush2.msra.mxu0 0.0
        %1090 = vmatprep.subr.mxu0 0.0
        %1091 = vmatpush2.msra.mxu0 0.0
        %1092 = vmatprep.subr.mxu0 0.0
        %1093 = vmatpush2.msra.mxu0 0.0
        %1094 = vmatprep.subr.mxu0 0.0
        %1095 = vmatpush2.msra.mxu0 0.0
        %1096 = vmatprep.subr.mxu0 0.0
        %1097 = vmatpush2.msra.mxu0 0.0
        %1098 = vmatprep.mubr.f32.mxu0 0.0
        %1099 = vmatmul.mubr.f32.gmra.mxu0 %v1032
        %v1100 = vpop.f32.mrf.mxu0
        %v1101 = vadd.f32 0.0, %v1100
        %v1102 = vpop.f32.mrf.mxu0
        %1103 = vdwg.mxu0
        %1104 = vrot.lane.b32.xlu0 %v696, 64
        %v1105 = vpop.permute.xlu0 %1104
        %1106 = vrot.lane.b32.xlu0 %v698, 64
        %v1107 = vpop.permute.xlu0 %1106
        %v1108 = vsel %vm776, %v1105, 0
        %v1110 = vsel %vm776, %v1107, 0
        %1112 = vmatprep.subr.mxu0 0.0
        %1113 = vmatpush1.xpose.msra.mxu0 0.0
        %1114 = vmatprep.subr.mxu0 0.0
        %1115 = vmatpush1.xpose.msra.mxu0 0.0
        %1116 = vmatprep.subr.mxu0 0.0
        %1117 = vmatpush1.xpose.msra.mxu0 0.0
        %1118 = vmatprep.subr.mxu0 0.0
        %1119 = vmatpush1.xpose.msra.mxu0 0.0
        %1120 = vmatprep.subr.mxu0 0.0
        %1121 = vmatpush1.xpose.msra.mxu0 0.0
        %1122 = vmatprep.subr.mxu0 0.0
        %1123 = vmatpush1.xpose.msra.mxu0 0.0
        %1124 = vmatprep.subr.mxu0 0.0
        %1125 = vmatpush1.xpose.msra.mxu0 0.0
        %1126 = vmatprep.subr.mxu0 0.0
        %1127 = vmatpush1.xpose.msra.mxu0 0.0
        %1128 = vmatprep.subr.mxu0 0.0
        %1129 = vmatpush1.xpose.msra.mxu0 0.0
        %1130 = vmatprep.subr.mxu0 0.0
        %1131 = vmatpush1.xpose.msra.mxu0 0.0
        %1132 = vmatprep.subr.mxu0 0.0
        %1133 = vmatpush1.xpose.msra.mxu0 0.0
        %1134 = vmatprep.subr.mxu0 0.0
        %1135 = vmatpush1.xpose.msra.mxu0 0.0
        %1136 = vmatprep.subr.mxu0 0.0
        %1137 = vmatpush1.xpose.msra.mxu0 0.0
        %1138 = vmatprep.subr.mxu0 0.0
        %1139 = vmatpush1.xpose.msra.mxu0 0.0
        %1140 = vmatprep.subr.mxu0 0.0
        %1141 = vmatpush1.xpose.msra.mxu0 0.0
        %1142 = vmatprep.subr.mxu0 0.0
        %1143 = vmatpush1.xpose.msra.mxu0 %v1110
        %1144 = vmatprep.subr.mxu0 0.0
        %1145 = vmatpush2.xpose.msra.mxu0 0.0
        %1146 = vmatprep.subr.mxu0 0.0
        %1147 = vmatpush2.xpose.msra.mxu0 0.0
        %1148 = vmatprep.subr.mxu0 0.0
        %1149 = vmatpush2.xpose.msra.mxu0 0.0
        %1150 = vmatprep.subr.mxu0 0.0
        %1151 = vmatpush2.xpose.msra.mxu0 0.0
        %1152 = vmatprep.subr.mxu0 0.0
        %1153 = vmatpush2.xpose.msra.mxu0 0.0
        %1154 = vmatprep.subr.mxu0 0.0
        %1155 = vmatpush2.xpose.msra.mxu0 0.0
        %1156 = vmatprep.subr.mxu0 0.0
        %1157 = vmatpush2.xpose.msra.mxu0 0.0
        %1158 = vmatprep.subr.mxu0 0.0
        %1159 = vmatpush2.xpose.msra.mxu0 0.0
        %1160 = vmatprep.subr.mxu0 0.0
        %1161 = vmatpush2.xpose.msra.mxu0 0.0
        %1162 = vmatprep.subr.mxu0 0.0
        %1163 = vmatpush2.xpose.msra.mxu0 0.0
        %1164 = vmatprep.subr.mxu0 0.0
        %1165 = vmatpush2.xpose.msra.mxu0 0.0
        %1166 = vmatprep.subr.mxu0 0.0
        %1167 = vmatpush2.xpose.msra.mxu0 0.0
        %1168 = vmatprep.subr.mxu0 0.0
        %1169 = vmatpush2.xpose.msra.mxu0 0.0
        %1170 = vmatprep.subr.mxu0 0.0
        %1171 = vmatpush2.xpose.msra.mxu0 0.0
        %1172 = vmatprep.subr.mxu0 0.0
        %1173 = vmatpush2.xpose.msra.mxu0 0.0
        %1174 = vmatprep.subr.mxu0 0.0
        %1175 = vmatpush2.xpose.msra.mxu0 0.0
        %1176 = vmatprep.mubr.f32.mxu0 0.0
        %1177 = vmatmul.mubr.f32.gmra.mxu0 %v1108
        %v1178 = vpop.f32.mrf.mxu0
        %v1179 = vadd.f32 %v774, %v1178
        %v1180 = vpop.f32.mrf.mxu0
        %1181 = vdwg.mxu0
        %v1182 = vsel %vm853, %v1179, -inf
        %1183 = vmax.xlane.f32.xlu0 %v1182
        %v1184 = vpop.xlane.xlu0 %1183
        %v1185 = vsub.f32 %v1179, %v1184
        %v1186 = vmul.f32 %v1185, 1.442695
        %v1187 = vpow.pop %v1186
        %v1188 = vsel %vm853, %v1187, 0.0
        %1189 = vadd.xlane.f32.xlu0 %v1188
        %v1190 = vpop.xlane.xlu0 %1189
        %v1191 = vrcp.pop %v1190
        %v1192 = vmul.f32 %v1187, %v1191
        %1193 = vrot.lane.b32.xlu0 %v767, 64
        %v1194 = vpop.permute.xlu0 %1193
        %v1197 = vsel %vm853, %v1192, 0
        %1199 = vmatprep.subr.mxu0 0.0
        %1200 = vmatpush1.msra.mxu0 0.0
        %1201 = vmatprep.subr.mxu0 0.0
        %1202 = vmatpush1.msra.mxu0 0.0
        %1203 = vmatprep.subr.mxu0 0.0
        %1204 = vmatpush1.msra.mxu0 0.0
        %1205 = vmatprep.subr.mxu0 0.0
        %1206 = vmatpush1.msra.mxu0 0.0
        %1207 = vmatprep.subr.mxu0 0.0
        %1208 = vmatpush1.msra.mxu0 0.0
        %1209 = vmatprep.subr.mxu0 0.0
        %1210 = vmatpush1.msra.mxu0 0.0
        %1211 = vmatprep.subr.mxu0 0.0
        %1212 = vmatpush1.msra.mxu0 0.0
        %1213 = vmatprep.subr.mxu0 0.0
        %1214 = vmatpush1.msra.mxu0 0.0
        %1215 = vmatprep.subr.mxu0 0.0
        %1216 = vmatpush1.msra.mxu0 0.0
        %1217 = vmatprep.subr.mxu0 0.0
        %1218 = vmatpush1.msra.mxu0 0.0
        %1219 = vmatprep.subr.mxu0 0.0
        %1220 = vmatpush1.msra.mxu0 0.0
        %1221 = vmatprep.subr.mxu0 0.0
        %1222 = vmatpush1.msra.mxu0 0.0
        %1223 = vmatprep.subr.mxu0 0.0
        %1224 = vmatpush1.msra.mxu0 0.0
        %1225 = vmatprep.subr.mxu0 0.0
        %1226 = vmatpush1.msra.mxu0 0.0
        %1227 = vmatprep.subr.mxu0 0.0
        %1228 = vmatpush1.msra.mxu0 0.0
        %1229 = vmatprep.subr.mxu0 0.0
        %1230 = vmatpush1.msra.mxu0 %v1194
        %1231 = vmatprep.subr.mxu0 0.0
        %1232 = vmatpush2.msra.mxu0 0.0
        %1233 = vmatprep.subr.mxu0 0.0
        %1234 = vmatpush2.msra.mxu0 0.0
        %1235 = vmatprep.subr.mxu0 0.0
        %1236 = vmatpush2.msra.mxu0 0.0
        %1237 = vmatprep.subr.mxu0 0.0
        %1238 = vmatpush2.msra.mxu0 0.0
        %1239 = vmatprep.subr.mxu0 0.0
        %1240 = vmatpush2.msra.mxu0 0.0
        %1241 = vmatprep.subr.mxu0 0.0
        %1242 = vmatpush2.msra.mxu0 0.0
        %1243 = vmatprep.subr.mxu0 0.0
        %1244 = vmatpush2.msra.mxu0 0.0
        %1245 = vmatprep.subr.mxu0 0.0
        %1246 = vmatpush2.msra.mxu0 0.0
        %1247 = vmatprep.subr.mxu0 0.0
        %1248 = vmatpush2.msra.mxu0 0.0
        %1249 = vmatprep.subr.mxu0 0.0
        %1250 = vmatpush2.msra.mxu0 0.0
        %1251 = vmatprep.subr.mxu0 0.0
        %1252 = vmatpush2.msra.mxu0 0.0
        %1253 = vmatprep.subr.mxu0 0.0
        %1254 = vmatpush2.msra.mxu0 0.0
        %1255 = vmatprep.subr.mxu0 0.0
        %1256 = vmatpush2.msra.mxu0 0.0
        %1257 = vmatprep.subr.mxu0 0.0
        %1258 = vmatpush2.msra.mxu0 0.0
        %1259 = vmatprep.subr.mxu0 0.0
        %1260 = vmatpush2.msra.mxu0 0.0
        %1261 = vmatprep.subr.mxu0 0.0
        %1262 = vmatpush2.msra.mxu0 0.0
        %1263 = vmatprep.mubr.f32.mxu0 0.0
        %1264 = vmatmul.mubr.f32.gmra.mxu0 %v1197
        %v1265 = vpop.f32.mrf.mxu0
        %v1266 = vadd.f32 0.0, %v1265
        %v1267 = vpop.f32.mrf.mxu0
        %1268 = vdwg.mxu0
        %1269 = vrot.lane.b32.xlu0 %v696, 32
        %v1270 = vpop.permute.xlu0 %1269
        %1271 = vrot.lane.b32.xlu0 %v698, 32
        %v1272 = vpop.permute.xlu0 %1271
        %v1273 = vsel %vm776, %v1270, 0
        %v1275 = vsel %vm776, %v1272, 0
        %1277 = vmatprep.subr.mxu0 0.0
        %1278 = vmatpush1.xpose.msra.mxu0 0.0
        %1279 = vmatprep.subr.mxu0 0.0
        %1280 = vmatpush1.xpose.msra.mxu0 0.0
        %1281 = vmatprep.subr.mxu0 0.0
        %1282 = vmatpush1.xpose.msra.mxu0 0.0
        %1283 = vmatprep.subr.mxu0 0.0
        %1284 = vmatpush1.xpose.msra.mxu0 0.0
        %1285 = vmatprep.subr.mxu0 0.0
        %1286 = vmatpush1.xpose.msra.mxu0 0.0
        %1287 = vmatprep.subr.mxu0 0.0
        %1288 = vmatpush1.xpose.msra.mxu0 0.0
        %1289 = vmatprep.subr.mxu0 0.0
        %1290 = vmatpush1.xpose.msra.mxu0 0.0
        %1291 = vmatprep.subr.mxu0 0.0
        %1292 = vmatpush1.xpose.msra.mxu0 0.0
        %1293 = vmatprep.subr.mxu0 0.0
        %1294 = vmatpush1.xpose.msra.mxu0 0.0
        %1295 = vmatprep.subr.mxu0 0.0
        %1296 = vmatpush1.xpose.msra.mxu0 0.0
        %1297 = vmatprep.subr.mxu0 0.0
        %1298 = vmatpush1.xpose.msra.mxu0 0.0
        %1299 = vmatprep.subr.mxu0 0.0
        %1300 = vmatpush1.xpose.msra.mxu0 0.0
        %1301 = vmatprep.subr.mxu0 0.0
        %1302 = vmatpush1.xpose.msra.mxu0 0.0
        %1303 = vmatprep.subr.mxu0 0.0
        %1304 = vmatpush1.xpose.msra.mxu0 0.0
        %1305 = vmatprep.subr.mxu0 0.0
        %1306 = vmatpush1.xpose.msra.mxu0 0.0
        %1307 = vmatprep.subr.mxu0 0.0
        %1308 = vmatpush1.xpose.msra.mxu0 %v1275
        %1309 = vmatprep.subr.mxu0 0.0
        %1310 = vmatpush2.xpose.msra.mxu0 0.0
        %1311 = vmatprep.subr.mxu0 0.0
        %1312 = vmatpush2.xpose.msra.mxu0 0.0
        %1313 = vmatprep.subr.mxu0 0.0
        %1314 = vmatpush2.xpose.msra.mxu0 0.0
        %1315 = vmatprep.subr.mxu0 0.0
        %1316 = vmatpush2.xpose.msra.mxu0 0.0
        %1317 = vmatprep.subr.mxu0 0.0
        %1318 = vmatpush2.xpose.msra.mxu0 0.0
        %1319 = vmatprep.subr.mxu0 0.0
        %1320 = vmatpush2.xpose.msra.mxu0 0.0
        %1321 = vmatprep.subr.mxu0 0.0
        %1322 = vmatpush2.xpose.msra.mxu0 0.0
        %1323 = vmatprep.subr.mxu0 0.0
        %1324 = vmatpush2.xpose.msra.mxu0 0.0
        %1325 = vmatprep.subr.mxu0 0.0
        %1326 = vmatpush2.xpose.msra.mxu0 0.0
        %1327 = vmatprep.subr.mxu0 0.0
        %1328 = vmatpush2.xpose.msra.mxu0 0.0
        %1329 = vmatprep.subr.mxu0 0.0
        %1330 = vmatpush2.xpose.msra.mxu0 0.0
        %1331 = vmatprep.subr.mxu0 0.0
        %1332 = vmatpush2.xpose.msra.mxu0 0.0
        %1333 = vmatprep.subr.mxu0 0.0
        %1334 = vmatpush2.xpose.msra.mxu0 0.0
        %1335 = vmatprep.subr.mxu0 0.0
        %1336 = vmatpush2.xpose.msra.mxu0 0.0
        %1337 = vmatprep.subr.mxu0 0.0
        %1338 = vmatpush2.xpose.msra.mxu0 0.0
        %1339 = vmatprep.subr.mxu0 0.0
        %1340 = vmatpush2.xpose.msra.mxu0 0.0
        %1341 = vmatprep.mubr.f32.mxu0 0.0
        %1342 = vmatmul.mubr.f32.gmra.mxu0 %v1273
        %v1343 = vpop.f32.mrf.mxu0
        %v1344 = vadd.f32 %v774, %v1343
        %v1345 = vpop.f32.mrf.mxu0
        %1346 = vdwg.mxu0
        %v1347 = vsel %vm853, %v1344, -inf
        %1348 = vmax.xlane.f32.xlu0 %v1347
        %v1349 = vpop.xlane.xlu0 %1348
        %v1350 = vsub.f32 %v1344, %v1349
        %v1351 = vmul.f32 %v1350, 1.442695
        %v1352 = vpow.pop %v1351
        %v1353 = vsel %vm853, %v1352, 0.0
        %1354 = vadd.xlane.f32.xlu0 %v1353
        %v1355 = vpop.xlane.xlu0 %1354
        %v1356 = vrcp.pop %v1355
        %v1357 = vmul.f32 %v1352, %v1356
        %1358 = vrot.lane.b32.xlu0 %v767, 32
        %v1359 = vpop.permute.xlu0 %1358
        %v1362 = vsel %vm853, %v1357, 0
        %1364 = vmatprep.subr.mxu0 0.0
        %1365 = vmatpush1.msra.mxu0 0.0
        %1366 = vmatprep.subr.mxu0 0.0
        %1367 = vmatpush1.msra.mxu0 0.0
        %1368 = vmatprep.subr.mxu0 0.0
        %1369 = vmatpush1.msra.mxu0 0.0
        %1370 = vmatprep.subr.mxu0 0.0
        %1371 = vmatpush1.msra.mxu0 0.0
        %1372 = vmatprep.subr.mxu0 0.0
        %1373 = vmatpush1.msra.mxu0 0.0
        %1374 = vmatprep.subr.mxu0 0.0
        %1375 = vmatpush1.msra.mxu0 0.0
        %1376 = vmatprep.subr.mxu0 0.0
        %1377 = vmatpush1.msra.mxu0 0.0
        %1378 = vmatprep.subr.mxu0 0.0
        %1379 = vmatpush1.msra.mxu0 0.0
        %1380 = vmatprep.subr.mxu0 0.0
        %1381 = vmatpush1.msra.mxu0 0.0
        %1382 = vmatprep.subr.mxu0 0.0
        %1383 = vmatpush1.msra.mxu0 0.0
        %1384 = vmatprep.subr.mxu0 0.0
        %1385 = vmatpush1.msra.mxu0 0.0
        %1386 = vmatprep.subr.mxu0 0.0
        %1387 = vmatpush1.msra.mxu0 0.0
        %1388 = vmatprep.subr.mxu0 0.0
        %1389 = vmatpush1.msra.mxu0 0.0
        %1390 = vmatprep.subr.mxu0 0.0
        %1391 = vmatpush1.msra.mxu0 0.0
        %1392 = vmatprep.subr.mxu0 0.0
        %1393 = vmatpush1.msra.mxu0 0.0
        %1394 = vmatprep.subr.mxu0 0.0
        %1395 = vmatpush1.msra.mxu0 %v1359
        %1396 = vmatprep.subr.mxu0 0.0
        %1397 = vmatpush2.msra.mxu0 0.0
        %1398 = vmatprep.subr.mxu0 0.0
        %1399 = vmatpush2.msra.mxu0 0.0
        %1400 = vmatprep.subr.mxu0 0.0
        %1401 = vmatpush2.msra.mxu0 0.0
        %1402 = vmatprep.subr.mxu0 0.0
        %1403 = vmatpush2.msra.mxu0 0.0
        %1404 = vmatprep.subr.mxu0 0.0
        %1405 = vmatpush2.msra.mxu0 0.0
        %1406 = vmatprep.subr.mxu0 0.0
        %1407 = vmatpush2.msra.mxu0 0.0
        %1408 = vmatprep.subr.mxu0 0.0
        %1409 = vmatpush2.msra.mxu0 0.0
        %1410 = vmatprep.subr.mxu0 0.0
        %1411 = vmatpush2.msra.mxu0 0.0
        %1412 = vmatprep.subr.mxu0 0.0
        %1413 = vmatpush2.msra.mxu0 0.0
        %1414 = vmatprep.subr.mxu0 0.0
        %1415 = vmatpush2.msra.mxu0 0.0
        %1416 = vmatprep.subr.mxu0 0.0
        %1417 = vmatpush2.msra.mxu0 0.0
        %1418 = vmatprep.subr.mxu0 0.0
        %1419 = vmatpush2.msra.mxu0 0.0
        %1420 = vmatprep.subr.mxu0 0.0
        %1421 = vmatpush2.msra.mxu0 0.0
        %1422 = vmatprep.subr.mxu0 0.0
        %1423 = vmatpush2.msra.mxu0 0.0
        %1424 = vmatprep.subr.mxu0 0.0
        %1425 = vmatpush2.msra.mxu0 0.0
        %1426 = vmatprep.subr.mxu0 0.0
        %1427 = vmatpush2.msra.mxu0 0.0
        %1428 = vmatprep.mubr.f32.mxu0 0.0
        %1429 = vmatmul.mubr.f32.gmra.mxu0 %v1362
        %v1430 = vpop.f32.mrf.mxu0
        %v1431 = vadd.f32 0.0, %v1430
        %v1432 = vpop.f32.mrf.mxu0
        %1433 = vdwg.mxu0
        %1435 = vrot.lane.b32.xlu0 %v1101, 32
        %v1436 = vpop.permute.xlu0 %1435
        %1439 = vrot.lane.b32.xlu0 %v1266, 64
        %v1440 = vpop.permute.xlu0 %1439
        %1443 = vrot.lane.b32.xlu0 %v1431, 96
        %v1444 = vpop.permute.xlu0 %1443
        %v1446 = vsel %vm776, %v935, %v1436
        %vm1447 = vcmask 523264
        %v1448 = vsel %vm1447, %v1446, %v1440
        %vm1449 = vcmask 785408
        %v1450 = vsel %vm1449, %v1448, %v1444
        %v1451 = vld [vmem:[%s4] sm:$0xff]
        %v1452 = vld [vmem:[%s4 + $0x8] sm:$0xff]
        %v1453 = vld [vmem:[%s4 + $0x10] sm:$0xff]
        %v1454 = vld [vmem:[%s4 + $0x18] sm:$0xff]
        %v1455 = vld [vmem:[%s4 + $0x20] sm:$0xff]
        %v1456 = vld [vmem:[%s4 + $0x28] sm:$0xff]
        %v1457 = vld [vmem:[%s4 + $0x30] sm:$0xff]
        %v1458 = vld [vmem:[%s4 + $0x38] sm:$0xff]
        %v1459 = vld [vmem:[%s4 + $0x40] sm:$0xff]
        %v1460 = vld [vmem:[%s4 + $0x48] sm:$0xff]
        %v1461 = vld [vmem:[%s4 + $0x50] sm:$0xff]
        %v1462 = vld [vmem:[%s4 + $0x58] sm:$0xff]
        %v1463 = vld [vmem:[%s4 + $0x60] sm:$0xff]
        %v1464 = vld [vmem:[%s4 + $0x68] sm:$0xff]
        %v1465 = vld [vmem:[%s4 + $0x70] sm:$0xff]
        %v1466 = vld [vmem:[%s4 + $0x78] sm:$0xff]
        %v1467 = vld [vmem:[#allocation7] sm:$0x1]
        %v1469 = vlaneseq
        %v1470 = vshrl.u32 %v1469, 7
        %v1471 = vsub.s32 0, %v1470
        %v1472 = vrot.slane %v1467, %v1471
        %1474 = vmatprep.subr.mxu0 0.0
        %1475 = vmatpush1.msra.mxu0 %v1466
        %1476 = vmatprep.subr.mxu0 0.0
        %1477 = vmatpush1.msra.mxu0 %v1465
        %1478 = vmatprep.subr.mxu0 0.0
        %1479 = vmatpush1.msra.mxu0 %v1464
        %1480 = vmatprep.subr.mxu0 0.0
        %1481 = vmatpush1.msra.mxu0 %v1463
        %1482 = vmatprep.subr.mxu0 0.0
        %1483 = vmatpush1.msra.mxu0 %v1462
        %1484 = vmatprep.subr.mxu0 0.0
        %1485 = vmatpush1.msra.mxu0 %v1461
        %1486 = vmatprep.subr.mxu0 0.0
        %1487 = vmatpush1.msra.mxu0 %v1460
        %1488 = vmatprep.subr.mxu0 0.0
        %1489 = vmatpush1.msra.mxu0 %v1459
        %1490 = vmatprep.subr.mxu0 0.0
        %1491 = vmatpush1.msra.mxu0 %v1458
        %1492 = vmatprep.subr.mxu0 0.0
        %1493 = vmatpush1.msra.mxu0 %v1457
        %1494 = vmatprep.subr.mxu0 0.0
        %1495 = vmatpush1.msra.mxu0 %v1456
        %1496 = vmatprep.subr.mxu0 0.0
        %1497 = vmatpush1.msra.mxu0 %v1455
        %1498 = vmatprep.subr.mxu0 0.0
        %1499 = vmatpush1.msra.mxu0 %v1454
        %1500 = vmatprep.subr.mxu0 0.0
        %1501 = vmatpush1.msra.mxu0 %v1453
        %1502 = vmatprep.subr.mxu0 0.0
        %1503 = vmatpush1.msra.mxu0 %v1452
        %1504 = vmatprep.subr.mxu0 0.0
        %1505 = vmatpush1.msra.mxu0 %v1451
        %1506 = vmatprep.subr.mxu0 0.0
        %1507 = vmatpush2.msra.mxu0 0.0
        %1508 = vmatprep.subr.mxu0 0.0
        %1509 = vmatpush2.msra.mxu0 0.0
        %1510 = vmatprep.subr.mxu0 0.0
        %1511 = vmatpush2.msra.mxu0 0.0
        %1512 = vmatprep.subr.mxu0 0.0
        %1513 = vmatpush2.msra.mxu0 0.0
        %1514 = vmatprep.subr.mxu0 0.0
        %1515 = vmatpush2.msra.mxu0 0.0
        %1516 = vmatprep.subr.mxu0 0.0
        %1517 = vmatpush2.msra.mxu0 0.0
        %1518 = vmatprep.subr.mxu0 0.0
        %1519 = vmatpush2.msra.mxu0 0.0
        %1520 = vmatprep.subr.mxu0 0.0
        %1521 = vmatpush2.msra.mxu0 0.0
        %1522 = vmatprep.subr.mxu0 0.0
        %1523 = vmatpush2.msra.mxu0 0.0
        %1524 = vmatprep.subr.mxu0 0.0
        %1525 = vmatpush2.msra.mxu0 0.0
        %1526 = vmatprep.subr.mxu0 0.0
        %1527 = vmatpush2.msra.mxu0 0.0
        %1528 = vmatprep.subr.mxu0 0.0
        %1529 = vmatpush2.msra.mxu0 0.0
        %1530 = vmatprep.subr.mxu0 0.0
        %1531 = vmatpush2.msra.mxu0 0.0
        %1532 = vmatprep.subr.mxu0 0.0
        %1533 = vmatpush2.msra.mxu0 0.0
        %1534 = vmatprep.subr.mxu0 0.0
        %1535 = vmatpush2.msra.mxu0 0.0
        %1536 = vmatprep.subr.mxu0 0.0
        %1537 = vmatpush2.msra.mxu0 0.0
        %1538 = vmatprep.mubr.f32.mxu0 0.0
        %1539 = vmatmul.mubr.f32.gmra.mxu0 %v1450
        %v1540 = vpop.f32.mrf.mxu0
        %v1541 = vadd.f32 %v1472, %v1540
        %v1542 = vpop.f32.mrf.mxu0
        %1543 = vdwg.mxu0
        %v1544 = vadd.f32 %v562, %v1541
        %v1545 = vld [vmem:[%s6] sm:$0x1]
        %v1546 = vld [vmem:[%s7] sm:$0x1]
        %1547 = vadd.xlane.f32.xlu0 %v1544
        %v1548 = vpop.xlane.xlu0 %1547
        %v1549 = vrcp.pop 128.0
        %v1550 = vmul.f32 %v1548, %v1549
        %v1551 = vsub.f32 %v1544, %v1550
        %v1552 = vmul.f32 %v1551, %v1551
        %1553 = vadd.xlane.f32.xlu0 %v1552
        %v1554 = vpop.xlane.xlu0 %1553
        %v1555 = vmul.f32 %v1554, %v1549
        %v1556 = vadd.f32 %v1555, 1e-12
        %v1557 = vrsqrt.pop %v1556
        %v1558 = vmul.f32 %v1551, %v1557
        %v1560 = vlaneseq
        %v1561 = vshrl.u32 %v1560, 7
        %v1562 = vsub.s32 0, %v1561
        %v1563 = vrot.slane %v1545, %v1562
        %v1565 = vmul.f32 %v1558, %v1563
        %v1567 = vlaneseq
        %v1568 = vshrl.u32 %v1567, 7
        %v1569 = vsub.s32 0, %v1568
        %v1570 = vrot.slane %v1546, %v1569
        %v1572 = vadd.f32 %v1565, %v1570
        %v1573 = vld [vmem:[#allocation8] sm:$0xff]
        %v1574 = vld [vmem:[#allocation8 + $0x8] sm:$0xff]
        %v1575 = vld [vmem:[#allocation8 + $0x10] sm:$0xff]
        %v1576 = vld [vmem:[#allocation8 + $0x18] sm:$0xff]
        %v1577 = vld [vmem:[#allocation8 + $0x20] sm:$0xff]
        %v1578 = vld [vmem:[#allocation8 + $0x28] sm:$0xff]
        %v1579 = vld [vmem:[#allocation8 + $0x30] sm:$0xff]
        %v1580 = vld [vmem:[#allocation8 + $0x38] sm:$0xff]
        %v1581 = vld [vmem:[#allocation8 + $0x40] sm:$0xff]
        %v1582 = vld [vmem:[#allocation8 + $0x48] sm:$0xff]
        %v1583 = vld [vmem:[#allocation8 + $0x50] sm:$0xff]
        %v1584 = vld [vmem:[#allocation8 + $0x58] sm:$0xff]
        %v1585 = vld [vmem:[#allocation8 + $0x60] sm:$0xff]
        %v1586 = vld [vmem:[#allocation8 + $0x68] sm:$0xff]
        %v1587 = vld [vmem:[#allocation8 + $0x70] sm:$0xff]
        %v1588 = vld [vmem:[#allocation8 + $0x78] sm:$0xff]
        %v1589 = vld [vmem:[#allocation8 + $0x80] sm:$0xff]
        %v1590 = vld [vmem:[#allocation8 + $0x88] sm:$0xff]
        %v1591 = vld [vmem:[#allocation8 + $0x90] sm:$0xff]
        %v1592 = vld [vmem:[#allocation8 + $0x98] sm:$0xff]
        %v1593 = vld [vmem:[#allocation8 + $0xa0] sm:$0xff]
        %v1594 = vld [vmem:[#allocation8 + $0xa8] sm:$0xff]
        %v1595 = vld [vmem:[#allocation8 + $0xb0] sm:$0xff]
        %v1596 = vld [vmem:[#allocation8 + $0xb8] sm:$0xff]
        %v1597 = vld [vmem:[#allocation8 + $0xc0] sm:$0xff]
        %v1598 = vld [vmem:[#allocation8 + $0xc8] sm:$0xff]
        %v1599 = vld [vmem:[#allocation8 + $0xd0] sm:$0xff]
        %v1600 = vld [vmem:[#allocation8 + $0xd8] sm:$0xff]
        %v1601 = vld [vmem:[#allocation8 + $0xe0] sm:$0xff]
        %v1602 = vld [vmem:[#allocation8 + $0xe8] sm:$0xff]
        %v1603 = vld [vmem:[#allocation8 + $0xf0] sm:$0xff]
        %v1604 = vld [vmem:[#allocation8 + $0xf8] sm:$0xff]
        %v1605 = vld [vmem:[%s9] sm:$0x3]
        %v1607 = vlaneseq
        %v1608 = vshrl.u32 %v1607, 7
        %v1609 = vsub.s32 0, %v1608
        %v1610 = vrot.slane %v1605, %v1609
        %v1611 = vlaneseq
        %v1612 = vshrl.u32 %v1611, 7
        %v1613 = vsub.s32 1, %v1612
        %v1614 = vrot.slane %v1605, %v1613
        %1617 = vmatprep.subr.mxu0 %v1604
        %1618 = vmatpush1.msra.mxu0 %v1603
        %1619 = vmatprep.subr.mxu0 %v1602
        %1620 = vmatpush1.msra.mxu0 %v1601
        %1621 = vmatprep.subr.mxu0 %v1600
        %1622 = vmatpush1.msra.mxu0 %v1599
        %1623 = vmatprep.subr.mxu0 %v1598
        %1624 = vmatpush1.msra.mxu0 %v1597
        %1625 = vmatprep.subr.mxu0 %v1596
        %1626 = vmatpush1.msra.mxu0 %v1595
        %1627 = vmatprep.subr.mxu0 %v1594
        %1628 = vmatpush1.msra.mxu0 %v1593
        %1629 = vmatprep.subr.mxu0 %v1592
        %1630 = vmatpush1.msra.mxu0 %v1591
        %1631 = vmatprep.subr.mxu0 %v1590
        %1632 = vmatpush1.msra.mxu0 %v1589
        %1633 = vmatprep.subr.mxu0 %v1588
        %1634 = vmatpush1.msra.mxu0 %v1587
        %1635 = vmatprep.subr.mxu0 %v1586
        %1636 = vmatpush1.msra.mxu0 %v1585
        %1637 = vmatprep.subr.mxu0 %v1584
        %1638 = vmatpush1.msra.mxu0 %v1583
        %1639 = vmatprep.subr.mxu0 %v1582
        %1640 = vmatpush1.msra.mxu0 %v1581
        %1641 = vmatprep.subr.mxu0 %v1580
        %1642 = vmatpush1.msra.mxu0 %v1579
        %1643 = vmatprep.subr.mxu0 %v1578
        %1644 = vmatpush1.msra.mxu0 %v1577
        %1645 = vmatprep.subr.mxu0 %v1576
        %1646 = vmatpush1.msra.mxu0 %v1575
        %1647 = vmatprep.subr.mxu0 %v1574
        %1648 = vmatpush1.msra.mxu0 %v1573
        %1649 = vmatprep.subr.mxu0 0.0
        %1650 = vmatpush2.msra.mxu0 0.0
        %1651 = vmatprep.subr.mxu0 0.0
        %1652 = vmatpush2.msra.mxu0 0.0
        %1653 = vmatprep.subr.mxu0 0.0
        %1654 = vmatpush2.msra.mxu0 0.0
        %1655 = vmatprep.subr.mxu0 0.0
        %1656 = vmatpush2.msra.mxu0 0.0
        %1657 = vmatprep.subr.mxu0 0.0
        %1658 = vmatpush2.msra.mxu0 0.0
        %1659 = vmatprep.subr.mxu0 0.0
        %1660 = vmatpush2.msra.mxu0 0.0
        %1661 = vmatprep.subr.mxu0 0.0
        %1662 = vmatpush2.msra.mxu0 0.0
        %1663 = vmatprep.subr.mxu0 0.0
        %1664 = vmatpush2.msra.mxu0 0.0
        %1665 = vmatprep.subr.mxu0 0.0
        %1666 = vmatpush2.msra.mxu0 0.0
        %1667 = vmatprep.subr.mxu0 0.0
        %1668 = vmatpush2.msra.mxu0 0.0
        %1669 = vmatprep.subr.mxu0 0.0
        %1670 = vmatpush2.msra.mxu0 0.0
        %1671 = vmatprep.subr.mxu0 0.0
        %1672 = vmatpush2.msra.mxu0 0.0
        %1673 = vmatprep.subr.mxu0 0.0
        %1674 = vmatpush2.msra.mxu0 0.0
        %1675 = vmatprep.subr.mxu0 0.0
        %1676 = vmatpush2.msra.mxu0 0.0
        %1677 = vmatprep.subr.mxu0 0.0
        %1678 = vmatpush2.msra.mxu0 0.0
        %1679 = vmatprep.subr.mxu0 0.0
        %1680 = vmatpush2.msra.mxu0 0.0
        %1681 = vmatprep.mubr.f32.mxu0 0.0
        %1682 = vmatmul.mubr.f32.gmra.mxu0 %v1572
        %v1683 = vpop.f32.mrf.mxu0
        %v1684 = vadd.f32 %v1610, %v1683
        %v1685 = vpop.f32.mrf.mxu0
        %v1686 = vadd.f32 %v1614, %v1685
        %1687 = vdwg.mxu0
        %v1688 = vmul.f32 %v1684, %v1684
        %v1689 = vmul.f32 %v1686, %v1686
        %v1690 = vmul.f32 %v1684, %v1688
        %v1691 = vmul.f32 %v1686, %v1689
        %v1692 = vmul.f32 %v1690, 0.044715
        %v1693 = vmul.f32 %v1691, 0.044715
        %v1694 = vadd.f32 %v1684, %v1692
        %v1695 = vadd.f32 %v1686, %v1693
        %v1696 = vmul.f32 %v1694, 0.7978846
        %v1697 = vmul.f32 %v1695, 0.7978846
        %v1698 = vtanh.pop %v1696
        %v1699 = vtanh.pop %v1697
        %v1700 = vadd.f32 %v1698, 1.0
        %v1701 = vadd.f32 %v1699, 1.0
        %v1702 = vmul.f32 %v1700, 0.5
        %v1703 = vmul.f32 %v1701, 0.5
        %v1704 = vmul.f32 %v1684, %v1702
        %v1705 = vmul.f32 %v1686, %v1703
        %v1706 = vld [vmem:[%s10] sm:$0xff]
        %v1707 = vld [vmem:[%s10 + $0x8] sm:$0xff]
        %v1708 = vld [vmem:[%s10 + $0x10] sm:$0xff]
        %v1709 = vld [vmem:[%s10 + $0x18] sm:$0xff]
        %v1710 = vld [vmem:[%s10 + $0x20] sm:$0xff]
        %v1711 = vld [vmem:[%s10 + $0x28] sm:$0xff]
        %v1712 = vld [vmem:[%s10 + $0x30] sm:$0xff]
        %v1713 = vld [vmem:[%s10 + $0x38] sm:$0xff]
        %v1714 = vld [vmem:[%s10 + $0x40] sm:$0xff]
        %v1715 = vld [vmem:[%s10 + $0x48] sm:$0xff]
        %v1716 = vld [vmem:[%s10 + $0x50] sm:$0xff]
        %v1717 = vld [vmem:[%s10 + $0x58] sm:$0xff]
        %v1718 = vld [vmem:[%s10 + $0x60] sm:$0xff]
        %v1719 = vld [vmem:[%s10 + $0x68] sm:$0xff]
        %v1720 = vld [vmem:[%s10 + $0x70] sm:$0xff]
        %v1721 = vld [vmem:[%s10 + $0x78] sm:$0xff]
        %v1722 = vld [vmem:[%s10 + $0x80] sm:$0xff]
        %v1723 = vld [vmem:[%s10 + $0x88] sm:$0xff]
        %v1724 = vld [vmem:[%s10 + $0x90] sm:$0xff]
        %v1725 = vld [vmem:[%s10 + $0x98] sm:$0xff]
        %v1726 = vld [vmem:[%s10 + $0xa0] sm:$0xff]
        %v1727 = vld [vmem:[%s10 + $0xa8] sm:$0xff]
        %v1728 = vld [vmem:[%s10 + $0xb0] sm:$0xff]
        %v1729 = vld [vmem:[%s10 + $0xb8] sm:$0xff]
        %v1730 = vld [vmem:[%s10 + $0xc0] sm:$0xff]
        %v1731 = vld [vmem:[%s10 + $0xc8] sm:$0xff]
        %v1732 = vld [vmem:[%s10 + $0xd0] sm:$0xff]
        %v1733 = vld [vmem:[%s10 + $0xd8] sm:$0xff]
        %v1734 = vld [vmem:[%s10 + $0xe0] sm:$0xff]
        %v1735 = vld [vmem:[%s10 + $0xe8] sm:$0xff]
        %v1736 = vld [vmem:[%s10 + $0xf0] sm:$0xff]
        %v1737 = vld [vmem:[%s10 + $0xf8] sm:$0xff]
        %v1738 = vld [vmem:[#allocation10] sm:$0x1]
        %v1740 = vlaneseq
        %v1741 = vshrl.u32 %v1740, 7
        %v1742 = vsub.s32 0, %v1741
        %v1743 = vrot.slane %v1738, %v1742
        %1745 = vmatprep.subr.mxu0 0.0
        %1746 = vmatpush1.msra.mxu0 %v1721
        %1747 = vmatprep.subr.mxu0 0.0
        %1748 = vmatpush1.msra.mxu0 %v1720
        %1749 = vmatprep.subr.mxu0 0.0
        %1750 = vmatpush1.msra.mxu0 %v1719
        %1751 = vmatprep.subr.mxu0 0.0
        %1752 = vmatpush1.msra.mxu0 %v1718
        %1753 = vmatprep.subr.mxu0 0.0
        %1754 = vmatpush1.msra.mxu0 %v1717
        %1755 = vmatprep.subr.mxu0 0.0
        %1756 = vmatpush1.msra.mxu0 %v1716
        %1757 = vmatprep.subr.mxu0 0.0
        %1758 = vmatpush1.msra.mxu0 %v1715
        %1759 = vmatprep.subr.mxu0 0.0
        %1760 = vmatpush1.msra.mxu0 %v1714
        %1761 = vmatprep.subr.mxu0 0.0
        %1762 = vmatpush1.msra.mxu0 %v1713
        %1763 = vmatprep.subr.mxu0 0.0
        %1764 = vmatpush1.msra.mxu0 %v1712
        %1765 = vmatprep.subr.mxu0 0.0
        %1766 = vmatpush1.msra.mxu0 %v1711
        %1767 = vmatprep.subr.mxu0 0.0
        %1768 = vmatpush1.msra.mxu0 %v1710
        %1769 = vmatprep.subr.mxu0 0.0
        %1770 = vmatpush1.msra.mxu0 %v1709
        %1771 = vmatprep.subr.mxu0 0.0
        %1772 = vmatpush1.msra.mxu0 %v1708
        %1773 = vmatprep.subr.mxu0 0.0
        %1774 = vmatpush1.msra.mxu0 %v1707
        %1775 = vmatprep.subr.mxu0 0.0
        %1776 = vmatpush1.msra.mxu0 %v1706
        %1777 = vmatprep.subr.mxu0 0.0
        %1778 = vmatpush2.msra.mxu0 %v1737
        %1779 = vmatprep.subr.mxu0 0.0
        %1780 = vmatpush2.msra.mxu0 %v1736
        %1781 = vmatprep.subr.mxu0 0.0
        %1782 = vmatpush2.msra.mxu0 %v1735
        %1783 = vmatprep.subr.mxu0 0.0
        %1784 = vmatpush2.msra.mxu0 %v1734
        %1785 = vmatprep.subr.mxu0 0.0
        %1786 = vmatpush2.msra.mxu0 %v1733
        %1787 = vmatprep.subr.mxu0 0.0
        %1788 = vmatpush2.msra.mxu0 %v1732
        %1789 = vmatprep.subr.mxu0 0.0
        %1790 = vmatpush2.msra.mxu0 %v1731
        %1791 = vmatprep.subr.mxu0 0.0
        %1792 = vmatpush2.msra.mxu0 %v1730
        %1793 = vmatprep.subr.mxu0 0.0
        %1794 = vmatpush2.msra.mxu0 %v1729
        %1795 = vmatprep.subr.mxu0 0.0
        %1796 = vmatpush2.msra.mxu0 %v1728
        %1797 = vmatprep.subr.mxu0 0.0
        %1798 = vmatpush2.msra.mxu0 %v1727
        %1799 = vmatprep.subr.mxu0 0.0
        %1800 = vmatpush2.msra.mxu0 %v1726
        %1801 = vmatprep.subr.mxu0 0.0
        %1802 = vmatpush2.msra.mxu0 %v1725
        %1803 = vmatprep.subr.mxu0 0.0
        %1804 = vmatpush2.msra.mxu0 %v1724
        %1805 = vmatprep.subr.mxu0 0.0
        %1806 = vmatpush2.msra.mxu0 %v1723
        %1807 = vmatprep.subr.mxu0 0.0
        %1808 = vmatpush2.msra.mxu0 %v1722
        %1809 = vmatprep.mubr.f32.mxu0 %v1705
        %1810 = vmatmul.mubr.f32.gmra.mxu0 %v1704
        %v1811 = vpop.f32.mrf.mxu0
        %v1812 = vadd.f32 %v1743, %v1811
        %v1813 = vpop.f32.mrf.mxu0
        %1814 = vdwg.mxu0
        %v1815 = vadd.f32 %v1572, %v1812
        %v1816 = vld [vmem:[%s12] sm:$0x1]
        %v1817 = vld [vmem:[%s13] sm:$0x1]
        %1818 = vadd.xlane.f32.xlu0 %v1815
        %v1819 = vpop.xlane.xlu0 %1818
        %v1820 = vmul.f32 %v1819, %v1549
        %v1821 = vsub.f32 %v1815, %v1820
        %v1822 = vmul.f32 %v1821, %v1821
        %1823 = vadd.xlane.f32.xlu0 %v1822
        %v1824 = vpop.xlane.xlu0 %1823
        %v1825 = vmul.f32 %v1824, %v1549
        %v1826 = vadd.f32 %v1825, 1e-12
        %v1827 = vrsqrt.pop %v1826
        %v1828 = vmul.f32 %v1821, %v1827
        %v1830 = vlaneseq
        %v1831 = vshrl.u32 %v1830, 7
        %v1832 = vsub.s32 0, %v1831
        %v1833 = vrot.slane %v1816, %v1832
        %v1835 = vmul.f32 %v1828, %v1833
        %v1837 = vlaneseq
        %v1838 = vshrl.u32 %v1837, 7
        %v1839 = vsub.s32 0, %v1838
        %v1840 = vrot.slane %v1817, %v1839
        %v1842 = vadd.f32 %v1835, %v1840
        %1843 = vst [vmem:[#allocation2] sm:$0xff] %v1842
        %p1844 = scmp.eq.s32.totalorder %s33, 1
        // Predicated region
        $region101: #{tag_value_forward.2} parent=75 // pred_check
          %p1845 = pneg %p1844
        $region102: #{tag_value_forward.2} parent=75 // pred_check_branch
          %1847 = sbr.rel (%p1845) target = $region104
        $region103: #{tag_value_forward.2} parent=75 // pred_region
          %1848 = vst [vmem:[%s555] sm:$0xff] %v1842
        $region104: #{tag_value_forward.2} parent=75 // pred_fallthru
          _
        %p1849 = scmp.lt.s32.totalorder %s32, 1
        %s1850 = scalar_select %p1849, %s32, 1
        %s1851 = smul.addr %s1850, 8
        %s1852 = scalar_lea.vmem %s14, %s1851
        // Predicated region
        $region105: #{tag_value_forward.2} parent=75 // pred_check
          %p1853 = pneg %p362
        $region106: #{tag_value_forward.2} parent=75 // pred_check_branch
          %1855 = sbr.rel (%p1853) target = $region108
        $region107: #{tag_value_forward.2} parent=75 // pred_region
          _
        $region108: #{tag_value_forward.2} parent=75 // pred_fallthru
          _
      $region76: #{tag_value_forward.2} parent=5 // pred_fallthru
        _
      %p1856 = scmp.le.s32.totalorder 2, %s23
      // Predicated region
      $region109: #{tag_value_forward.2} parent=5 // pred_check
        %p1857 = pneg %p1856
      $region110: #{tag_value_forward.2} parent=5 // pred_check_branch
        %1859 = sbr.rel (%p1857) target = $region112
      $region111: #{tag_value_forward.2} parent=5 // pred_region
        %s1860 = ssub.s32 %s23, 2
        // Predicated region
        $region113: #{tag_value_forward.2} parent=111 // pred_check
          %p1861 = pneg %p368
        $region114: #{tag_value_forward.2} parent=111 // pred_check_branch
          %1863 = sbr.rel (%p1861) target = $region116
        $region115: #{tag_value_forward.2} parent=111 // pred_region
          %p1864 = scmp.lt.s32.totalorder %s34, 1
          %s1865 = scalar_select %p1864, %s34, 1
          %s1866 = smul.addr %s1865, 8
          %s1867 = scalar_lea.vmem %s14, %s1866
        $region116: #{tag_value_forward.2} parent=111 // pred_fallthru
          _
      $region112: #{tag_value_forward.2} parent=5 // pred_fallthru
        _
    $region6: #{tag_value_forward.2} parent=1 // loop_footer
      %s27 = sadd.s32 1, %s23
    $region7: #{tag_value_forward.2} parent=1 // loop_footer_branch
      %22 = sbr.rel target = $region3
    $region8: #{tag_value_forward.2} parent=1 // loop_exit
      _
    %1868 = vsyncpa [#allocation4], 1
    %s1869 = scalar_lea.sflag [#allocation4], 1
    %1870 = vsyncpa %s1869, 1
    %1871 = vsyncpa [#allocation6], 1
    %1872 = vsyncpa [#allocation9], 1

</llo_original>
